<compile_context>
chip_gen: v6e
topology: v6e:2x2x1
jax: 0.10.0
libtpu: 0.0.40
codegen_flags: <defaults>
</compile_context>

<pallas_src>
import math

import jax
import jax.numpy as jnp
from jax.experimental import pallas as pl
from jax.experimental.pallas import tpu as pltpu

# ----------------------------- model config ---------------------------------
B = 2            # batch
S = 8            # sequence length (flattened H*W tokens)
D = 32           # d_model
H = 4            # nhead
DH = D // H      # head dim
DFF = 64         # feed-forward hidden dim
NUM_LAYERS = 2
EPS = 1e-5
BS = B * S

PARAM_ORDER = ["wqkv", "bqkv", "wo", "bo", "w1", "b1", "w2", "b2",
               "g1", "be1", "g2", "be2"]


def _layernorm(x, gamma, beta):
    mu = jnp.mean(x, axis=-1, keepdims=True)
    xc = x - mu
    var = jnp.mean(xc * xc, axis=-1, keepdims=True)
    return xc * jax.lax.rsqrt(var + EPS) * gamma + beta


# --------------------------- fused encoder kernel -----------------------------
def encoder_kernel(x_ref, pos_ref,
                   wqkv_ref, bqkv_ref, wo_ref, bo_ref,
                   w1_ref, b1_ref, w2_ref, b2_ref,
                   g1_ref, be1_ref, g2_ref, be2_ref,
                   gf_ref, bf_ref,
                   out_ref):
    x = x_ref[...]        # (BS, D) f32 residual stream
    pos = pos_ref[...]    # (BS, D) f32

    for l in range(NUM_LAYERS):                       # static unroll over layers
        # ---- fused QKV projection: ONE MXU push per layer --------------------
        # rows [0:BS)    = (x + pos) @ [Wq*scale | Wk | Wv]  -> Q, K used
        # rows [BS:2BS)  =  x        @ [Wq*scale | Wk | Wv]  -> V used
        x2 = jnp.concatenate([x + pos, x], axis=0).astype(jnp.bfloat16)
        qkv = jnp.dot(x2, wqkv_ref[l],
                      preferred_element_type=jnp.float32) + bqkv_ref[l]

        # ---- multi-head self-attention (B-batched rank-3 einsums per head) ---
        head_outs = []
        for h in range(H):
            q_h = qkv[:BS, h * DH:(h + 1) * DH].reshape(B, S, DH)
            k_h = qkv[:BS, D + h * DH:D + (h + 1) * DH].reshape(B, S, DH)
            v_h = qkv[BS:, 2 * D + h * DH:2 * D + (h + 1) * DH].reshape(B, S, DH)

            # score scale already folded into Wq columns on the host.
            s = jnp.einsum('bqd,bkd->bqk',
                           q_h.astype(jnp.bfloat16), k_h.astype(jnp.bfloat16),
                           preferred_element_type=jnp.float32)
            s = s - jnp.max(s, axis=-1, keepdims=True)      # keep stabilization
            p = jnp.exp(s)
            p = p * pl.reciprocal(jnp.sum(p, axis=-1, keepdims=True), approx=True)
            head_outs.append(
                jnp.einsum('bqk,bkd->bqd',
                           p.astype(jnp.bfloat16), v_h.astype(jnp.bfloat16),
                           preferred_element_type=jnp.float32))
        attn = jnp.concatenate(head_outs, axis=-1).reshape(BS, D)

        attn = jnp.dot(attn.astype(jnp.bfloat16), wo_ref[l],
                       preferred_element_type=jnp.float32) + bo_ref[l]
        x = _layernorm(x + attn, g1_ref[l], be1_ref[l])     # f32

        ff = jnp.dot(x.astype(jnp.bfloat16), w1_ref[l],
                     preferred_element_type=jnp.float32) + b1_ref[l]
        ff = jnp.maximum(ff, 0.0)                           # ReLU
        ff = jnp.dot(ff.astype(jnp.bfloat16), w2_ref[l],
                     preferred_element_type=jnp.float32) + b2_ref[l]
        x = _layernorm(x + ff, g2_ref[l], be2_ref[l])       # f32

    # Final LayerNorm of TransformerEncoder (the `if self.norm is not None` path).
    x = _layernorm(x, gf_ref[...], bf_ref[...])
    out_ref[...] = x                                        # (BS, D)


def _full_spec(shape):
    zeros = (0,) * len(shape)
    return pl.BlockSpec(shape, lambda i, _z=zeros: _z)


def transformer_encoder(src, pos, stacked_params, norm_params):
    """src, pos: (B, S, D) float32.  stacked_params: dict of (L, ...) weights."""
    # Wrapper-side flatten: kernel works on (B*S, D) slabs only.
    x2d = src.reshape(BS, D)
    p2d = pos.reshape(BS, D)
    args = [x2d, p2d] + [stacked_params[name] for name in PARAM_ORDER] \
        + [norm_params[0], norm_params[1]]

    out2d = pl.pallas_call(
        encoder_kernel,
        out_shape=jax.ShapeDtypeStruct((BS, D), jnp.float32),
        grid_spec=pl.GridSpec(
            grid=(1,),                                # single fused invocation
            in_specs=[_full_spec(a.shape) for a in args],
            out_specs=_full_spec((BS, D)),
        ),
        compiler_params=pltpu.CompilerParams(
            dimension_semantics=("arbitrary",),
            vmem_limit_bytes=32 * 1024 * 1024),
    )(*args)
    return out2d.reshape(B, S, D)


# ------------------------------ parameter init --------------------------------
def init_layer_params(key):
    ks = jax.random.split(key, 6)
    std = 0.02
    scale = 1.0 / math.sqrt(DH)
    # Weights stored (in, out) so the kernel computes x @ W + b (== x @ W_pt.T + b).
    wq = jax.random.normal(ks[0], (D, D), jnp.float32) * std
    wk = jax.random.normal(ks[1], (D, D), jnp.float32) * std
    wv = jax.random.normal(ks[2], (D, D), jnp.float32) * std
    # Fused (D, 3D) = [Wq*scale | Wk | Wv]; the 1/sqrt(DH) score scale is folded
    # into the Q columns (and would be folded into b_q too; b_q is zero here).
    wqkv = jnp.concatenate([wq * scale, wk, wv], axis=1).astype(jnp.bfloat16)
    return {
        "wqkv": wqkv,
        "bqkv": jnp.zeros((1, 3 * D), jnp.float32),
        "wo": (jax.random.normal(ks[3], (D, D), jnp.float32) * std).astype(jnp.bfloat16),
        "bo": jnp.zeros((1, D), jnp.float32),
        "w1": (jax.random.normal(ks[4], (D, DFF), jnp.float32) * std).astype(jnp.bfloat16),
        "b1": jnp.zeros((1, DFF), jnp.float32),
        "w2": (jax.random.normal(ks[5], (DFF, D), jnp.float32) * std).astype(jnp.bfloat16),
        "b2": jnp.zeros((1, D), jnp.float32),
        "g1": jnp.ones((1, D), jnp.float32),
        "be1": jnp.zeros((1, D), jnp.float32),
        "g2": jnp.ones((1, D), jnp.float32),
        "be2": jnp.zeros((1, D), jnp.float32),
    }


def init_stacked_params(key):
    # `_get_clones` deep-copies the layer -> independent params per layer;
    # stack along a leading layer axis so one pallas_call sees everything.
    layer_keys = jax.random.split(key, NUM_LAYERS)
    per_layer = [init_layer_params(k) for k in layer_keys]
    return {name: jnp.stack([p[name] for p in per_layer], axis=0)
            for name in PARAM_ORDER}


if __name__ == "__main__":
    root = jax.random.PRNGKey(0)
    k_src, k_pos, k_layers = jax.random.split(root, 3)

    src = jax.random.normal(k_src, (B, S, D), jnp.float32)   # layout: (B, S, D)
    pos = jax.random.normal(k_pos, (B, S, D), jnp.float32)

    stacked_params = init_stacked_params(k_layers)
    norm_params = (jnp.ones((1, D), jnp.float32), jnp.zeros((1, D), jnp.float32))

    out = transformer_encoder(src, pos, stacked_params, norm_params)
    out = jax.block_until_ready(out)
    assert out.shape == (B, S, D)
    assert bool(jnp.all(jnp.isfinite(out)))
    print("KERNEL_OK")
</pallas_src>

<mosaic_0001>
module attributes {stable_mosaic.version = 11 : i64} {
  func.func @encoder_kernel(%arg0: i32, %arg1: memref<16x32xf32, #tpu.memory_space<vmem>>, %arg2: memref<16x32xf32, #tpu.memory_space<vmem>>, %arg3: memref<2x32x96xbf16, #tpu.memory_space<vmem>>, %arg4: memref<2x1x96xf32, #tpu.memory_space<vmem>>, %arg5: memref<2x32x32xbf16, #tpu.memory_space<vmem>>, %arg6: memref<2x1x32xf32, #tpu.memory_space<vmem>>, %arg7: memref<2x32x64xbf16, #tpu.memory_space<vmem>>, %arg8: memref<2x1x64xf32, #tpu.memory_space<vmem>>, %arg9: memref<2x64x32xbf16, #tpu.memory_space<vmem>>, %arg10: memref<2x1x32xf32, #tpu.memory_space<vmem>>, %arg11: memref<2x1x32xf32, #tpu.memory_space<vmem>>, %arg12: memref<2x1x32xf32, #tpu.memory_space<vmem>>, %arg13: memref<2x1x32xf32, #tpu.memory_space<vmem>>, %arg14: memref<2x1x32xf32, #tpu.memory_space<vmem>>, %arg15: memref<1x32xf32, #tpu.memory_space<vmem>>, %arg16: memref<1x32xf32, #tpu.memory_space<vmem>>, %arg17: memref<16x32xf32, #tpu.memory_space<vmem>>) attributes {dimension_semantics = [#tpu.dimension_semantics<arbitrary>], iteration_bounds = array<i64: 1>, scalar_prefetch = 0 : i64, scratch_operands = 0 : i64, tpu.core_type = #tpu.core_type<tc>, window_params = [{pipeline_mode = #tpu.pipeline_mode<synchronous>, transform_indices = @transform_0, window_bounds = array<i64: 16, 32>}, {pipeline_mode = #tpu.pipeline_mode<synchronous>, transform_indices = @transform_1, window_bounds = array<i64: 16, 32>}, {pipeline_mode = #tpu.pipeline_mode<synchronous>, transform_indices = @transform_2, window_bounds = array<i64: 2, 32, 96>}, {pipeline_mode = #tpu.pipeline_mode<synchronous>, transform_indices = @transform_3, window_bounds = array<i64: 2, 1, 96>}, {pipeline_mode = #tpu.pipeline_mode<synchronous>, transform_indices = @transform_4, window_bounds = array<i64: 2, 32, 32>}, {pipeline_mode = #tpu.pipeline_mode<synchronous>, transform_indices = @transform_5, window_bounds = array<i64: 2, 1, 32>}, {pipeline_mode = #tpu.pipeline_mode<synchronous>, transform_indices = @transform_6, window_bounds = array<i64: 2, 32, 64>}, {pipeline_mode = #tpu.pipeline_mode<synchronous>, transform_indices = @transform_7, window_bounds = array<i64: 2, 1, 64>}, {pipeline_mode = #tpu.pipeline_mode<synchronous>, transform_indices = @transform_8, window_bounds = array<i64: 2, 64, 32>}, {pipeline_mode = #tpu.pipeline_mode<synchronous>, transform_indices = @transform_9, window_bounds = array<i64: 2, 1, 32>}, {pipeline_mode = #tpu.pipeline_mode<synchronous>, transform_indices = @transform_10, window_bounds = array<i64: 2, 1, 32>}, {pipeline_mode = #tpu.pipeline_mode<synchronous>, transform_indices = @transform_11, window_bounds = array<i64: 2, 1, 32>}, {pipeline_mode = #tpu.pipeline_mode<synchronous>, transform_indices = @transform_12, window_bounds = array<i64: 2, 1, 32>}, {pipeline_mode = #tpu.pipeline_mode<synchronous>, transform_indices = @transform_13, window_bounds = array<i64: 2, 1, 32>}, {pipeline_mode = #tpu.pipeline_mode<synchronous>, transform_indices = @transform_14, window_bounds = array<i64: 1, 32>}, {pipeline_mode = #tpu.pipeline_mode<synchronous>, transform_indices = @transform_15, window_bounds = array<i64: 1, 32>}, {pipeline_mode = #tpu.pipeline_mode<synchronous>, transform_indices = @transform_16, window_bounds = array<i64: 16, 32>}]} {
    %c0 = arith.constant 0 : index
    %c0_0 = arith.constant 0 : index
    %0 = vector.load %arg1[%c0, %c0_0] : memref<16x32xf32, #tpu.memory_space<vmem>>, vector<16x32xf32>
    %c0_1 = arith.constant 0 : index
    %c0_2 = arith.constant 0 : index
    %1 = vector.load %arg2[%c0_1, %c0_2] : memref<16x32xf32, #tpu.memory_space<vmem>>, vector<16x32xf32>
    %2 = arith.addf %0, %1 : vector<16x32xf32>
    %3 = tpu.concatenate %2, %0 in 0 : vector<16x32xf32>, vector<16x32xf32> -> vector<32x32xf32>
    %4 = arith.truncf %3 : vector<32x32xf32> to vector<32x32xbf16>
    %c0_3 = arith.constant 0 : index
    %c0_4 = arith.constant 0 : index
    %c0_5 = arith.constant 0 : index
    %5 = vector.load %arg3[%c0_3, %c0_4, %c0_5] : memref<2x32x96xbf16, #tpu.memory_space<vmem>>, vector<1x32x96xbf16>
    %6 = vector.shape_cast %5 : vector<1x32x96xbf16> to vector<32x96xbf16>
    %cst = arith.constant dense<0.000000e+00> : vector<32x96xf32>
    %7 = tpu.matmul %4, %6, %cst {dimension_numbers = #tpu.dot_dimension_numbers<[1], [0], [0], [1], [0, 0, 1, 1], [], []>} : vector<32x32xbf16>, vector<32x96xbf16>, vector<32x96xf32> -> vector<32x96xf32>
    %c0_6 = arith.constant 0 : index
    %c0_7 = arith.constant 0 : index
    %c0_8 = arith.constant 0 : index
    %8 = vector.load %arg4[%c0_6, %c0_7, %c0_8] : memref<2x1x96xf32, #tpu.memory_space<vmem>>, vector<1x1x96xf32>
    %9 = vector.shape_cast %8 : vector<1x1x96xf32> to vector<1x96xf32>
    %10 = vector.broadcast %9 : vector<1x96xf32> to vector<32x96xf32>
    %11 = arith.addf %7, %10 : vector<32x96xf32>
    %12 = vector.extract_strided_slice %11 {offsets = [0, 0], sizes = [16, 8], strides = [1, 1]} : vector<32x96xf32> to vector<16x8xf32>
    %13 = vector.shape_cast %12 : vector<16x8xf32> to vector<2x8x8xf32>
    %14 = vector.extract_strided_slice %11 {offsets = [0, 32], sizes = [16, 8], strides = [1, 1]} : vector<32x96xf32> to vector<16x8xf32>
    %15 = vector.shape_cast %14 : vector<16x8xf32> to vector<2x8x8xf32>
    %16 = vector.extract_strided_slice %11 {offsets = [16, 64], sizes = [16, 8], strides = [1, 1]} : vector<32x96xf32> to vector<16x8xf32>
    %17 = vector.shape_cast %16 : vector<16x8xf32> to vector<2x8x8xf32>
    %18 = arith.truncf %13 : vector<2x8x8xf32> to vector<2x8x8xbf16>
    %19 = arith.truncf %15 : vector<2x8x8xf32> to vector<2x8x8xbf16>
    "tpu.trace_start"() <{level = 10 : i32, message = "bqd,bkd->bqk"}> : () -> ()
    %cst_9 = arith.constant dense<0.000000e+00> : vector<2x8x8xf32>
    %20 = tpu.matmul %18, %19, %cst_9 {dimension_numbers = #tpu.dot_dimension_numbers<[2], [2], [1], [1], [0, 0, 0, 1, 1, 1], [0], [0]>} : vector<2x8x8xbf16>, vector<2x8x8xbf16>, vector<2x8x8xf32> -> vector<2x8x8xf32>
    "tpu.trace_stop"() : () -> ()
    %cst_10 = arith.constant dense<0xFF800000> : vector<2x8xf32>
    %21 = vector.multi_reduction <maximumf>, %20, %cst_10 [2] : vector<2x8x8xf32> to vector<2x8xf32>
    %22 = vector.shape_cast %21 : vector<2x8xf32> to vector<2x8x1xf32>
    %23 = vector.broadcast %22 : vector<2x8x1xf32> to vector<2x8x8xf32>
    %24 = arith.subf %20, %23 : vector<2x8x8xf32>
    %25 = math.exp %24 : vector<2x8x8xf32>
    %cst_11 = arith.constant dense<0.000000e+00> : vector<2x8xf32>
    %26 = vector.multi_reduction <add>, %25, %cst_11 [2] : vector<2x8x8xf32> to vector<2x8xf32>
    %27 = vector.shape_cast %26 : vector<2x8xf32> to vector<2x8x1xf32>
    %28 = tpu.reciprocal %27 {approx = true} : vector<2x8x1xf32> -> vector<2x8x1xf32>
    %29 = vector.broadcast %28 : vector<2x8x1xf32> to vector<2x8x8xf32>
    %30 = arith.mulf %25, %29 : vector<2x8x8xf32>
    %31 = arith.truncf %30 : vector<2x8x8xf32> to vector<2x8x8xbf16>
    %32 = arith.truncf %17 : vector<2x8x8xf32> to vector<2x8x8xbf16>
    "tpu.trace_start"() <{level = 10 : i32, message = "bqk,bkd->bqd"}> : () -> ()
    %cst_12 = arith.constant dense<0.000000e+00> : vector<2x8x8xf32>
    %33 = tpu.matmul %31, %32, %cst_12 {dimension_numbers = #tpu.dot_dimension_numbers<[2], [1], [1], [2], [0, 0, 0, 1, 1, 2], [0], [0]>} : vector<2x8x8xbf16>, vector<2x8x8xbf16>, vector<2x8x8xf32> -> vector<2x8x8xf32>
    "tpu.trace_stop"() : () -> ()
    %34 = vector.extract_strided_slice %11 {offsets = [0, 8], sizes = [16, 8], strides = [1, 1]} : vector<32x96xf32> to vector<16x8xf32>
    %35 = vector.shape_cast %34 : vector<16x8xf32> to vector<2x8x8xf32>
    %36 = vector.extract_strided_slice %11 {offsets = [0, 40], sizes = [16, 8], strides = [1, 1]} : vector<32x96xf32> to vector<16x8xf32>
    %37 = vector.shape_cast %36 : vector<16x8xf32> to vector<2x8x8xf32>
    %38 = vector.extract_strided_slice %11 {offsets = [16, 72], sizes = [16, 8], strides = [1, 1]} : vector<32x96xf32> to vector<16x8xf32>
    %39 = vector.shape_cast %38 : vector<16x8xf32> to vector<2x8x8xf32>
    %40 = arith.truncf %35 : vector<2x8x8xf32> to vector<2x8x8xbf16>
    %41 = arith.truncf %37 : vector<2x8x8xf32> to vector<2x8x8xbf16>
    "tpu.trace_start"() <{level = 10 : i32, message = "bqd,bkd->bqk"}> : () -> ()
    %cst_13 = arith.constant dense<0.000000e+00> : vector<2x8x8xf32>
    %42 = tpu.matmul %40, %41, %cst_13 {dimension_numbers = #tpu.dot_dimension_numbers<[2], [2], [1], [1], [0, 0, 0, 1, 1, 1], [0], [0]>} : vector<2x8x8xbf16>, vector<2x8x8xbf16>, vector<2x8x8xf32> -> vector<2x8x8xf32>
    "tpu.trace_stop"() : () -> ()
    %cst_14 = arith.constant dense<0xFF800000> : vector<2x8xf32>
    %43 = vector.multi_reduction <maximumf>, %42, %cst_14 [2] : vector<2x8x8xf32> to vector<2x8xf32>
    %44 = vector.shape_cast %43 : vector<2x8xf32> to vector<2x8x1xf32>
    %45 = vector.broadcast %44 : vector<2x8x1xf32> to vector<2x8x8xf32>
    %46 = arith.subf %42, %45 : vector<2x8x8xf32>
    %47 = math.exp %46 : vector<2x8x8xf32>
    %cst_15 = arith.constant dense<0.000000e+00> : vector<2x8xf32>
    %48 = vector.multi_reduction <add>, %47, %cst_15 [2] : vector<2x8x8xf32> to vector<2x8xf32>
    %49 = vector.shape_cast %48 : vector<2x8xf32> to vector<2x8x1xf32>
    %50 = tpu.reciprocal %49 {approx = true} : vector<2x8x1xf32> -> vector<2x8x1xf32>
    %51 = vector.broadcast %50 : vector<2x8x1xf32> to vector<2x8x8xf32>
    %52 = arith.mulf %47, %51 : vector<2x8x8xf32>
    %53 = arith.truncf %52 : vector<2x8x8xf32> to vector<2x8x8xbf16>
    %54 = arith.truncf %39 : vector<2x8x8xf32> to vector<2x8x8xbf16>
    "tpu.trace_start"() <{level = 10 : i32, message = "bqk,bkd->bqd"}> : () -> ()
    %cst_16 = arith.constant dense<0.000000e+00> : vector<2x8x8xf32>
    %55 = tpu.matmul %53, %54, %cst_16 {dimension_numbers = #tpu.dot_dimension_numbers<[2], [1], [1], [2], [0, 0, 0, 1, 1, 2], [0], [0]>} : vector<2x8x8xbf16>, vector<2x8x8xbf16>, vector<2x8x8xf32> -> vector<2x8x8xf32>
    "tpu.trace_stop"() : () -> ()
    %56 = vector.extract_strided_slice %11 {offsets = [0, 16], sizes = [16, 8], strides = [1, 1]} : vector<32x96xf32> to vector<16x8xf32>
    %57 = vector.shape_cast %56 : vector<16x8xf32> to vector<2x8x8xf32>
    %58 = vector.extract_strided_slice %11 {offsets = [0, 48], sizes = [16, 8], strides = [1, 1]} : vector<32x96xf32> to vector<16x8xf32>
    %59 = vector.shape_cast %58 : vector<16x8xf32> to vector<2x8x8xf32>
    %60 = vector.extract_strided_slice %11 {offsets = [16, 80], sizes = [16, 8], strides = [1, 1]} : vector<32x96xf32> to vector<16x8xf32>
    %61 = vector.shape_cast %60 : vector<16x8xf32> to vector<2x8x8xf32>
    %62 = arith.truncf %57 : vector<2x8x8xf32> to vector<2x8x8xbf16>
    %63 = arith.truncf %59 : vector<2x8x8xf32> to vector<2x8x8xbf16>
    "tpu.trace_start"() <{level = 10 : i32, message = "bqd,bkd->bqk"}> : () -> ()
    %cst_17 = arith.constant dense<0.000000e+00> : vector<2x8x8xf32>
    %64 = tpu.matmul %62, %63, %cst_17 {dimension_numbers = #tpu.dot_dimension_numbers<[2], [2], [1], [1], [0, 0, 0, 1, 1, 1], [0], [0]>} : vector<2x8x8xbf16>, vector<2x8x8xbf16>, vector<2x8x8xf32> -> vector<2x8x8xf32>
    "tpu.trace_stop"() : () -> ()
    %cst_18 = arith.constant dense<0xFF800000> : vector<2x8xf32>
    %65 = vector.multi_reduction <maximumf>, %64, %cst_18 [2] : vector<2x8x8xf32> to vector<2x8xf32>
    %66 = vector.shape_cast %65 : vector<2x8xf32> to vector<2x8x1xf32>
    %67 = vector.broadcast %66 : vector<2x8x1xf32> to vector<2x8x8xf32>
    %68 = arith.subf %64, %67 : vector<2x8x8xf32>
    %69 = math.exp %68 : vector<2x8x8xf32>
    %cst_19 = arith.constant dense<0.000000e+00> : vector<2x8xf32>
    %70 = vector.multi_reduction <add>, %69, %cst_19 [2] : vector<2x8x8xf32> to vector<2x8xf32>
    %71 = vector.shape_cast %70 : vector<2x8xf32> to vector<2x8x1xf32>
    %72 = tpu.reciprocal %71 {approx = true} : vector<2x8x1xf32> -> vector<2x8x1xf32>
    %73 = vector.broadcast %72 : vector<2x8x1xf32> to vector<2x8x8xf32>
    %74 = arith.mulf %69, %73 : vector<2x8x8xf32>
    %75 = arith.truncf %74 : vector<2x8x8xf32> to vector<2x8x8xbf16>
    %76 = arith.truncf %61 : vector<2x8x8xf32> to vector<2x8x8xbf16>
    "tpu.trace_start"() <{level = 10 : i32, message = "bqk,bkd->bqd"}> : () -> ()
    %cst_20 = arith.constant dense<0.000000e+00> : vector<2x8x8xf32>
    %77 = tpu.matmul %75, %76, %cst_20 {dimension_numbers = #tpu.dot_dimension_numbers<[2], [1], [1], [2], [0, 0, 0, 1, 1, 2], [0], [0]>} : vector<2x8x8xbf16>, vector<2x8x8xbf16>, vector<2x8x8xf32> -> vector<2x8x8xf32>
    "tpu.trace_stop"() : () -> ()
    %78 = vector.extract_strided_slice %11 {offsets = [0, 24], sizes = [16, 8], strides = [1, 1]} : vector<32x96xf32> to vector<16x8xf32>
    %79 = vector.shape_cast %78 : vector<16x8xf32> to vector<2x8x8xf32>
    %80 = vector.extract_strided_slice %11 {offsets = [0, 56], sizes = [16, 8], strides = [1, 1]} : vector<32x96xf32> to vector<16x8xf32>
    %81 = vector.shape_cast %80 : vector<16x8xf32> to vector<2x8x8xf32>
    %82 = vector.extract_strided_slice %11 {offsets = [16, 88], sizes = [16, 8], strides = [1, 1]} : vector<32x96xf32> to vector<16x8xf32>
    %83 = vector.shape_cast %82 : vector<16x8xf32> to vector<2x8x8xf32>
    %84 = arith.truncf %79 : vector<2x8x8xf32> to vector<2x8x8xbf16>
    %85 = arith.truncf %81 : vector<2x8x8xf32> to vector<2x8x8xbf16>
    "tpu.trace_start"() <{level = 10 : i32, message = "bqd,bkd->bqk"}> : () -> ()
    %cst_21 = arith.constant dense<0.000000e+00> : vector<2x8x8xf32>
    %86 = tpu.matmul %84, %85, %cst_21 {dimension_numbers = #tpu.dot_dimension_numbers<[2], [2], [1], [1], [0, 0, 0, 1, 1, 1], [0], [0]>} : vector<2x8x8xbf16>, vector<2x8x8xbf16>, vector<2x8x8xf32> -> vector<2x8x8xf32>
    "tpu.trace_stop"() : () -> ()
    %cst_22 = arith.constant dense<0xFF800000> : vector<2x8xf32>
    %87 = vector.multi_reduction <maximumf>, %86, %cst_22 [2] : vector<2x8x8xf32> to vector<2x8xf32>
    %88 = vector.shape_cast %87 : vector<2x8xf32> to vector<2x8x1xf32>
    %89 = vector.broadcast %88 : vector<2x8x1xf32> to vector<2x8x8xf32>
    %90 = arith.subf %86, %89 : vector<2x8x8xf32>
    %91 = math.exp %90 : vector<2x8x8xf32>
    %cst_23 = arith.constant dense<0.000000e+00> : vector<2x8xf32>
    %92 = vector.multi_reduction <add>, %91, %cst_23 [2] : vector<2x8x8xf32> to vector<2x8xf32>
    %93 = vector.shape_cast %92 : vector<2x8xf32> to vector<2x8x1xf32>
    %94 = tpu.reciprocal %93 {approx = true} : vector<2x8x1xf32> -> vector<2x8x1xf32>
    %95 = vector.broadcast %94 : vector<2x8x1xf32> to vector<2x8x8xf32>
    %96 = arith.mulf %91, %95 : vector<2x8x8xf32>
    %97 = arith.truncf %96 : vector<2x8x8xf32> to vector<2x8x8xbf16>
    %98 = arith.truncf %83 : vector<2x8x8xf32> to vector<2x8x8xbf16>
    "tpu.trace_start"() <{level = 10 : i32, message = "bqk,bkd->bqd"}> : () -> ()
    %cst_24 = arith.constant dense<0.000000e+00> : vector<2x8x8xf32>
    %99 = tpu.matmul %97, %98, %cst_24 {dimension_numbers = #tpu.dot_dimension_numbers<[2], [1], [1], [2], [0, 0, 0, 1, 1, 2], [0], [0]>} : vector<2x8x8xbf16>, vector<2x8x8xbf16>, vector<2x8x8xf32> -> vector<2x8x8xf32>
    "tpu.trace_stop"() : () -> ()
    %100 = tpu.concatenate %33, %55, %77, %99 in 2 : vector<2x8x8xf32>, vector<2x8x8xf32>, vector<2x8x8xf32>, vector<2x8x8xf32> -> vector<2x8x32xf32>
    %101 = vector.shape_cast %100 : vector<2x8x32xf32> to vector<16x32xf32>
    %102 = arith.truncf %101 : vector<16x32xf32> to vector<16x32xbf16>
    %c0_25 = arith.constant 0 : index
    %c0_26 = arith.constant 0 : index
    %c0_27 = arith.constant 0 : index
    %103 = vector.load %arg5[%c0_25, %c0_26, %c0_27] : memref<2x32x32xbf16, #tpu.memory_space<vmem>>, vector<1x32x32xbf16>
    %104 = vector.shape_cast %103 : vector<1x32x32xbf16> to vector<32x32xbf16>
    %cst_28 = arith.constant dense<0.000000e+00> : vector<16x32xf32>
    %105 = tpu.matmul %102, %104, %cst_28 {dimension_numbers = #tpu.dot_dimension_numbers<[1], [0], [0], [1], [0, 0, 1, 1], [], []>} : vector<16x32xbf16>, vector<32x32xbf16>, vector<16x32xf32> -> vector<16x32xf32>
    %c0_29 = arith.constant 0 : index
    %c0_30 = arith.constant 0 : index
    %c0_31 = arith.constant 0 : index
    %106 = vector.load %arg6[%c0_29, %c0_30, %c0_31] : memref<2x1x32xf32, #tpu.memory_space<vmem>>, vector<1x1x32xf32>
    %107 = vector.shape_cast %106 : vector<1x1x32xf32> to vector<1x32xf32>
    %108 = vector.broadcast %107 : vector<1x32xf32> to vector<16x32xf32>
    %109 = arith.addf %105, %108 : vector<16x32xf32>
    %110 = arith.addf %0, %109 : vector<16x32xf32>
    %c0_32 = arith.constant 0 : index
    %c0_33 = arith.constant 0 : index
    %c0_34 = arith.constant 0 : index
    %111 = vector.load %arg11[%c0_32, %c0_33, %c0_34] : memref<2x1x32xf32, #tpu.memory_space<vmem>>, vector<1x1x32xf32>
    %112 = vector.shape_cast %111 : vector<1x1x32xf32> to vector<1x32xf32>
    %c0_35 = arith.constant 0 : index
    %c0_36 = arith.constant 0 : index
    %c0_37 = arith.constant 0 : index
    %113 = vector.load %arg12[%c0_35, %c0_36, %c0_37] : memref<2x1x32xf32, #tpu.memory_space<vmem>>, vector<1x1x32xf32>
    %114 = vector.shape_cast %113 : vector<1x1x32xf32> to vector<1x32xf32>
    %cst_38 = arith.constant dense<0.000000e+00> : vector<16xf32>
    %115 = vector.multi_reduction <add>, %110, %cst_38 [1] : vector<16x32xf32> to vector<16xf32>
    %116 = vector.shape_cast %115 : vector<16xf32> to vector<16x1xf32>
    %cst_39 = arith.constant 3.200000e+01 : f32
    %117 = vector.broadcast %cst_39 : f32 to vector<16x1xf32>
    %118 = arith.divf %116, %117 : vector<16x1xf32>
    %119 = vector.broadcast %118 : vector<16x1xf32> to vector<16x32xf32>
    %120 = arith.subf %110, %119 : vector<16x32xf32>
    %121 = arith.mulf %120, %120 : vector<16x32xf32>
    %cst_40 = arith.constant dense<0.000000e+00> : vector<16xf32>
    %122 = vector.multi_reduction <add>, %121, %cst_40 [1] : vector<16x32xf32> to vector<16xf32>
    %123 = vector.shape_cast %122 : vector<16xf32> to vector<16x1xf32>
    %cst_41 = arith.constant 3.200000e+01 : f32
    %124 = vector.broadcast %cst_41 : f32 to vector<16x1xf32>
    %125 = arith.divf %123, %124 : vector<16x1xf32>
    %cst_42 = arith.constant 9.99999974E-6 : f32
    %126 = vector.broadcast %cst_42 : f32 to vector<16x1xf32>
    %127 = arith.addf %125, %126 : vector<16x1xf32>
    %128 = math.rsqrt %127 : vector<16x1xf32>
    %129 = vector.broadcast %128 : vector<16x1xf32> to vector<16x32xf32>
    %130 = arith.mulf %120, %129 : vector<16x32xf32>
    %131 = vector.broadcast %112 : vector<1x32xf32> to vector<16x32xf32>
    %132 = arith.mulf %130, %131 : vector<16x32xf32>
    %133 = vector.broadcast %114 : vector<1x32xf32> to vector<16x32xf32>
    %134 = arith.addf %132, %133 : vector<16x32xf32>
    %135 = arith.truncf %134 : vector<16x32xf32> to vector<16x32xbf16>
    %c0_43 = arith.constant 0 : index
    %c0_44 = arith.constant 0 : index
    %c0_45 = arith.constant 0 : index
    %136 = vector.load %arg7[%c0_43, %c0_44, %c0_45] : memref<2x32x64xbf16, #tpu.memory_space<vmem>>, vector<1x32x64xbf16>
    %137 = vector.shape_cast %136 : vector<1x32x64xbf16> to vector<32x64xbf16>
    %cst_46 = arith.constant dense<0.000000e+00> : vector<16x64xf32>
    %138 = tpu.matmul %135, %137, %cst_46 {dimension_numbers = #tpu.dot_dimension_numbers<[1], [0], [0], [1], [0, 0, 1, 1], [], []>} : vector<16x32xbf16>, vector<32x64xbf16>, vector<16x64xf32> -> vector<16x64xf32>
    %c0_47 = arith.constant 0 : index
    %c0_48 = arith.constant 0 : index
    %c0_49 = arith.constant 0 : index
    %139 = vector.load %arg8[%c0_47, %c0_48, %c0_49] : memref<2x1x64xf32, #tpu.memory_space<vmem>>, vector<1x1x64xf32>
    %140 = vector.shape_cast %139 : vector<1x1x64xf32> to vector<1x64xf32>
    %141 = vector.broadcast %140 : vector<1x64xf32> to vector<16x64xf32>
    %142 = arith.addf %138, %141 : vector<16x64xf32>
    %cst_50 = arith.constant 0.000000e+00 : f32
    %143 = vector.broadcast %cst_50 : f32 to vector<16x64xf32>
    %144 = arith.maximumf %142, %143 : vector<16x64xf32>
    %145 = arith.truncf %144 : vector<16x64xf32> to vector<16x64xbf16>
    %c0_51 = arith.constant 0 : index
    %c0_52 = arith.constant 0 : index
    %c0_53 = arith.constant 0 : index
    %146 = vector.load %arg9[%c0_51, %c0_52, %c0_53] : memref<2x64x32xbf16, #tpu.memory_space<vmem>>, vector<1x64x32xbf16>
    %147 = vector.shape_cast %146 : vector<1x64x32xbf16> to vector<64x32xbf16>
    %cst_54 = arith.constant dense<0.000000e+00> : vector<16x32xf32>
    %148 = tpu.matmul %145, %147, %cst_54 {dimension_numbers = #tpu.dot_dimension_numbers<[1], [0], [0], [1], [0, 0, 1, 1], [], []>} : vector<16x64xbf16>, vector<64x32xbf16>, vector<16x32xf32> -> vector<16x32xf32>
    %c0_55 = arith.constant 0 : index
    %c0_56 = arith.constant 0 : index
    %c0_57 = arith.constant 0 : index
    %149 = vector.load %arg10[%c0_55, %c0_56, %c0_57] : memref<2x1x32xf32, #tpu.memory_space<vmem>>, vector<1x1x32xf32>
    %150 = vector.shape_cast %149 : vector<1x1x32xf32> to vector<1x32xf32>
    %151 = vector.broadcast %150 : vector<1x32xf32> to vector<16x32xf32>
    %152 = arith.addf %148, %151 : vector<16x32xf32>
    %153 = arith.addf %134, %152 : vector<16x32xf32>
    %c0_58 = arith.constant 0 : index
    %c0_59 = arith.constant 0 : index
    %c0_60 = arith.constant 0 : index
    %154 = vector.load %arg13[%c0_58, %c0_59, %c0_60] : memref<2x1x32xf32, #tpu.memory_space<vmem>>, vector<1x1x32xf32>
    %155 = vector.shape_cast %154 : vector<1x1x32xf32> to vector<1x32xf32>
    %c0_61 = arith.constant 0 : index
    %c0_62 = arith.constant 0 : index
    %c0_63 = arith.constant 0 : index
    %156 = vector.load %arg14[%c0_61, %c0_62, %c0_63] : memref<2x1x32xf32, #tpu.memory_space<vmem>>, vector<1x1x32xf32>
    %157 = vector.shape_cast %156 : vector<1x1x32xf32> to vector<1x32xf32>
    %cst_64 = arith.constant dense<0.000000e+00> : vector<16xf32>
    %158 = vector.multi_reduction <add>, %153, %cst_64 [1] : vector<16x32xf32> to vector<16xf32>
    %159 = vector.shape_cast %158 : vector<16xf32> to vector<16x1xf32>
    %cst_65 = arith.constant 3.200000e+01 : f32
    %160 = vector.broadcast %cst_65 : f32 to vector<16x1xf32>
    %161 = arith.divf %159, %160 : vector<16x1xf32>
    %162 = vector.broadcast %161 : vector<16x1xf32> to vector<16x32xf32>
    %163 = arith.subf %153, %162 : vector<16x32xf32>
    %164 = arith.mulf %163, %163 : vector<16x32xf32>
    %cst_66 = arith.constant dense<0.000000e+00> : vector<16xf32>
    %165 = vector.multi_reduction <add>, %164, %cst_66 [1] : vector<16x32xf32> to vector<16xf32>
    %166 = vector.shape_cast %165 : vector<16xf32> to vector<16x1xf32>
    %cst_67 = arith.constant 3.200000e+01 : f32
    %167 = vector.broadcast %cst_67 : f32 to vector<16x1xf32>
    %168 = arith.divf %166, %167 : vector<16x1xf32>
    %cst_68 = arith.constant 9.99999974E-6 : f32
    %169 = vector.broadcast %cst_68 : f32 to vector<16x1xf32>
    %170 = arith.addf %168, %169 : vector<16x1xf32>
    %171 = math.rsqrt %170 : vector<16x1xf32>
    %172 = vector.broadcast %171 : vector<16x1xf32> to vector<16x32xf32>
    %173 = arith.mulf %163, %172 : vector<16x32xf32>
    %174 = vector.broadcast %155 : vector<1x32xf32> to vector<16x32xf32>
    %175 = arith.mulf %173, %174 : vector<16x32xf32>
    %176 = vector.broadcast %157 : vector<1x32xf32> to vector<16x32xf32>
    %177 = arith.addf %175, %176 : vector<16x32xf32>
    %178 = arith.addf %177, %1 : vector<16x32xf32>
    %179 = tpu.concatenate %178, %177 in 0 : vector<16x32xf32>, vector<16x32xf32> -> vector<32x32xf32>
    %180 = arith.truncf %179 : vector<32x32xf32> to vector<32x32xbf16>
    %c1 = arith.constant 1 : index
    %c0_69 = arith.constant 0 : index
    %c0_70 = arith.constant 0 : index
    %181 = vector.load %arg3[%c1, %c0_69, %c0_70] : memref<2x32x96xbf16, #tpu.memory_space<vmem>>, vector<1x32x96xbf16>
    %182 = vector.shape_cast %181 : vector<1x32x96xbf16> to vector<32x96xbf16>
    %cst_71 = arith.constant dense<0.000000e+00> : vector<32x96xf32>
    %183 = tpu.matmul %180, %182, %cst_71 {dimension_numbers = #tpu.dot_dimension_numbers<[1], [0], [0], [1], [0, 0, 1, 1], [], []>} : vector<32x32xbf16>, vector<32x96xbf16>, vector<32x96xf32> -> vector<32x96xf32>
    %c1_72 = arith.constant 1 : index
    %c0_73 = arith.constant 0 : index
    %c0_74 = arith.constant 0 : index
    %184 = vector.load %arg4[%c1_72, %c0_73, %c0_74] : memref<2x1x96xf32, #tpu.memory_space<vmem>>, vector<1x1x96xf32>
    %185 = vector.shape_cast %184 : vector<1x1x96xf32> to vector<1x96xf32>
    %186 = vector.broadcast %185 : vector<1x96xf32> to vector<32x96xf32>
    %187 = arith.addf %183, %186 : vector<32x96xf32>
    %188 = vector.extract_strided_slice %187 {offsets = [0, 0], sizes = [16, 8], strides = [1, 1]} : vector<32x96xf32> to vector<16x8xf32>
    %189 = vector.shape_cast %188 : vector<16x8xf32> to vector<2x8x8xf32>
    %190 = vector.extract_strided_slice %187 {offsets = [0, 32], sizes = [16, 8], strides = [1, 1]} : vector<32x96xf32> to vector<16x8xf32>
    %191 = vector.shape_cast %190 : vector<16x8xf32> to vector<2x8x8xf32>
    %192 = vector.extract_strided_slice %187 {offsets = [16, 64], sizes = [16, 8], strides = [1, 1]} : vector<32x96xf32> to vector<16x8xf32>
    %193 = vector.shape_cast %192 : vector<16x8xf32> to vector<2x8x8xf32>
    %194 = arith.truncf %189 : vector<2x8x8xf32> to vector<2x8x8xbf16>
    %195 = arith.truncf %191 : vector<2x8x8xf32> to vector<2x8x8xbf16>
    "tpu.trace_start"() <{level = 10 : i32, message = "bqd,bkd->bqk"}> : () -> ()
    %cst_75 = arith.constant dense<0.000000e+00> : vector<2x8x8xf32>
    %196 = tpu.matmul %194, %195, %cst_75 {dimension_numbers = #tpu.dot_dimension_numbers<[2], [2], [1], [1], [0, 0, 0, 1, 1, 1], [0], [0]>} : vector<2x8x8xbf16>, vector<2x8x8xbf16>, vector<2x8x8xf32> -> vector<2x8x8xf32>
    "tpu.trace_stop"() : () -> ()
    %cst_76 = arith.constant dense<0xFF800000> : vector<2x8xf32>
    %197 = vector.multi_reduction <maximumf>, %196, %cst_76 [2] : vector<2x8x8xf32> to vector<2x8xf32>
    %198 = vector.shape_cast %197 : vector<2x8xf32> to vector<2x8x1xf32>
    %199 = vector.broadcast %198 : vector<2x8x1xf32> to vector<2x8x8xf32>
    %200 = arith.subf %196, %199 : vector<2x8x8xf32>
    %201 = math.exp %200 : vector<2x8x8xf32>
    %cst_77 = arith.constant dense<0.000000e+00> : vector<2x8xf32>
    %202 = vector.multi_reduction <add>, %201, %cst_77 [2] : vector<2x8x8xf32> to vector<2x8xf32>
    %203 = vector.shape_cast %202 : vector<2x8xf32> to vector<2x8x1xf32>
    %204 = tpu.reciprocal %203 {approx = true} : vector<2x8x1xf32> -> vector<2x8x1xf32>
    %205 = vector.broadcast %204 : vector<2x8x1xf32> to vector<2x8x8xf32>
    %206 = arith.mulf %201, %205 : vector<2x8x8xf32>
    %207 = arith.truncf %206 : vector<2x8x8xf32> to vector<2x8x8xbf16>
    %208 = arith.truncf %193 : vector<2x8x8xf32> to vector<2x8x8xbf16>
    "tpu.trace_start"() <{level = 10 : i32, message = "bqk,bkd->bqd"}> : () -> ()
    %cst_78 = arith.constant dense<0.000000e+00> : vector<2x8x8xf32>
    %209 = tpu.matmul %207, %208, %cst_78 {dimension_numbers = #tpu.dot_dimension_numbers<[2], [1], [1], [2], [0, 0, 0, 1, 1, 2], [0], [0]>} : vector<2x8x8xbf16>, vector<2x8x8xbf16>, vector<2x8x8xf32> -> vector<2x8x8xf32>
    "tpu.trace_stop"() : () -> ()
    %210 = vector.extract_strided_slice %187 {offsets = [0, 8], sizes = [16, 8], strides = [1, 1]} : vector<32x96xf32> to vector<16x8xf32>
    %211 = vector.shape_cast %210 : vector<16x8xf32> to vector<2x8x8xf32>
    %212 = vector.extract_strided_slice %187 {offsets = [0, 40], sizes = [16, 8], strides = [1, 1]} : vector<32x96xf32> to vector<16x8xf32>
    %213 = vector.shape_cast %212 : vector<16x8xf32> to vector<2x8x8xf32>
    %214 = vector.extract_strided_slice %187 {offsets = [16, 72], sizes = [16, 8], strides = [1, 1]} : vector<32x96xf32> to vector<16x8xf32>
    %215 = vector.shape_cast %214 : vector<16x8xf32> to vector<2x8x8xf32>
    %216 = arith.truncf %211 : vector<2x8x8xf32> to vector<2x8x8xbf16>
    %217 = arith.truncf %213 : vector<2x8x8xf32> to vector<2x8x8xbf16>
    "tpu.trace_start"() <{level = 10 : i32, message = "bqd,bkd->bqk"}> : () -> ()
    %cst_79 = arith.constant dense<0.000000e+00> : vector<2x8x8xf32>
    %218 = tpu.matmul %216, %217, %cst_79 {dimension_numbers = #tpu.dot_dimension_numbers<[2], [2], [1], [1], [0, 0, 0, 1, 1, 1], [0], [0]>} : vector<2x8x8xbf16>, vector<2x8x8xbf16>, vector<2x8x8xf32> -> vector<2x8x8xf32>
    "tpu.trace_stop"() : () -> ()
    %cst_80 = arith.constant dense<0xFF800000> : vector<2x8xf32>
    %219 = vector.multi_reduction <maximumf>, %218, %cst_80 [2] : vector<2x8x8xf32> to vector<2x8xf32>
    %220 = vector.shape_cast %219 : vector<2x8xf32> to vector<2x8x1xf32>
    %221 = vector.broadcast %220 : vector<2x8x1xf32> to vector<2x8x8xf32>
    %222 = arith.subf %218, %221 : vector<2x8x8xf32>
    %223 = math.exp %222 : vector<2x8x8xf32>
    %cst_81 = arith.constant dense<0.000000e+00> : vector<2x8xf32>
    %224 = vector.multi_reduction <add>, %223, %cst_81 [2] : vector<2x8x8xf32> to vector<2x8xf32>
    %225 = vector.shape_cast %224 : vector<2x8xf32> to vector<2x8x1xf32>
    %226 = tpu.reciprocal %225 {approx = true} : vector<2x8x1xf32> -> vector<2x8x1xf32>
    %227 = vector.broadcast %226 : vector<2x8x1xf32> to vector<2x8x8xf32>
    %228 = arith.mulf %223, %227 : vector<2x8x8xf32>
    %229 = arith.truncf %228 : vector<2x8x8xf32> to vector<2x8x8xbf16>
    %230 = arith.truncf %215 : vector<2x8x8xf32> to vector<2x8x8xbf16>
    "tpu.trace_start"() <{level = 10 : i32, message = "bqk,bkd->bqd"}> : () -> ()
    %cst_82 = arith.constant dense<0.000000e+00> : vector<2x8x8xf32>
    %231 = tpu.matmul %229, %230, %cst_82 {dimension_numbers = #tpu.dot_dimension_numbers<[2], [1], [1], [2], [0, 0, 0, 1, 1, 2], [0], [0]>} : vector<2x8x8xbf16>, vector<2x8x8xbf16>, vector<2x8x8xf32> -> vector<2x8x8xf32>
    "tpu.trace_stop"() : () -> ()
    %232 = vector.extract_strided_slice %187 {offsets = [0, 16], sizes = [16, 8], strides = [1, 1]} : vector<32x96xf32> to vector<16x8xf32>
    %233 = vector.shape_cast %232 : vector<16x8xf32> to vector<2x8x8xf32>
    %234 = vector.extract_strided_slice %187 {offsets = [0, 48], sizes = [16, 8], strides = [1, 1]} : vector<32x96xf32> to vector<16x8xf32>
    %235 = vector.shape_cast %234 : vector<16x8xf32> to vector<2x8x8xf32>
    %236 = vector.extract_strided_slice %187 {offsets = [16, 80], sizes = [16, 8], strides = [1, 1]} : vector<32x96xf32> to vector<16x8xf32>
    %237 = vector.shape_cast %236 : vector<16x8xf32> to vector<2x8x8xf32>
    %238 = arith.truncf %233 : vector<2x8x8xf32> to vector<2x8x8xbf16>
    %239 = arith.truncf %235 : vector<2x8x8xf32> to vector<2x8x8xbf16>
    "tpu.trace_start"() <{level = 10 : i32, message = "bqd,bkd->bqk"}> : () -> ()
    %cst_83 = arith.constant dense<0.000000e+00> : vector<2x8x8xf32>
    %240 = tpu.matmul %238, %239, %cst_83 {dimension_numbers = #tpu.dot_dimension_numbers<[2], [2], [1], [1], [0, 0, 0, 1, 1, 1], [0], [0]>} : vector<2x8x8xbf16>, vector<2x8x8xbf16>, vector<2x8x8xf32> -> vector<2x8x8xf32>
    "tpu.trace_stop"() : () -> ()
    %cst_84 = arith.constant dense<0xFF800000> : vector<2x8xf32>
    %241 = vector.multi_reduction <maximumf>, %240, %cst_84 [2] : vector<2x8x8xf32> to vector<2x8xf32>
    %242 = vector.shape_cast %241 : vector<2x8xf32> to vector<2x8x1xf32>
    %243 = vector.broadcast %242 : vector<2x8x1xf32> to vector<2x8x8xf32>
    %244 = arith.subf %240, %243 : vector<2x8x8xf32>
    %245 = math.exp %244 : vector<2x8x8xf32>
    %cst_85 = arith.constant dense<0.000000e+00> : vector<2x8xf32>
    %246 = vector.multi_reduction <add>, %245, %cst_85 [2] : vector<2x8x8xf32> to vector<2x8xf32>
    %247 = vector.shape_cast %246 : vector<2x8xf32> to vector<2x8x1xf32>
    %248 = tpu.reciprocal %247 {approx = true} : vector<2x8x1xf32> -> vector<2x8x1xf32>
    %249 = vector.broadcast %248 : vector<2x8x1xf32> to vector<2x8x8xf32>
    %250 = arith.mulf %245, %249 : vector<2x8x8xf32>
    %251 = arith.truncf %250 : vector<2x8x8xf32> to vector<2x8x8xbf16>
    %252 = arith.truncf %237 : vector<2x8x8xf32> to vector<2x8x8xbf16>
    "tpu.trace_start"() <{level = 10 : i32, message = "bqk,bkd->bqd"}> : () -> ()
    %cst_86 = arith.constant dense<0.000000e+00> : vector<2x8x8xf32>
    %253 = tpu.matmul %251, %252, %cst_86 {dimension_numbers = #tpu.dot_dimension_numbers<[2], [1], [1], [2], [0, 0, 0, 1, 1, 2], [0], [0]>} : vector<2x8x8xbf16>, vector<2x8x8xbf16>, vector<2x8x8xf32> -> vector<2x8x8xf32>
    "tpu.trace_stop"() : () -> ()
    %254 = vector.extract_strided_slice %187 {offsets = [0, 24], sizes = [16, 8], strides = [1, 1]} : vector<32x96xf32> to vector<16x8xf32>
    %255 = vector.shape_cast %254 : vector<16x8xf32> to vector<2x8x8xf32>
    %256 = vector.extract_strided_slice %187 {offsets = [0, 56], sizes = [16, 8], strides = [1, 1]} : vector<32x96xf32> to vector<16x8xf32>
    %257 = vector.shape_cast %256 : vector<16x8xf32> to vector<2x8x8xf32>
    %258 = vector.extract_strided_slice %187 {offsets = [16, 88], sizes = [16, 8], strides = [1, 1]} : vector<32x96xf32> to vector<16x8xf32>
    %259 = vector.shape_cast %258 : vector<16x8xf32> to vector<2x8x8xf32>
    %260 = arith.truncf %255 : vector<2x8x8xf32> to vector<2x8x8xbf16>
    %261 = arith.truncf %257 : vector<2x8x8xf32> to vector<2x8x8xbf16>
    "tpu.trace_start"() <{level = 10 : i32, message = "bqd,bkd->bqk"}> : () -> ()
    %cst_87 = arith.constant dense<0.000000e+00> : vector<2x8x8xf32>
    %262 = tpu.matmul %260, %261, %cst_87 {dimension_numbers = #tpu.dot_dimension_numbers<[2], [2], [1], [1], [0, 0, 0, 1, 1, 1], [0], [0]>} : vector<2x8x8xbf16>, vector<2x8x8xbf16>, vector<2x8x8xf32> -> vector<2x8x8xf32>
    "tpu.trace_stop"() : () -> ()
    %cst_88 = arith.constant dense<0xFF800000> : vector<2x8xf32>
    %263 = vector.multi_reduction <maximumf>, %262, %cst_88 [2] : vector<2x8x8xf32> to vector<2x8xf32>
    %264 = vector.shape_cast %263 : vector<2x8xf32> to vector<2x8x1xf32>
    %265 = vector.broadcast %264 : vector<2x8x1xf32> to vector<2x8x8xf32>
    %266 = arith.subf %262, %265 : vector<2x8x8xf32>
    %267 = math.exp %266 : vector<2x8x8xf32>
    %cst_89 = arith.constant dense<0.000000e+00> : vector<2x8xf32>
    %268 = vector.multi_reduction <add>, %267, %cst_89 [2] : vector<2x8x8xf32> to vector<2x8xf32>
    %269 = vector.shape_cast %268 : vector<2x8xf32> to vector<2x8x1xf32>
    %270 = tpu.reciprocal %269 {approx = true} : vector<2x8x1xf32> -> vector<2x8x1xf32>
    %271 = vector.broadcast %270 : vector<2x8x1xf32> to vector<2x8x8xf32>
    %272 = arith.mulf %267, %271 : vector<2x8x8xf32>
    %273 = arith.truncf %272 : vector<2x8x8xf32> to vector<2x8x8xbf16>
    %274 = arith.truncf %259 : vector<2x8x8xf32> to vector<2x8x8xbf16>
    "tpu.trace_start"() <{level = 10 : i32, message = "bqk,bkd->bqd"}> : () -> ()
    %cst_90 = arith.constant dense<0.000000e+00> : vector<2x8x8xf32>
    %275 = tpu.matmul %273, %274, %cst_90 {dimension_numbers = #tpu.dot_dimension_numbers<[2], [1], [1], [2], [0, 0, 0, 1, 1, 2], [0], [0]>} : vector<2x8x8xbf16>, vector<2x8x8xbf16>, vector<2x8x8xf32> -> vector<2x8x8xf32>
    "tpu.trace_stop"() : () -> ()
    %276 = tpu.concatenate %209, %231, %253, %275 in 2 : vector<2x8x8xf32>, vector<2x8x8xf32>, vector<2x8x8xf32>, vector<2x8x8xf32> -> vector<2x8x32xf32>
    %277 = vector.shape_cast %276 : vector<2x8x32xf32> to vector<16x32xf32>
    %278 = arith.truncf %277 : vector<16x32xf32> to vector<16x32xbf16>
    %c1_91 = arith.constant 1 : index
    %c0_92 = arith.constant 0 : index
    %c0_93 = arith.constant 0 : index
    %279 = vector.load %arg5[%c1_91, %c0_92, %c0_93] : memref<2x32x32xbf16, #tpu.memory_space<vmem>>, vector<1x32x32xbf16>
    %280 = vector.shape_cast %279 : vector<1x32x32xbf16> to vector<32x32xbf16>
    %cst_94 = arith.constant dense<0.000000e+00> : vector<16x32xf32>
    %281 = tpu.matmul %278, %280, %cst_94 {dimension_numbers = #tpu.dot_dimension_numbers<[1], [0], [0], [1], [0, 0, 1, 1], [], []>} : vector<16x32xbf16>, vector<32x32xbf16>, vector<16x32xf32> -> vector<16x32xf32>
    %c1_95 = arith.constant 1 : index
    %c0_96 = arith.constant 0 : index
    %c0_97 = arith.constant 0 : index
    %282 = vector.load %arg6[%c1_95, %c0_96, %c0_97] : memref<2x1x32xf32, #tpu.memory_space<vmem>>, vector<1x1x32xf32>
    %283 = vector.shape_cast %282 : vector<1x1x32xf32> to vector<1x32xf32>
    %284 = vector.broadcast %283 : vector<1x32xf32> to vector<16x32xf32>
    %285 = arith.addf %281, %284 : vector<16x32xf32>
    %286 = arith.addf %177, %285 : vector<16x32xf32>
    %c1_98 = arith.constant 1 : index
    %c0_99 = arith.constant 0 : index
    %c0_100 = arith.constant 0 : index
    %287 = vector.load %arg11[%c1_98, %c0_99, %c0_100] : memref<2x1x32xf32, #tpu.memory_space<vmem>>, vector<1x1x32xf32>
    %288 = vector.shape_cast %287 : vector<1x1x32xf32> to vector<1x32xf32>
    %c1_101 = arith.constant 1 : index
    %c0_102 = arith.constant 0 : index
    %c0_103 = arith.constant 0 : index
    %289 = vector.load %arg12[%c1_101, %c0_102, %c0_103] : memref<2x1x32xf32, #tpu.memory_space<vmem>>, vector<1x1x32xf32>
    %290 = vector.shape_cast %289 : vector<1x1x32xf32> to vector<1x32xf32>
    %cst_104 = arith.constant dense<0.000000e+00> : vector<16xf32>
    %291 = vector.multi_reduction <add>, %286, %cst_104 [1] : vector<16x32xf32> to vector<16xf32>
    %292 = vector.shape_cast %291 : vector<16xf32> to vector<16x1xf32>
    %cst_105 = arith.constant 3.200000e+01 : f32
    %293 = vector.broadcast %cst_105 : f32 to vector<16x1xf32>
    %294 = arith.divf %292, %293 : vector<16x1xf32>
    %295 = vector.broadcast %294 : vector<16x1xf32> to vector<16x32xf32>
    %296 = arith.subf %286, %295 : vector<16x32xf32>
    %297 = arith.mulf %296, %296 : vector<16x32xf32>
    %cst_106 = arith.constant dense<0.000000e+00> : vector<16xf32>
    %298 = vector.multi_reduction <add>, %297, %cst_106 [1] : vector<16x32xf32> to vector<16xf32>
    %299 = vector.shape_cast %298 : vector<16xf32> to vector<16x1xf32>
    %cst_107 = arith.constant 3.200000e+01 : f32
    %300 = vector.broadcast %cst_107 : f32 to vector<16x1xf32>
    %301 = arith.divf %299, %300 : vector<16x1xf32>
    %cst_108 = arith.constant 9.99999974E-6 : f32
    %302 = vector.broadcast %cst_108 : f32 to vector<16x1xf32>
    %303 = arith.addf %301, %302 : vector<16x1xf32>
    %304 = math.rsqrt %303 : vector<16x1xf32>
    %305 = vector.broadcast %304 : vector<16x1xf32> to vector<16x32xf32>
    %306 = arith.mulf %296, %305 : vector<16x32xf32>
    %307 = vector.broadcast %288 : vector<1x32xf32> to vector<16x32xf32>
    %308 = arith.mulf %306, %307 : vector<16x32xf32>
    %309 = vector.broadcast %290 : vector<1x32xf32> to vector<16x32xf32>
    %310 = arith.addf %308, %309 : vector<16x32xf32>
    %311 = arith.truncf %310 : vector<16x32xf32> to vector<16x32xbf16>
    %c1_109 = arith.constant 1 : index
    %c0_110 = arith.constant 0 : index
    %c0_111 = arith.constant 0 : index
    %312 = vector.load %arg7[%c1_109, %c0_110, %c0_111] : memref<2x32x64xbf16, #tpu.memory_space<vmem>>, vector<1x32x64xbf16>
    %313 = vector.shape_cast %312 : vector<1x32x64xbf16> to vector<32x64xbf16>
    %cst_112 = arith.constant dense<0.000000e+00> : vector<16x64xf32>
    %314 = tpu.matmul %311, %313, %cst_112 {dimension_numbers = #tpu.dot_dimension_numbers<[1], [0], [0], [1], [0, 0, 1, 1], [], []>} : vector<16x32xbf16>, vector<32x64xbf16>, vector<16x64xf32> -> vector<16x64xf32>
    %c1_113 = arith.constant 1 : index
    %c0_114 = arith.constant 0 : index
    %c0_115 = arith.constant 0 : index
    %315 = vector.load %arg8[%c1_113, %c0_114, %c0_115] : memref<2x1x64xf32, #tpu.memory_space<vmem>>, vector<1x1x64xf32>
    %316 = vector.shape_cast %315 : vector<1x1x64xf32> to vector<1x64xf32>
    %317 = vector.broadcast %316 : vector<1x64xf32> to vector<16x64xf32>
    %318 = arith.addf %314, %317 : vector<16x64xf32>
    %cst_116 = arith.constant 0.000000e+00 : f32
    %319 = vector.broadcast %cst_116 : f32 to vector<16x64xf32>
    %320 = arith.maximumf %318, %319 : vector<16x64xf32>
    %321 = arith.truncf %320 : vector<16x64xf32> to vector<16x64xbf16>
    %c1_117 = arith.constant 1 : index
    %c0_118 = arith.constant 0 : index
    %c0_119 = arith.constant 0 : index
    %322 = vector.load %arg9[%c1_117, %c0_118, %c0_119] : memref<2x64x32xbf16, #tpu.memory_space<vmem>>, vector<1x64x32xbf16>
    %323 = vector.shape_cast %322 : vector<1x64x32xbf16> to vector<64x32xbf16>
    %cst_120 = arith.constant dense<0.000000e+00> : vector<16x32xf32>
    %324 = tpu.matmul %321, %323, %cst_120 {dimension_numbers = #tpu.dot_dimension_numbers<[1], [0], [0], [1], [0, 0, 1, 1], [], []>} : vector<16x64xbf16>, vector<64x32xbf16>, vector<16x32xf32> -> vector<16x32xf32>
    %c1_121 = arith.constant 1 : index
    %c0_122 = arith.constant 0 : index
    %c0_123 = arith.constant 0 : index
    %325 = vector.load %arg10[%c1_121, %c0_122, %c0_123] : memref<2x1x32xf32, #tpu.memory_space<vmem>>, vector<1x1x32xf32>
    %326 = vector.shape_cast %325 : vector<1x1x32xf32> to vector<1x32xf32>
    %327 = vector.broadcast %326 : vector<1x32xf32> to vector<16x32xf32>
    %328 = arith.addf %324, %327 : vector<16x32xf32>
    %329 = arith.addf %310, %328 : vector<16x32xf32>
    %c1_124 = arith.constant 1 : index
    %c0_125 = arith.constant 0 : index
    %c0_126 = arith.constant 0 : index
    %330 = vector.load %arg13[%c1_124, %c0_125, %c0_126] : memref<2x1x32xf32, #tpu.memory_space<vmem>>, vector<1x1x32xf32>
    %331 = vector.shape_cast %330 : vector<1x1x32xf32> to vector<1x32xf32>
    %c1_127 = arith.constant 1 : index
    %c0_128 = arith.constant 0 : index
    %c0_129 = arith.constant 0 : index
    %332 = vector.load %arg14[%c1_127, %c0_128, %c0_129] : memref<2x1x32xf32, #tpu.memory_space<vmem>>, vector<1x1x32xf32>
    %333 = vector.shape_cast %332 : vector<1x1x32xf32> to vector<1x32xf32>
    %cst_130 = arith.constant dense<0.000000e+00> : vector<16xf32>
    %334 = vector.multi_reduction <add>, %329, %cst_130 [1] : vector<16x32xf32> to vector<16xf32>
    %335 = vector.shape_cast %334 : vector<16xf32> to vector<16x1xf32>
    %cst_131 = arith.constant 3.200000e+01 : f32
    %336 = vector.broadcast %cst_131 : f32 to vector<16x1xf32>
    %337 = arith.divf %335, %336 : vector<16x1xf32>
    %338 = vector.broadcast %337 : vector<16x1xf32> to vector<16x32xf32>
    %339 = arith.subf %329, %338 : vector<16x32xf32>
    %340 = arith.mulf %339, %339 : vector<16x32xf32>
    %cst_132 = arith.constant dense<0.000000e+00> : vector<16xf32>
    %341 = vector.multi_reduction <add>, %340, %cst_132 [1] : vector<16x32xf32> to vector<16xf32>
    %342 = vector.shape_cast %341 : vector<16xf32> to vector<16x1xf32>
    %cst_133 = arith.constant 3.200000e+01 : f32
    %343 = vector.broadcast %cst_133 : f32 to vector<16x1xf32>
    %344 = arith.divf %342, %343 : vector<16x1xf32>
    %cst_134 = arith.constant 9.99999974E-6 : f32
    %345 = vector.broadcast %cst_134 : f32 to vector<16x1xf32>
    %346 = arith.addf %344, %345 : vector<16x1xf32>
    %347 = math.rsqrt %346 : vector<16x1xf32>
    %348 = vector.broadcast %347 : vector<16x1xf32> to vector<16x32xf32>
    %349 = arith.mulf %339, %348 : vector<16x32xf32>
    %350 = vector.broadcast %331 : vector<1x32xf32> to vector<16x32xf32>
    %351 = arith.mulf %349, %350 : vector<16x32xf32>
    %352 = vector.broadcast %333 : vector<1x32xf32> to vector<16x32xf32>
    %353 = arith.addf %351, %352 : vector<16x32xf32>
    %c0_135 = arith.constant 0 : index
    %c0_136 = arith.constant 0 : index
    %354 = vector.load %arg15[%c0_135, %c0_136] : memref<1x32xf32, #tpu.memory_space<vmem>>, vector<1x32xf32>
    %c0_137 = arith.constant 0 : index
    %c0_138 = arith.constant 0 : index
    %355 = vector.load %arg16[%c0_137, %c0_138] : memref<1x32xf32, #tpu.memory_space<vmem>>, vector<1x32xf32>
    %cst_139 = arith.constant dense<0.000000e+00> : vector<16xf32>
    %356 = vector.multi_reduction <add>, %353, %cst_139 [1] : vector<16x32xf32> to vector<16xf32>
    %357 = vector.shape_cast %356 : vector<16xf32> to vector<16x1xf32>
    %cst_140 = arith.constant 3.200000e+01 : f32
    %358 = vector.broadcast %cst_140 : f32 to vector<16x1xf32>
    %359 = arith.divf %357, %358 : vector<16x1xf32>
    %360 = vector.broadcast %359 : vector<16x1xf32> to vector<16x32xf32>
    %361 = arith.subf %353, %360 : vector<16x32xf32>
    %362 = arith.mulf %361, %361 : vector<16x32xf32>
    %cst_141 = arith.constant dense<0.000000e+00> : vector<16xf32>
    %363 = vector.multi_reduction <add>, %362, %cst_141 [1] : vector<16x32xf32> to vector<16xf32>
    %364 = vector.shape_cast %363 : vector<16xf32> to vector<16x1xf32>
    %cst_142 = arith.constant 3.200000e+01 : f32
    %365 = vector.broadcast %cst_142 : f32 to vector<16x1xf32>
    %366 = arith.divf %364, %365 : vector<16x1xf32>
    %cst_143 = arith.constant 9.99999974E-6 : f32
    %367 = vector.broadcast %cst_143 : f32 to vector<16x1xf32>
    %368 = arith.addf %366, %367 : vector<16x1xf32>
    %369 = math.rsqrt %368 : vector<16x1xf32>
    %370 = vector.broadcast %369 : vector<16x1xf32> to vector<16x32xf32>
    %371 = arith.mulf %361, %370 : vector<16x32xf32>
    %372 = vector.broadcast %354 : vector<1x32xf32> to vector<16x32xf32>
    %373 = arith.mulf %371, %372 : vector<16x32xf32>
    %374 = vector.broadcast %355 : vector<1x32xf32> to vector<16x32xf32>
    %375 = arith.addf %373, %374 : vector<16x32xf32>
    %c0_144 = arith.constant 0 : index
    %c0_145 = arith.constant 0 : index
    %376 = vector.load %arg17[%c0_144, %c0_145] : memref<16x32xf32, #tpu.memory_space<vmem>>, vector<16x32xf32>
    tpu.vector_store %arg17[%c0_144, %c0_145], %375 {strides = array<i32>} : memref<16x32xf32, #tpu.memory_space<vmem>>, vector<16x32xf32>,
    return
  }
  func.func @transform_0(%arg0: i32) -> (i32, i32) {
    %c0_i32 = arith.constant 0 : i32
    %c0_i32_0 = arith.constant 0 : i32
    %c0_i32_1 = arith.constant 0 : i32
    return %c0_i32, %c0_i32_0 : i32, i32
  }
  func.func @transform_1(%arg0: i32) -> (i32, i32) {
    %c0_i32 = arith.constant 0 : i32
    %c0_i32_0 = arith.constant 0 : i32
    %c0_i32_1 = arith.constant 0 : i32
    return %c0_i32, %c0_i32_0 : i32, i32
  }
  func.func @transform_2(%arg0: i32) -> (i32, i32, i32) {
    %c0_i32 = arith.constant 0 : i32
    %c0_i32_0 = arith.constant 0 : i32
    %c0_i32_1 = arith.constant 0 : i32
    %c0_i32_2 = arith.constant 0 : i32
    return %c0_i32, %c0_i32_0, %c0_i32_1 : i32, i32, i32
  }
  func.func @transform_3(%arg0: i32) -> (i32, i32, i32) {
    %c0_i32 = arith.constant 0 : i32
    %c0_i32_0 = arith.constant 0 : i32
    %c0_i32_1 = arith.constant 0 : i32
    %c0_i32_2 = arith.constant 0 : i32
    return %c0_i32, %c0_i32_0, %c0_i32_1 : i32, i32, i32
  }
  func.func @transform_4(%arg0: i32) -> (i32, i32, i32) {
    %c0_i32 = arith.constant 0 : i32
    %c0_i32_0 = arith.constant 0 : i32
    %c0_i32_1 = arith.constant 0 : i32
    %c0_i32_2 = arith.constant 0 : i32
    return %c0_i32, %c0_i32_0, %c0_i32_1 : i32, i32, i32
  }
  func.func @transform_5(%arg0: i32) -> (i32, i32, i32) {
    %c0_i32 = arith.constant 0 : i32
    %c0_i32_0 = arith.constant 0 : i32
    %c0_i32_1 = arith.constant 0 : i32
    %c0_i32_2 = arith.constant 0 : i32
    return %c0_i32, %c0_i32_0, %c0_i32_1 : i32, i32, i32
  }
  func.func @transform_6(%arg0: i32) -> (i32, i32, i32) {
    %c0_i32 = arith.constant 0 : i32
    %c0_i32_0 = arith.constant 0 : i32
    %c0_i32_1 = arith.constant 0 : i32
    %c0_i32_2 = arith.constant 0 : i32
    return %c0_i32, %c0_i32_0, %c0_i32_1 : i32, i32, i32
  }
  func.func @transform_7(%arg0: i32) -> (i32, i32, i32) {
    %c0_i32 = arith.constant 0 : i32
    %c0_i32_0 = arith.constant 0 : i32
    %c0_i32_1 = arith.constant 0 : i32
    %c0_i32_2 = arith.constant 0 : i32
    return %c0_i32, %c0_i32_0, %c0_i32_1 : i32, i32, i32
  }
  func.func @transform_8(%arg0: i32) -> (i32, i32, i32) {
    %c0_i32 = arith.constant 0 : i32
    %c0_i32_0 = arith.constant 0 : i32
    %c0_i32_1 = arith.constant 0 : i32
    %c0_i32_2 = arith.constant 0 : i32
    return %c0_i32, %c0_i32_0, %c0_i32_1 : i32, i32, i32
  }
  func.func @transform_9(%arg0: i32) -> (i32, i32, i32) {
    %c0_i32 = arith.constant 0 : i32
    %c0_i32_0 = arith.constant 0 : i32
    %c0_i32_1 = arith.constant 0 : i32
    %c0_i32_2 = arith.constant 0 : i32
    return %c0_i32, %c0_i32_0, %c0_i32_1 : i32, i32, i32
  }
  func.func @transform_10(%arg0: i32) -> (i32, i32, i32) {
    %c0_i32 = arith.constant 0 : i32
    %c0_i32_0 = arith.constant 0 : i32
    %c0_i32_1 = arith.constant 0 : i32
    %c0_i32_2 = arith.constant 0 : i32
    return %c0_i32, %c0_i32_0, %c0_i32_1 : i32, i32, i32
  }
  func.func @transform_11(%arg0: i32) -> (i32, i32, i32) {
    %c0_i32 = arith.constant 0 : i32
    %c0_i32_0 = arith.constant 0 : i32
    %c0_i32_1 = arith.constant 0 : i32
    %c0_i32_2 = arith.constant 0 : i32
    return %c0_i32, %c0_i32_0, %c0_i32_1 : i32, i32, i32
  }
  func.func @transform_12(%arg0: i32) -> (i32, i32, i32) {
    %c0_i32 = arith.constant 0 : i32
    %c0_i32_0 = arith.constant 0 : i32
    %c0_i32_1 = arith.constant 0 : i32
    %c0_i32_2 = arith.constant 0 : i32
    return %c0_i32, %c0_i32_0, %c0_i32_1 : i32, i32, i32
  }
  func.func @transform_13(%arg0: i32) -> (i32, i32, i32) {
    %c0_i32 = arith.constant 0 : i32
    %c0_i32_0 = arith.constant 0 : i32
    %c0_i32_1 = arith.constant 0 : i32
    %c0_i32_2 = arith.constant 0 : i32
    return %c0_i32, %c0_i32_0, %c0_i32_1 : i32, i32, i32
  }
  func.func @transform_14(%arg0: i32) -> (i32, i32) {
    %c0_i32 = arith.constant 0 : i32
    %c0_i32_0 = arith.constant 0 : i32
    %c0_i32_1 = arith.constant 0 : i32
    return %c0_i32, %c0_i32_0 : i32, i32
  }
  func.func @transform_15(%arg0: i32) -> (i32, i32) {
    %c0_i32 = arith.constant 0 : i32
    %c0_i32_0 = arith.constant 0 : i32
    %c0_i32_1 = arith.constant 0 : i32
    return %c0_i32, %c0_i32_0 : i32, i32
  }
  func.func @transform_16(%arg0: i32) -> (i32, i32) {
    %c0_i32 = arith.constant 0 : i32
    %c0_i32_0 = arith.constant 0 : i32
    %c0_i32_1 = arith.constant 0 : i32
    return %c0_i32, %c0_i32_0 : i32, i32
  }
}

</mosaic_0001>

<llo_original>
// kernel: tpu_custom_call.1
$region0: #{tpu_custom_call.1}
  #allocation0 [shape = 'u32[]', space=smem, size = 0x4, offset = 0x4, fixed_abs, tag = 'smem constant byte address 0x4 - core index']
  #allocation1 [shape = 'u32[144,128]{1,0:T(1,128)}', space=vmem, size = 0x12000, scoped, tag = 'internal scratch']
  %s0 = inlined_call_operand.hbm [shape: f32[16,32], index: 0, kind: input, shape index: {}]
  %s1 = inlined_call_operand.hbm [shape: f32[16,32], index: 1, kind: input, shape index: {}]
  %s2 = inlined_call_operand.vmem [shape: bf16[2,32,96], index: 2, kind: input, shape index: {}]
  %s3 = inlined_call_operand.vmem [shape: f32[2,1,96], index: 3, kind: input, shape index: {}]
  %s4 = inlined_call_operand.vmem [shape: bf16[2,32,32], index: 4, kind: input, shape index: {}]
  %s5 = inlined_call_operand.vmem [shape: f32[2,1,32], index: 5, kind: input, shape index: {}]
  %s6 = inlined_call_operand.vmem [shape: bf16[2,32,64], index: 6, kind: input, shape index: {}]
  %s7 = inlined_call_operand.vmem [shape: f32[2,1,64], index: 7, kind: input, shape index: {}]
  %s8 = inlined_call_operand.vmem [shape: bf16[2,64,32], index: 8, kind: input, shape index: {}]
  %s9 = inlined_call_operand.vmem [shape: f32[2,1,32], index: 9, kind: input, shape index: {}]
  %s10 = inlined_call_operand.vmem [shape: f32[2,1,32], index: 10, kind: input, shape index: {}]
  %s11 = inlined_call_operand.vmem [shape: f32[2,1,32], index: 11, kind: input, shape index: {}]
  %s12 = inlined_call_operand.vmem [shape: f32[2,1,32], index: 12, kind: input, shape index: {}]
  %s13 = inlined_call_operand.vmem [shape: f32[2,1,32], index: 13, kind: input, shape index: {}]
  %s14 = inlined_call_operand.vmem [shape: f32[1,32], index: 14, kind: input, shape index: {}]
  %s15 = inlined_call_operand.vmem [shape: f32[1,32], index: 15, kind: input, shape index: {}]
  %s16 = inlined_call_operand.hbm [shape: f32[16,32], index: 16, kind: output, shape index: {}]
  %s17 = sld [smem:[#allocation0]]
  $region82: #{tpu_custom_call.1} parent=0
    _
  %s19 = ssub.s32 1, %s17
  %s20 = scalar_select 0, %s19, %s17
  $region1: #{tpu_custom_call.1} parent=0
    #allocation2 [shape = 'u8[8192]{0}', space=vmem, size = 0x2000, scoped, tag = 'input window, operand 0, single buffered']
    #allocation3 [shape = 's32[1]{0}', space=sflag, size = 0x4, scoped, tag = 'scoped memory for tpu_custom_call.1']
    #allocation4 [shape = 's32[1]{0}', space=sflag, size = 0x4, scoped, tag = 'scoped memory for tpu_custom_call.1']
    #allocation5 [shape = 'u8[8192]{0}', space=vmem, size = 0x2000, scoped, tag = 'input window, operand 1, single buffered']
    #allocation6 [shape = 's32[1]{0}', space=sflag, size = 0x4, scoped, tag = 'scoped memory for tpu_custom_call.1']
    #allocation7 [shape = 'u8[8192]{0}', space=vmem, size = 0x2000, scoped, tag = 'output window, operand 0, single buffered']
    %21 = vsyncpa [#allocation3], 0
    %22 = vsyncpa [#allocation6], 0
    %23 = vsyncpa [#allocation4], 0
    // Predicated region
    $region2: #{tpu_custom_call.1} parent=1 // pred_check
      _
    $region3: #{tpu_custom_call.1} parent=1 // pred_check_branch
      %25 = sbr.rel (0) target = $region5
    $region4: #{tpu_custom_call.1} parent=1 // pred_region
      %s27 = ssub.s32 256, 256
      %28 = vsyncadd [#allocation3], %s27
      %s29 = sshll.u32 [#allocation2], 4
      %s30 = int_to_ptr.vmem [resolvable:$true] %s29
      %35 = dma.hbm_to_vmem [thread:$0]  %s0, 256, %s30, [#allocation3], 128, 128, 8
    $region5: #{tpu_custom_call.1} parent=1 // pred_fallthru
      _
    // Predicated region
    $region6: #{tpu_custom_call.1} parent=1 // pred_check
      _
    $region7: #{tpu_custom_call.1} parent=1 // pred_check_branch
      %37 = sbr.rel (0) target = $region9
    $region8: #{tpu_custom_call.1} parent=1 // pred_region
      %s39 = ssub.s32 256, 256
      %40 = vsyncadd [#allocation6], %s39
      %s41 = sshll.u32 [#allocation5], 4
      %s42 = int_to_ptr.vmem [resolvable:$true] %s41
      %47 = dma.hbm_to_vmem [thread:$0]  %s1, 256, %s42, [#allocation6], 128, 128, 8
    $region9: #{tpu_custom_call.1} parent=1 // pred_fallthru
      _
    // Predicated region
    $region10: #{tpu_custom_call.1} parent=1 // pred_check
      _
    $region11: #{tpu_custom_call.1} parent=1 // pred_check_branch
      %49 = sbr.rel (0) target = $region13
    $region12: #{tpu_custom_call.1} parent=1 // pred_region
      _
    $region13: #{tpu_custom_call.1} parent=1 // pred_fallthru
      _
    // Predicated region
    $region14: #{tpu_custom_call.1} parent=1 // pred_check
      _
    $region15: #{tpu_custom_call.1} parent=1 // pred_check_branch
      %51 = sbr.rel (0) target = $region17
    $region16: #{tpu_custom_call.1} parent=1 // pred_region
      _
    $region17: #{tpu_custom_call.1} parent=1 // pred_fallthru
      _
    // Predicated region
    $region18: #{tpu_custom_call.1} parent=1 // pred_check
      _
    $region19: #{tpu_custom_call.1} parent=1 // pred_check_branch
      %53 = sbr.rel (0) target = $region21
    $region20: #{tpu_custom_call.1} parent=1 // pred_region
      _
    $region21: #{tpu_custom_call.1} parent=1 // pred_fallthru
      _
    // Predicated region
    $region22: #{tpu_custom_call.1} parent=1 // pred_check
      _
    $region23: #{tpu_custom_call.1} parent=1 // pred_check_branch
      %55 = sbr.rel (0) target = $region25
    $region24: #{tpu_custom_call.1} parent=1 // pred_region
      _
    $region25: #{tpu_custom_call.1} parent=1 // pred_fallthru
      _
    // Predicated region
    $region26: #{tpu_custom_call.1} parent=1 // pred_check
      _
    $region27: #{tpu_custom_call.1} parent=1 // pred_check_branch
      %57 = sbr.rel (0) target = $region29
    $region28: #{tpu_custom_call.1} parent=1 // pred_region
      _
    $region29: #{tpu_custom_call.1} parent=1 // pred_fallthru
      _
    // Predicated region
    $region30: #{tpu_custom_call.1} parent=1 // pred_check
      _
    $region31: #{tpu_custom_call.1} parent=1 // pred_check_branch
      %59 = sbr.rel (0) target = $region33
    $region32: #{tpu_custom_call.1} parent=1 // pred_region
      _
    $region33: #{tpu_custom_call.1} parent=1 // pred_fallthru
      _
    // Predicated region
    $region34: #{tpu_custom_call.1} parent=1 // pred_check
      _
    $region35: #{tpu_custom_call.1} parent=1 // pred_check_branch
      %61 = sbr.rel (0) target = $region37
    $region36: #{tpu_custom_call.1} parent=1 // pred_region
      _
    $region37: #{tpu_custom_call.1} parent=1 // pred_fallthru
      _
    // Predicated region
    $region38: #{tpu_custom_call.1} parent=1 // pred_check
      _
    $region39: #{tpu_custom_call.1} parent=1 // pred_check_branch
      %63 = sbr.rel (0) target = $region41
    $region40: #{tpu_custom_call.1} parent=1 // pred_region
      _
    $region41: #{tpu_custom_call.1} parent=1 // pred_fallthru
      _
    // Predicated region
    $region42: #{tpu_custom_call.1} parent=1 // pred_check
      _
    $region43: #{tpu_custom_call.1} parent=1 // pred_check_branch
      %65 = sbr.rel (0) target = $region45
    $region44: #{tpu_custom_call.1} parent=1 // pred_region
      _
    $region45: #{tpu_custom_call.1} parent=1 // pred_fallthru
      _
    // Predicated region
    $region46: #{tpu_custom_call.1} parent=1 // pred_check
      _
    $region47: #{tpu_custom_call.1} parent=1 // pred_check_branch
      %67 = sbr.rel (0) target = $region49
    $region48: #{tpu_custom_call.1} parent=1 // pred_region
      _
    $region49: #{tpu_custom_call.1} parent=1 // pred_fallthru
      _
    // Predicated region
    $region50: #{tpu_custom_call.1} parent=1 // pred_check
      _
    $region51: #{tpu_custom_call.1} parent=1 // pred_check_branch
      %69 = sbr.rel (0) target = $region53
    $region52: #{tpu_custom_call.1} parent=1 // pred_region
      _
    $region53: #{tpu_custom_call.1} parent=1 // pred_fallthru
      _
    // Predicated region
    $region54: #{tpu_custom_call.1} parent=1 // pred_check
      _
    $region55: #{tpu_custom_call.1} parent=1 // pred_check_branch
      %71 = sbr.rel (0) target = $region57
    $region56: #{tpu_custom_call.1} parent=1 // pred_region
      _
    $region57: #{tpu_custom_call.1} parent=1 // pred_fallthru
      _
    // Predicated region
    $region58: #{tpu_custom_call.1} parent=1 // pred_check
      _
    $region59: #{tpu_custom_call.1} parent=1 // pred_check_branch
      %73 = sbr.rel (0) target = $region61
    $region60: #{tpu_custom_call.1} parent=1 // pred_region
      _
    $region61: #{tpu_custom_call.1} parent=1 // pred_fallthru
      _
    // Predicated region
    $region62: #{tpu_custom_call.1} parent=1 // pred_check
      _
    $region63: #{tpu_custom_call.1} parent=1 // pred_check_branch
      %75 = sbr.rel (0) target = $region65
    $region64: #{tpu_custom_call.1} parent=1 // pred_region
      _
    $region65: #{tpu_custom_call.1} parent=1 // pred_fallthru
      _
    // Predicated region
    $region66: #{tpu_custom_call.1} parent=1 // pred_check
      _
    $region67: #{tpu_custom_call.1} parent=1 // pred_check_branch
      %77 = sbr.rel (0) target = $region69
    $region68: #{tpu_custom_call.1} parent=1 // pred_region
      %78 = dma.done [#allocation3], 256
    $region69: #{tpu_custom_call.1} parent=1 // pred_fallthru
      _
    // Predicated region
    $region70: #{tpu_custom_call.1} parent=1 // pred_check
      _
    $region71: #{tpu_custom_call.1} parent=1 // pred_check_branch
      %80 = sbr.rel (0) target = $region73
    $region72: #{tpu_custom_call.1} parent=1 // pred_region
      %81 = dma.done [#allocation6], 256
    $region73: #{tpu_custom_call.1} parent=1 // pred_fallthru
      _
    %v83 = vld [vmem:[#allocation2] sm:$0xff]
    %v84 = vld [vmem:[#allocation2 + $0x8] sm:$0xff]
    %v85 = vld [vmem:[#allocation5] sm:$0xff]
    %v86 = vld [vmem:[#allocation5 + $0x8] sm:$0xff]
    %v87 = vadd.f32 %v83, %v85
    %v88 = vadd.f32 %v84, %v86
    %v89 = vpack.c.bf16 %v88, %v87
    %v90 = vpack.c.bf16 %v84, %v83
    %v91 = vld [vmem:[%s2] sm:$0xf]
    %v92 = vld [vmem:[%s2 + $0x4] sm:$0xf]
    %v93 = vld [vmem:[%s2 + $0x8] sm:$0xf]
    %v94 = vld [vmem:[%s2 + $0xc] sm:$0xf]
    %v95 = vld [vmem:[%s3] sm:$0x1]
    %v97 = vlaneseq
    %v98 = vshrl.u32 %v97, 7
    %v99 = vsub.s32 0, %v98
    %v100 = vrot.slane %v95, %v99
    %v106 = vunpack.c.l.b16 %v91
    %v107 = vunpack.c.l.b16 %v92
    %v108 = vunpack.c.l.b16 %v93
    %v109 = vunpack.c.l.b16 %v94
    %v110 = vpack.c.b16 %v107, %v106
    %v111 = vpack.c.b16 %v109, %v108
    %vm114 = vcmask 261120
    %v116 = vsel %vm114, %v89, 0
    %v119 = vsel %vm114, %v90, 0
    %121 = vmatprep.subr.bf16.mxu0 0
    %122 = vmatpush1.bf16.msra.mxu0 0
    %123 = vmatprep.subr.bf16.mxu0 0
    %124 = vmatpush1.bf16.msra.mxu0 0
    %125 = vmatprep.subr.bf16.mxu0 0
    %126 = vmatpush1.bf16.msra.mxu0 0
    %127 = vmatprep.subr.bf16.mxu0 0
    %128 = vmatpush1.bf16.msra.mxu0 0
    %129 = vmatprep.subr.bf16.mxu0 0
    %130 = vmatpush1.bf16.msra.mxu0 0
    %131 = vmatprep.subr.bf16.mxu0 0
    %132 = vmatpush1.bf16.msra.mxu0 0
    %133 = vmatprep.subr.bf16.mxu0 0
    %134 = vmatpush1.bf16.msra.mxu0 %v111
    %135 = vmatprep.subr.bf16.mxu0 0
    %136 = vmatpush1.bf16.msra.mxu0 %v110
    %137 = vmatprep.subr.bf16.mxu0 0
    %138 = vmatpush2.bf16.msra.mxu0 0
    %139 = vmatprep.subr.bf16.mxu0 0
    %140 = vmatpush2.bf16.msra.mxu0 0
    %141 = vmatprep.subr.bf16.mxu0 0
    %142 = vmatpush2.bf16.msra.mxu0 0
    %143 = vmatprep.subr.bf16.mxu0 0
    %144 = vmatpush2.bf16.msra.mxu0 0
    %145 = vmatprep.subr.bf16.mxu0 0
    %146 = vmatpush2.bf16.msra.mxu0 0
    %147 = vmatprep.subr.bf16.mxu0 0
    %148 = vmatpush2.bf16.msra.mxu0 0
    %149 = vmatprep.subr.bf16.mxu0 0
    %150 = vmatpush2.bf16.msra.mxu0 0
    %151 = vmatprep.subr.bf16.mxu0 0
    %152 = vmatpush2.bf16.msra.mxu0 0
    %153 = vmatprep.mubr.bf16.mxu0 0
    %154 = vmatmul.mubr.bf16.gmra.mxu0 %v116
    %v155 = vpop.f32.mrf.mxu0
    %v156 = vadd.f32 %v100, %v155
    %v157 = vpop.f32.mrf.mxu0
    %v158 = vpop.f32.mrf.mxu0
    %v159 = vadd.f32 %v100, %v158
    %v160 = vpop.f32.mrf.mxu0
    %161 = vmatprep.mubr.bf16.mxu0 0
    %162 = vmatmul.mubr.bf16.gmra.mxu0 %v119
    %v163 = vpop.f32.mrf.mxu0
    %v164 = vadd.f32 %v100, %v163
    %v165 = vpop.f32.mrf.mxu0
    %v166 = vpop.f32.mrf.mxu0
    %v167 = vadd.f32 %v100, %v166
    %v168 = vpop.f32.mrf.mxu0
    %169 = vdwg.mxu0
    %v170 = vpack.c.bf16 %v156, %v156
    %v171 = vpack.c.bf16 %v159, %v159
    %173 = vrot.lane.b32.xlu0 %v170, 96
    %v174 = vpop.permute.xlu0 %173
    %vm175 = vcmask 64512
    %v177 = vsel %vm175, %v170, 0
    %v180 = vsel %vm175, %v174, 0
    %182 = vmatprep.subr.bf16.mxu0 0
    %183 = vmatpush1.bf16.xpose.msra.mxu0 0
    %184 = vmatprep.subr.bf16.mxu0 0
    %185 = vmatpush1.bf16.xpose.msra.mxu0 0
    %186 = vmatprep.subr.bf16.mxu0 0
    %187 = vmatpush1.bf16.xpose.msra.mxu0 0
    %188 = vmatprep.subr.bf16.mxu0 0
    %189 = vmatpush1.bf16.xpose.msra.mxu0 0
    %190 = vmatprep.subr.bf16.mxu0 0
    %191 = vmatpush1.bf16.xpose.msra.mxu0 0
    %192 = vmatprep.subr.bf16.mxu0 0
    %193 = vmatpush1.bf16.xpose.msra.mxu0 0
    %194 = vmatprep.subr.bf16.mxu0 0
    %195 = vmatpush1.bf16.xpose.msra.mxu0 0
    %196 = vmatprep.subr.bf16.mxu0 0
    %197 = vmatpush1.bf16.xpose.msra.mxu0 %v180
    %198 = vmatprep.subr.bf16.mxu0 0
    %199 = vmatpush2.bf16.xpose.msra.mxu0 0
    %200 = vmatprep.subr.bf16.mxu0 0
    %201 = vmatpush2.bf16.xpose.msra.mxu0 0
    %202 = vmatprep.subr.bf16.mxu0 0
    %203 = vmatpush2.bf16.xpose.msra.mxu0 0
    %204 = vmatprep.subr.bf16.mxu0 0
    %205 = vmatpush2.bf16.xpose.msra.mxu0 0
    %206 = vmatprep.subr.bf16.mxu0 0
    %207 = vmatpush2.bf16.xpose.msra.mxu0 0
    %208 = vmatprep.subr.bf16.mxu0 0
    %209 = vmatpush2.bf16.xpose.msra.mxu0 0
    %210 = vmatprep.subr.bf16.mxu0 0
    %211 = vmatpush2.bf16.xpose.msra.mxu0 0
    %212 = vmatprep.subr.bf16.mxu0 0
    %213 = vmatpush2.bf16.xpose.msra.mxu0 0
    %214 = vmatprep.mubr.bf16.mxu0 0
    %215 = vmatmul.mubr.bf16.gmra.mxu0 %v177
    %v216 = vpop.f32.mrf.mxu0
    %v217 = vadd.f32 0.0, %v216
    %v218 = vpop.f32.mrf.mxu0
    %v219 = vpop.f32.mrf.mxu0
    %v220 = vpop.f32.mrf.mxu0
    %221 = vdwg.mxu0
    %223 = vrot.lane.b32.xlu0 %v171, 96
    %v224 = vpop.permute.xlu0 %223
    %v226 = vsel %vm175, %v171, 0
    %v229 = vsel %vm175, %v224, 0
    %231 = vmatprep.subr.bf16.mxu0 0
    %232 = vmatpush1.bf16.xpose.msra.mxu0 0
    %233 = vmatprep.subr.bf16.mxu0 0
    %234 = vmatpush1.bf16.xpose.msra.mxu0 0
    %235 = vmatprep.subr.bf16.mxu0 0
    %236 = vmatpush1.bf16.xpose.msra.mxu0 0
    %237 = vmatprep.subr.bf16.mxu0 0
    %238 = vmatpush1.bf16.xpose.msra.mxu0 0
    %239 = vmatprep.subr.bf16.mxu0 0
    %240 = vmatpush1.bf16.xpose.msra.mxu0 0
    %241 = vmatprep.subr.bf16.mxu0 0
    %242 = vmatpush1.bf16.xpose.msra.mxu0 0
    %243 = vmatprep.subr.bf16.mxu0 0
    %244 = vmatpush1.bf16.xpose.msra.mxu0 0
    %245 = vmatprep.subr.bf16.mxu0 0
    %246 = vmatpush1.bf16.xpose.msra.mxu0 %v229
    %247 = vmatprep.subr.bf16.mxu0 0
    %248 = vmatpush2.bf16.xpose.msra.mxu0 0
    %249 = vmatprep.subr.bf16.mxu0 0
    %250 = vmatpush2.bf16.xpose.msra.mxu0 0
    %251 = vmatprep.subr.bf16.mxu0 0
    %252 = vmatpush2.bf16.xpose.msra.mxu0 0
    %253 = vmatprep.subr.bf16.mxu0 0
    %254 = vmatpush2.bf16.xpose.msra.mxu0 0
    %255 = vmatprep.subr.bf16.mxu0 0
    %256 = vmatpush2.bf16.xpose.msra.mxu0 0
    %257 = vmatprep.subr.bf16.mxu0 0
    %258 = vmatpush2.bf16.xpose.msra.mxu0 0
    %259 = vmatprep.subr.bf16.mxu0 0
    %260 = vmatpush2.bf16.xpose.msra.mxu0 0
    %261 = vmatprep.subr.bf16.mxu0 0
    %262 = vmatpush2.bf16.xpose.msra.mxu0 0
    %263 = vmatprep.mubr.bf16.mxu0 0
    %264 = vmatmul.mubr.bf16.gmra.mxu0 %v226
    %v265 = vpop.f32.mrf.mxu0
    %v266 = vadd.f32 0.0, %v265
    %v267 = vpop.f32.mrf.mxu0
    %v268 = vpop.f32.mrf.mxu0
    %v269 = vpop.f32.mrf.mxu0
    %270 = vdwg.mxu0
    %v271 = vsel %vm175, %v217, -inf
    %272 = vmax.xlane.f32.xlu0 %v271
    %v273 = vpop.xlane.xlu0 %272
    %v274 = vsel %vm175, %v266, -inf
    %275 = vmax.xlane.f32.xlu0 %v274
    %v276 = vpop.xlane.xlu0 %275
    %v277 = vsub.f32 %v217, %v273
    %v278 = vsub.f32 %v266, %v276
    %v279 = vmul.f32 %v277, 1.442695
    %v280 = vpow.pop %v279
    %v281 = vmul.f32 %v278, 1.442695
    %v282 = vpow.pop %v281
    %v283 = vsel %vm175, %v280, 0.0
    %284 = vadd.xlane.f32.xlu0 %v283
    %v285 = vpop.xlane.xlu0 %284
    %v286 = vsel %vm175, %v282, 0.0
    %287 = vadd.xlane.f32.xlu0 %v286
    %v288 = vpop.xlane.xlu0 %287
    %v289 = vrcp.pop %v285
    %v290 = vrcp.pop %v288
    %v291 = vmul.f32 %v280, %v289
    %v292 = vmul.f32 %v282, %v290
    %v293 = vpack.c.bf16 %v291, %v291
    %v294 = vpack.c.bf16 %v292, %v292
    %v295 = vpack.c.bf16 %v164, %v164
    %v296 = vpack.c.bf16 %v167, %v167
    %298 = vrot.lane.b32.xlu0 %v295, 64
    %v299 = vpop.permute.xlu0 %298
    %v301 = vsel %vm175, %v293, 0
    %vm303 = vcmask 1043456
    %v305 = vsel %vm303, %v299, 0
    %307 = vmatprep.subr.bf16.mxu0 0
    %308 = vmatpush1.bf16.msra.mxu0 0
    %309 = vmatprep.subr.bf16.mxu0 0
    %310 = vmatpush1.bf16.msra.mxu0 0
    %311 = vmatprep.subr.bf16.mxu0 0
    %312 = vmatpush1.bf16.msra.mxu0 0
    %313 = vmatprep.subr.bf16.mxu0 0
    %314 = vmatpush1.bf16.msra.mxu0 0
    %315 = vmatprep.subr.bf16.mxu0 0
    %316 = vmatpush1.bf16.msra.mxu0 0
    %317 = vmatprep.subr.bf16.mxu0 0
    %318 = vmatpush1.bf16.msra.mxu0 0
    %319 = vmatprep.subr.bf16.mxu0 0
    %320 = vmatpush1.bf16.msra.mxu0 0
    %321 = vmatprep.subr.bf16.mxu0 0
    %322 = vmatpush1.bf16.msra.mxu0 %v305
    %323 = vmatprep.subr.bf16.mxu0 0
    %324 = vmatpush2.bf16.msra.mxu0 0
    %325 = vmatprep.subr.bf16.mxu0 0
    %326 = vmatpush2.bf16.msra.mxu0 0
    %327 = vmatprep.subr.bf16.mxu0 0
    %328 = vmatpush2.bf16.msra.mxu0 0
    %329 = vmatprep.subr.bf16.mxu0 0
    %330 = vmatpush2.bf16.msra.mxu0 0
    %331 = vmatprep.subr.bf16.mxu0 0
    %332 = vmatpush2.bf16.msra.mxu0 0
    %333 = vmatprep.subr.bf16.mxu0 0
    %334 = vmatpush2.bf16.msra.mxu0 0
    %335 = vmatprep.subr.bf16.mxu0 0
    %336 = vmatpush2.bf16.msra.mxu0 0
    %337 = vmatprep.subr.bf16.mxu0 0
    %338 = vmatpush2.bf16.msra.mxu0 0
    %339 = vmatprep.mubr.bf16.mxu0 0
    %340 = vmatmul.mubr.bf16.gmra.mxu0 %v301
    %v341 = vpop.f32.mrf.mxu0
    %v342 = vadd.f32 0.0, %v341
    %v343 = vpop.f32.mrf.mxu0
    %v344 = vpop.f32.mrf.mxu0
    %v345 = vpop.f32.mrf.mxu0
    %346 = vdwg.mxu0
    %348 = vrot.lane.b32.xlu0 %v296, 64
    %v349 = vpop.permute.xlu0 %348
    %v351 = vsel %vm175, %v294, 0
    %v354 = vsel %vm303, %v349, 0
    %356 = vmatprep.subr.bf16.mxu0 0
    %357 = vmatpush1.bf16.msra.mxu0 0
    %358 = vmatprep.subr.bf16.mxu0 0
    %359 = vmatpush1.bf16.msra.mxu0 0
    %360 = vmatprep.subr.bf16.mxu0 0
    %361 = vmatpush1.bf16.msra.mxu0 0
    %362 = vmatprep.subr.bf16.mxu0 0
    %363 = vmatpush1.bf16.msra.mxu0 0
    %364 = vmatprep.subr.bf16.mxu0 0
    %365 = vmatpush1.bf16.msra.mxu0 0
    %366 = vmatprep.subr.bf16.mxu0 0
    %367 = vmatpush1.bf16.msra.mxu0 0
    %368 = vmatprep.subr.bf16.mxu0 0
    %369 = vmatpush1.bf16.msra.mxu0 0
    %370 = vmatprep.subr.bf16.mxu0 0
    %371 = vmatpush1.bf16.msra.mxu0 %v354
    %372 = vmatprep.subr.bf16.mxu0 0
    %373 = vmatpush2.bf16.msra.mxu0 0
    %374 = vmatprep.subr.bf16.mxu0 0
    %375 = vmatpush2.bf16.msra.mxu0 0
    %376 = vmatprep.subr.bf16.mxu0 0
    %377 = vmatpush2.bf16.msra.mxu0 0
    %378 = vmatprep.subr.bf16.mxu0 0
    %379 = vmatpush2.bf16.msra.mxu0 0
    %380 = vmatprep.subr.bf16.mxu0 0
    %381 = vmatpush2.bf16.msra.mxu0 0
    %382 = vmatprep.subr.bf16.mxu0 0
    %383 = vmatpush2.bf16.msra.mxu0 0
    %384 = vmatprep.subr.bf16.mxu0 0
    %385 = vmatpush2.bf16.msra.mxu0 0
    %386 = vmatprep.subr.bf16.mxu0 0
    %387 = vmatpush2.bf16.msra.mxu0 0
    %388 = vmatprep.mubr.bf16.mxu0 0
    %389 = vmatmul.mubr.bf16.gmra.mxu0 %v351
    %v390 = vpop.f32.mrf.mxu0
    %v391 = vadd.f32 0.0, %v390
    %v392 = vpop.f32.mrf.mxu0
    %v393 = vpop.f32.mrf.mxu0
    %v394 = vpop.f32.mrf.mxu0
    %395 = vdwg.mxu0
    %396 = vrot.lane.b32.xlu0 %v170, 120
    %v397 = vpop.permute.xlu0 %396
    %398 = vrot.lane.b32.xlu0 %v170, 88
    %v399 = vpop.permute.xlu0 %398
    %v401 = vsel %vm175, %v397, 0
    %v404 = vsel %vm175, %v399, 0
    %406 = vmatprep.subr.bf16.mxu0 0
    %407 = vmatpush1.bf16.xpose.msra.mxu0 0
    %408 = vmatprep.subr.bf16.mxu0 0
    %409 = vmatpush1.bf16.xpose.msra.mxu0 0
    %410 = vmatprep.subr.bf16.mxu0 0
    %411 = vmatpush1.bf16.xpose.msra.mxu0 0
    %412 = vmatprep.subr.bf16.mxu0 0
    %413 = vmatpush1.bf16.xpose.msra.mxu0 0
    %414 = vmatprep.subr.bf16.mxu0 0
    %415 = vmatpush1.bf16.xpose.msra.mxu0 0
    %416 = vmatprep.subr.bf16.mxu0 0
    %417 = vmatpush1.bf16.xpose.msra.mxu0 0
    %418 = vmatprep.subr.bf16.mxu0 0
    %419 = vmatpush1.bf16.xpose.msra.mxu0 0
    %420 = vmatprep.subr.bf16.mxu0 0
    %421 = vmatpush1.bf16.xpose.msra.mxu0 %v404
    %422 = vmatprep.subr.bf16.mxu0 0
    %423 = vmatpush2.bf16.xpose.msra.mxu0 0
    %424 = vmatprep.subr.bf16.mxu0 0
    %425 = vmatpush2.bf16.xpose.msra.mxu0 0
    %426 = vmatprep.subr.bf16.mxu0 0
    %427 = vmatpush2.bf16.xpose.msra.mxu0 0
    %428 = vmatprep.subr.bf16.mxu0 0
    %429 = vmatpush2.bf16.xpose.msra.mxu0 0
    %430 = vmatprep.subr.bf16.mxu0 0
    %431 = vmatpush2.bf16.xpose.msra.mxu0 0
    %432 = vmatprep.subr.bf16.mxu0 0
    %433 = vmatpush2.bf16.xpose.msra.mxu0 0
    %434 = vmatprep.subr.bf16.mxu0 0
    %435 = vmatpush2.bf16.xpose.msra.mxu0 0
    %436 = vmatprep.subr.bf16.mxu0 0
    %437 = vmatpush2.bf16.xpose.msra.mxu0 0
    %438 = vmatprep.mubr.bf16.mxu0 0
    %439 = vmatmul.mubr.bf16.gmra.mxu0 %v401
    %v440 = vpop.f32.mrf.mxu0
    %v441 = vadd.f32 0.0, %v440
    %v442 = vpop.f32.mrf.mxu0
    %v443 = vpop.f32.mrf.mxu0
    %v444 = vpop.f32.mrf.mxu0
    %445 = vdwg.mxu0
    %446 = vrot.lane.b32.xlu0 %v171, 120
    %v447 = vpop.permute.xlu0 %446
    %448 = vrot.lane.b32.xlu0 %v171, 88
    %v449 = vpop.permute.xlu0 %448
    %v451 = vsel %vm175, %v447, 0
    %v454 = vsel %vm175, %v449, 0
    %456 = vmatprep.subr.bf16.mxu0 0
    %457 = vmatpush1.bf16.xpose.msra.mxu0 0
    %458 = vmatprep.subr.bf16.mxu0 0
    %459 = vmatpush1.bf16.xpose.msra.mxu0 0
    %460 = vmatprep.subr.bf16.mxu0 0
    %461 = vmatpush1.bf16.xpose.msra.mxu0 0
    %462 = vmatprep.subr.bf16.mxu0 0
    %463 = vmatpush1.bf16.xpose.msra.mxu0 0
    %464 = vmatprep.subr.bf16.mxu0 0
    %465 = vmatpush1.bf16.xpose.msra.mxu0 0
    %466 = vmatprep.subr.bf16.mxu0 0
    %467 = vmatpush1.bf16.xpose.msra.mxu0 0
    %468 = vmatprep.subr.bf16.mxu0 0
    %469 = vmatpush1.bf16.xpose.msra.mxu0 0
    %470 = vmatprep.subr.bf16.mxu0 0
    %471 = vmatpush1.bf16.xpose.msra.mxu0 %v454
    %472 = vmatprep.subr.bf16.mxu0 0
    %473 = vmatpush2.bf16.xpose.msra.mxu0 0
    %474 = vmatprep.subr.bf16.mxu0 0
    %475 = vmatpush2.bf16.xpose.msra.mxu0 0
    %476 = vmatprep.subr.bf16.mxu0 0
    %477 = vmatpush2.bf16.xpose.msra.mxu0 0
    %478 = vmatprep.subr.bf16.mxu0 0
    %479 = vmatpush2.bf16.xpose.msra.mxu0 0
    %480 = vmatprep.subr.bf16.mxu0 0
    %481 = vmatpush2.bf16.xpose.msra.mxu0 0
    %482 = vmatprep.subr.bf16.mxu0 0
    %483 = vmatpush2.bf16.xpose.msra.mxu0 0
    %484 = vmatprep.subr.bf16.mxu0 0
    %485 = vmatpush2.bf16.xpose.msra.mxu0 0
    %486 = vmatprep.subr.bf16.mxu0 0
    %487 = vmatpush2.bf16.xpose.msra.mxu0 0
    %488 = vmatprep.mubr.bf16.mxu0 0
    %489 = vmatmul.mubr.bf16.gmra.mxu0 %v451
    %v490 = vpop.f32.mrf.mxu0
    %v491 = vadd.f32 0.0, %v490
    %v492 = vpop.f32.mrf.mxu0
    %v493 = vpop.f32.mrf.mxu0
    %v494 = vpop.f32.mrf.mxu0
    %495 = vdwg.mxu0
    %v496 = vsel %vm175, %v441, -inf
    %497 = vmax.xlane.f32.xlu0 %v496
    %v498 = vpop.xlane.xlu0 %497
    %v499 = vsel %vm175, %v491, -inf
    %500 = vmax.xlane.f32.xlu0 %v499
    %v501 = vpop.xlane.xlu0 %500
    %v502 = vsub.f32 %v441, %v498
    %v503 = vsub.f32 %v491, %v501
    %v504 = vmul.f32 %v502, 1.442695
    %v505 = vpow.pop %v504
    %v506 = vmul.f32 %v503, 1.442695
    %v507 = vpow.pop %v506
    %v508 = vsel %vm175, %v505, 0.0
    %509 = vadd.xlane.f32.xlu0 %v508
    %v510 = vpop.xlane.xlu0 %509
    %v511 = vsel %vm175, %v507, 0.0
    %512 = vadd.xlane.f32.xlu0 %v511
    %v513 = vpop.xlane.xlu0 %512
    %v514 = vrcp.pop %v510
    %v515 = vrcp.pop %v513
    %v516 = vmul.f32 %v505, %v514
    %v517 = vmul.f32 %v507, %v515
    %v518 = vpack.c.bf16 %v516, %v516
    %v519 = vpack.c.bf16 %v517, %v517
    %520 = vrot.lane.b32.xlu0 %v295, 56
    %v521 = vpop.permute.xlu0 %520
    %v523 = vsel %vm175, %v518, 0
    %v526 = vsel %vm303, %v521, 0
    %528 = vmatprep.subr.bf16.mxu0 0
    %529 = vmatpush1.bf16.msra.mxu0 0
    %530 = vmatprep.subr.bf16.mxu0 0
    %531 = vmatpush1.bf16.msra.mxu0 0
    %532 = vmatprep.subr.bf16.mxu0 0
    %533 = vmatpush1.bf16.msra.mxu0 0
    %534 = vmatprep.subr.bf16.mxu0 0
    %535 = vmatpush1.bf16.msra.mxu0 0
    %536 = vmatprep.subr.bf16.mxu0 0
    %537 = vmatpush1.bf16.msra.mxu0 0
    %538 = vmatprep.subr.bf16.mxu0 0
    %539 = vmatpush1.bf16.msra.mxu0 0
    %540 = vmatprep.subr.bf16.mxu0 0
    %541 = vmatpush1.bf16.msra.mxu0 0
    %542 = vmatprep.subr.bf16.mxu0 0
    %543 = vmatpush1.bf16.msra.mxu0 %v526
    %544 = vmatprep.subr.bf16.mxu0 0
    %545 = vmatpush2.bf16.msra.mxu0 0
    %546 = vmatprep.subr.bf16.mxu0 0
    %547 = vmatpush2.bf16.msra.mxu0 0
    %548 = vmatprep.subr.bf16.mxu0 0
    %549 = vmatpush2.bf16.msra.mxu0 0
    %550 = vmatprep.subr.bf16.mxu0 0
    %551 = vmatpush2.bf16.msra.mxu0 0
    %552 = vmatprep.subr.bf16.mxu0 0
    %553 = vmatpush2.bf16.msra.mxu0 0
    %554 = vmatprep.subr.bf16.mxu0 0
    %555 = vmatpush2.bf16.msra.mxu0 0
    %556 = vmatprep.subr.bf16.mxu0 0
    %557 = vmatpush2.bf16.msra.mxu0 0
    %558 = vmatprep.subr.bf16.mxu0 0
    %559 = vmatpush2.bf16.msra.mxu0 0
    %560 = vmatprep.mubr.bf16.mxu0 0
    %561 = vmatmul.mubr.bf16.gmra.mxu0 %v523
    %v562 = vpop.f32.mrf.mxu0
    %v563 = vadd.f32 0.0, %v562
    %v564 = vpop.f32.mrf.mxu0
    %v565 = vpop.f32.mrf.mxu0
    %v566 = vpop.f32.mrf.mxu0
    %567 = vdwg.mxu0
    %568 = vrot.lane.b32.xlu0 %v296, 56
    %v569 = vpop.permute.xlu0 %568
    %v571 = vsel %vm175, %v519, 0
    %v574 = vsel %vm303, %v569, 0
    %576 = vmatprep.subr.bf16.mxu0 0
    %577 = vmatpush1.bf16.msra.mxu0 0
    %578 = vmatprep.subr.bf16.mxu0 0
    %579 = vmatpush1.bf16.msra.mxu0 0
    %580 = vmatprep.subr.bf16.mxu0 0
    %581 = vmatpush1.bf16.msra.mxu0 0
    %582 = vmatprep.subr.bf16.mxu0 0
    %583 = vmatpush1.bf16.msra.mxu0 0
    %584 = vmatprep.subr.bf16.mxu0 0
    %585 = vmatpush1.bf16.msra.mxu0 0
    %586 = vmatprep.subr.bf16.mxu0 0
    %587 = vmatpush1.bf16.msra.mxu0 0
    %588 = vmatprep.subr.bf16.mxu0 0
    %589 = vmatpush1.bf16.msra.mxu0 0
    %590 = vmatprep.subr.bf16.mxu0 0
    %591 = vmatpush1.bf16.msra.mxu0 %v574
    %592 = vmatprep.subr.bf16.mxu0 0
    %593 = vmatpush2.bf16.msra.mxu0 0
    %594 = vmatprep.subr.bf16.mxu0 0
    %595 = vmatpush2.bf16.msra.mxu0 0
    %596 = vmatprep.subr.bf16.mxu0 0
    %597 = vmatpush2.bf16.msra.mxu0 0
    %598 = vmatprep.subr.bf16.mxu0 0
    %599 = vmatpush2.bf16.msra.mxu0 0
    %600 = vmatprep.subr.bf16.mxu0 0
    %601 = vmatpush2.bf16.msra.mxu0 0
    %602 = vmatprep.subr.bf16.mxu0 0
    %603 = vmatpush2.bf16.msra.mxu0 0
    %604 = vmatprep.subr.bf16.mxu0 0
    %605 = vmatpush2.bf16.msra.mxu0 0
    %606 = vmatprep.subr.bf16.mxu0 0
    %607 = vmatpush2.bf16.msra.mxu0 0
    %608 = vmatprep.mubr.bf16.mxu0 0
    %609 = vmatmul.mubr.bf16.gmra.mxu0 %v571
    %v610 = vpop.f32.mrf.mxu0
    %v611 = vadd.f32 0.0, %v610
    %v612 = vpop.f32.mrf.mxu0
    %v613 = vpop.f32.mrf.mxu0
    %v614 = vpop.f32.mrf.mxu0
    %615 = vdwg.mxu0
    %616 = vrot.lane.b32.xlu0 %v170, 112
    %v617 = vpop.permute.xlu0 %616
    %618 = vrot.lane.b32.xlu0 %v170, 80
    %v619 = vpop.permute.xlu0 %618
    %v621 = vsel %vm175, %v617, 0
    %v624 = vsel %vm175, %v619, 0
    %626 = vmatprep.subr.bf16.mxu0 0
    %627 = vmatpush1.bf16.xpose.msra.mxu0 0
    %628 = vmatprep.subr.bf16.mxu0 0
    %629 = vmatpush1.bf16.xpose.msra.mxu0 0
    %630 = vmatprep.subr.bf16.mxu0 0
    %631 = vmatpush1.bf16.xpose.msra.mxu0 0
    %632 = vmatprep.subr.bf16.mxu0 0
    %633 = vmatpush1.bf16.xpose.msra.mxu0 0
    %634 = vmatprep.subr.bf16.mxu0 0
    %635 = vmatpush1.bf16.xpose.msra.mxu0 0
    %636 = vmatprep.subr.bf16.mxu0 0
    %637 = vmatpush1.bf16.xpose.msra.mxu0 0
    %638 = vmatprep.subr.bf16.mxu0 0
    %639 = vmatpush1.bf16.xpose.msra.mxu0 0
    %640 = vmatprep.subr.bf16.mxu0 0
    %641 = vmatpush1.bf16.xpose.msra.mxu0 %v624
    %642 = vmatprep.subr.bf16.mxu0 0
    %643 = vmatpush2.bf16.xpose.msra.mxu0 0
    %644 = vmatprep.subr.bf16.mxu0 0
    %645 = vmatpush2.bf16.xpose.msra.mxu0 0
    %646 = vmatprep.subr.bf16.mxu0 0
    %647 = vmatpush2.bf16.xpose.msra.mxu0 0
    %648 = vmatprep.subr.bf16.mxu0 0
    %649 = vmatpush2.bf16.xpose.msra.mxu0 0
    %650 = vmatprep.subr.bf16.mxu0 0
    %651 = vmatpush2.bf16.xpose.msra.mxu0 0
    %652 = vmatprep.subr.bf16.mxu0 0
    %653 = vmatpush2.bf16.xpose.msra.mxu0 0
    %654 = vmatprep.subr.bf16.mxu0 0
    %655 = vmatpush2.bf16.xpose.msra.mxu0 0
    %656 = vmatprep.subr.bf16.mxu0 0
    %657 = vmatpush2.bf16.xpose.msra.mxu0 0
    %658 = vmatprep.mubr.bf16.mxu0 0
    %659 = vmatmul.mubr.bf16.gmra.mxu0 %v621
    %v660 = vpop.f32.mrf.mxu0
    %v661 = vadd.f32 0.0, %v660
    %v662 = vpop.f32.mrf.mxu0
    %v663 = vpop.f32.mrf.mxu0
    %v664 = vpop.f32.mrf.mxu0
    %665 = vdwg.mxu0
    %666 = vrot.lane.b32.xlu0 %v171, 112
    %v667 = vpop.permute.xlu0 %666
    %668 = vrot.lane.b32.xlu0 %v171, 80
    %v669 = vpop.permute.xlu0 %668
    %v671 = vsel %vm175, %v667, 0
    %v674 = vsel %vm175, %v669, 0
    %676 = vmatprep.subr.bf16.mxu0 0
    %677 = vmatpush1.bf16.xpose.msra.mxu0 0
    %678 = vmatprep.subr.bf16.mxu0 0
    %679 = vmatpush1.bf16.xpose.msra.mxu0 0
    %680 = vmatprep.subr.bf16.mxu0 0
    %681 = vmatpush1.bf16.xpose.msra.mxu0 0
    %682 = vmatprep.subr.bf16.mxu0 0
    %683 = vmatpush1.bf16.xpose.msra.mxu0 0
    %684 = vmatprep.subr.bf16.mxu0 0
    %685 = vmatpush1.bf16.xpose.msra.mxu0 0
    %686 = vmatprep.subr.bf16.mxu0 0
    %687 = vmatpush1.bf16.xpose.msra.mxu0 0
    %688 = vmatprep.subr.bf16.mxu0 0
    %689 = vmatpush1.bf16.xpose.msra.mxu0 0
    %690 = vmatprep.subr.bf16.mxu0 0
    %691 = vmatpush1.bf16.xpose.msra.mxu0 %v674
    %692 = vmatprep.subr.bf16.mxu0 0
    %693 = vmatpush2.bf16.xpose.msra.mxu0 0
    %694 = vmatprep.subr.bf16.mxu0 0
    %695 = vmatpush2.bf16.xpose.msra.mxu0 0
    %696 = vmatprep.subr.bf16.mxu0 0
    %697 = vmatpush2.bf16.xpose.msra.mxu0 0
    %698 = vmatprep.subr.bf16.mxu0 0
    %699 = vmatpush2.bf16.xpose.msra.mxu0 0
    %700 = vmatprep.subr.bf16.mxu0 0
    %701 = vmatpush2.bf16.xpose.msra.mxu0 0
    %702 = vmatprep.subr.bf16.mxu0 0
    %703 = vmatpush2.bf16.xpose.msra.mxu0 0
    %704 = vmatprep.subr.bf16.mxu0 0
    %705 = vmatpush2.bf16.xpose.msra.mxu0 0
    %706 = vmatprep.subr.bf16.mxu0 0
    %707 = vmatpush2.bf16.xpose.msra.mxu0 0
    %708 = vmatprep.mubr.bf16.mxu0 0
    %709 = vmatmul.mubr.bf16.gmra.mxu0 %v671
    %v710 = vpop.f32.mrf.mxu0
    %v711 = vadd.f32 0.0, %v710
    %v712 = vpop.f32.mrf.mxu0
    %v713 = vpop.f32.mrf.mxu0
    %v714 = vpop.f32.mrf.mxu0
    %715 = vdwg.mxu0
    %v716 = vsel %vm175, %v661, -inf
    %717 = vmax.xlane.f32.xlu0 %v716
    %v718 = vpop.xlane.xlu0 %717
    %v719 = vsel %vm175, %v711, -inf
    %720 = vmax.xlane.f32.xlu0 %v719
    %v721 = vpop.xlane.xlu0 %720
    %v722 = vsub.f32 %v661, %v718
    %v723 = vsub.f32 %v711, %v721
    %v724 = vmul.f32 %v722, 1.442695
    %v725 = vpow.pop %v724
    %v726 = vmul.f32 %v723, 1.442695
    %v727 = vpow.pop %v726
    %v728 = vsel %vm175, %v725, 0.0
    %729 = vadd.xlane.f32.xlu0 %v728
    %v730 = vpop.xlane.xlu0 %729
    %v731 = vsel %vm175, %v727, 0.0
    %732 = vadd.xlane.f32.xlu0 %v731
    %v733 = vpop.xlane.xlu0 %732
    %v734 = vrcp.pop %v730
    %v735 = vrcp.pop %v733
    %v736 = vmul.f32 %v725, %v734
    %v737 = vmul.f32 %v727, %v735
    %v738 = vpack.c.bf16 %v736, %v736
    %v739 = vpack.c.bf16 %v737, %v737
    %740 = vrot.lane.b32.xlu0 %v295, 48
    %v741 = vpop.permute.xlu0 %740
    %v743 = vsel %vm175, %v738, 0
    %v746 = vsel %vm303, %v741, 0
    %748 = vmatprep.subr.bf16.mxu0 0
    %749 = vmatpush1.bf16.msra.mxu0 0
    %750 = vmatprep.subr.bf16.mxu0 0
    %751 = vmatpush1.bf16.msra.mxu0 0
    %752 = vmatprep.subr.bf16.mxu0 0
    %753 = vmatpush1.bf16.msra.mxu0 0
    %754 = vmatprep.subr.bf16.mxu0 0
    %755 = vmatpush1.bf16.msra.mxu0 0
    %756 = vmatprep.subr.bf16.mxu0 0
    %757 = vmatpush1.bf16.msra.mxu0 0
    %758 = vmatprep.subr.bf16.mxu0 0
    %759 = vmatpush1.bf16.msra.mxu0 0
    %760 = vmatprep.subr.bf16.mxu0 0
    %761 = vmatpush1.bf16.msra.mxu0 0
    %762 = vmatprep.subr.bf16.mxu0 0
    %763 = vmatpush1.bf16.msra.mxu0 %v746
    %764 = vmatprep.subr.bf16.mxu0 0
    %765 = vmatpush2.bf16.msra.mxu0 0
    %766 = vmatprep.subr.bf16.mxu0 0
    %767 = vmatpush2.bf16.msra.mxu0 0
    %768 = vmatprep.subr.bf16.mxu0 0
    %769 = vmatpush2.bf16.msra.mxu0 0
    %770 = vmatprep.subr.bf16.mxu0 0
    %771 = vmatpush2.bf16.msra.mxu0 0
    %772 = vmatprep.subr.bf16.mxu0 0
    %773 = vmatpush2.bf16.msra.mxu0 0
    %774 = vmatprep.subr.bf16.mxu0 0
    %775 = vmatpush2.bf16.msra.mxu0 0
    %776 = vmatprep.subr.bf16.mxu0 0
    %777 = vmatpush2.bf16.msra.mxu0 0
    %778 = vmatprep.subr.bf16.mxu0 0
    %779 = vmatpush2.bf16.msra.mxu0 0
    %780 = vmatprep.mubr.bf16.mxu0 0
    %781 = vmatmul.mubr.bf16.gmra.mxu0 %v743
    %v782 = vpop.f32.mrf.mxu0
    %v783 = vadd.f32 0.0, %v782
    %v784 = vpop.f32.mrf.mxu0
    %v785 = vpop.f32.mrf.mxu0
    %v786 = vpop.f32.mrf.mxu0
    %787 = vdwg.mxu0
    %788 = vrot.lane.b32.xlu0 %v296, 48
    %v789 = vpop.permute.xlu0 %788
    %v791 = vsel %vm175, %v739, 0
    %v794 = vsel %vm303, %v789, 0
    %796 = vmatprep.subr.bf16.mxu0 0
    %797 = vmatpush1.bf16.msra.mxu0 0
    %798 = vmatprep.subr.bf16.mxu0 0
    %799 = vmatpush1.bf16.msra.mxu0 0
    %800 = vmatprep.subr.bf16.mxu0 0
    %801 = vmatpush1.bf16.msra.mxu0 0
    %802 = vmatprep.subr.bf16.mxu0 0
    %803 = vmatpush1.bf16.msra.mxu0 0
    %804 = vmatprep.subr.bf16.mxu0 0
    %805 = vmatpush1.bf16.msra.mxu0 0
    %806 = vmatprep.subr.bf16.mxu0 0
    %807 = vmatpush1.bf16.msra.mxu0 0
    %808 = vmatprep.subr.bf16.mxu0 0
    %809 = vmatpush1.bf16.msra.mxu0 0
    %810 = vmatprep.subr.bf16.mxu0 0
    %811 = vmatpush1.bf16.msra.mxu0 %v794
    %812 = vmatprep.subr.bf16.mxu0 0
    %813 = vmatpush2.bf16.msra.mxu0 0
    %814 = vmatprep.subr.bf16.mxu0 0
    %815 = vmatpush2.bf16.msra.mxu0 0
    %816 = vmatprep.subr.bf16.mxu0 0
    %817 = vmatpush2.bf16.msra.mxu0 0
    %818 = vmatprep.subr.bf16.mxu0 0
    %819 = vmatpush2.bf16.msra.mxu0 0
    %820 = vmatprep.subr.bf16.mxu0 0
    %821 = vmatpush2.bf16.msra.mxu0 0
    %822 = vmatprep.subr.bf16.mxu0 0
    %823 = vmatpush2.bf16.msra.mxu0 0
    %824 = vmatprep.subr.bf16.mxu0 0
    %825 = vmatpush2.bf16.msra.mxu0 0
    %826 = vmatprep.subr.bf16.mxu0 0
    %827 = vmatpush2.bf16.msra.mxu0 0
    %828 = vmatprep.mubr.bf16.mxu0 0
    %829 = vmatmul.mubr.bf16.gmra.mxu0 %v791
    %v830 = vpop.f32.mrf.mxu0
    %v831 = vadd.f32 0.0, %v830
    %v832 = vpop.f32.mrf.mxu0
    %v833 = vpop.f32.mrf.mxu0
    %v834 = vpop.f32.mrf.mxu0
    %835 = vdwg.mxu0
    %836 = vrot.lane.b32.xlu0 %v170, 104
    %v837 = vpop.permute.xlu0 %836
    %838 = vrot.lane.b32.xlu0 %v170, 72
    %v839 = vpop.permute.xlu0 %838
    %v841 = vsel %vm175, %v837, 0
    %v844 = vsel %vm175, %v839, 0
    %846 = vmatprep.subr.bf16.mxu0 0
    %847 = vmatpush1.bf16.xpose.msra.mxu0 0
    %848 = vmatprep.subr.bf16.mxu0 0
    %849 = vmatpush1.bf16.xpose.msra.mxu0 0
    %850 = vmatprep.subr.bf16.mxu0 0
    %851 = vmatpush1.bf16.xpose.msra.mxu0 0
    %852 = vmatprep.subr.bf16.mxu0 0
    %853 = vmatpush1.bf16.xpose.msra.mxu0 0
    %854 = vmatprep.subr.bf16.mxu0 0
    %855 = vmatpush1.bf16.xpose.msra.mxu0 0
    %856 = vmatprep.subr.bf16.mxu0 0
    %857 = vmatpush1.bf16.xpose.msra.mxu0 0
    %858 = vmatprep.subr.bf16.mxu0 0
    %859 = vmatpush1.bf16.xpose.msra.mxu0 0
    %860 = vmatprep.subr.bf16.mxu0 0
    %861 = vmatpush1.bf16.xpose.msra.mxu0 %v844
    %862 = vmatprep.subr.bf16.mxu0 0
    %863 = vmatpush2.bf16.xpose.msra.mxu0 0
    %864 = vmatprep.subr.bf16.mxu0 0
    %865 = vmatpush2.bf16.xpose.msra.mxu0 0
    %866 = vmatprep.subr.bf16.mxu0 0
    %867 = vmatpush2.bf16.xpose.msra.mxu0 0
    %868 = vmatprep.subr.bf16.mxu0 0
    %869 = vmatpush2.bf16.xpose.msra.mxu0 0
    %870 = vmatprep.subr.bf16.mxu0 0
    %871 = vmatpush2.bf16.xpose.msra.mxu0 0
    %872 = vmatprep.subr.bf16.mxu0 0
    %873 = vmatpush2.bf16.xpose.msra.mxu0 0
    %874 = vmatprep.subr.bf16.mxu0 0
    %875 = vmatpush2.bf16.xpose.msra.mxu0 0
    %876 = vmatprep.subr.bf16.mxu0 0
    %877 = vmatpush2.bf16.xpose.msra.mxu0 0
    %878 = vmatprep.mubr.bf16.mxu0 0
    %879 = vmatmul.mubr.bf16.gmra.mxu0 %v841
    %v880 = vpop.f32.mrf.mxu0
    %v881 = vadd.f32 0.0, %v880
    %v882 = vpop.f32.mrf.mxu0
    %v883 = vpop.f32.mrf.mxu0
    %v884 = vpop.f32.mrf.mxu0
    %885 = vdwg.mxu0
    %886 = vrot.lane.b32.xlu0 %v171, 104
    %v887 = vpop.permute.xlu0 %886
    %888 = vrot.lane.b32.xlu0 %v171, 72
    %v889 = vpop.permute.xlu0 %888
    %v891 = vsel %vm175, %v887, 0
    %v894 = vsel %vm175, %v889, 0
    %896 = vmatprep.subr.bf16.mxu0 0
    %897 = vmatpush1.bf16.xpose.msra.mxu0 0
    %898 = vmatprep.subr.bf16.mxu0 0
    %899 = vmatpush1.bf16.xpose.msra.mxu0 0
    %900 = vmatprep.subr.bf16.mxu0 0
    %901 = vmatpush1.bf16.xpose.msra.mxu0 0
    %902 = vmatprep.subr.bf16.mxu0 0
    %903 = vmatpush1.bf16.xpose.msra.mxu0 0
    %904 = vmatprep.subr.bf16.mxu0 0
    %905 = vmatpush1.bf16.xpose.msra.mxu0 0
    %906 = vmatprep.subr.bf16.mxu0 0
    %907 = vmatpush1.bf16.xpose.msra.mxu0 0
    %908 = vmatprep.subr.bf16.mxu0 0
    %909 = vmatpush1.bf16.xpose.msra.mxu0 0
    %910 = vmatprep.subr.bf16.mxu0 0
    %911 = vmatpush1.bf16.xpose.msra.mxu0 %v894
    %912 = vmatprep.subr.bf16.mxu0 0
    %913 = vmatpush2.bf16.xpose.msra.mxu0 0
    %914 = vmatprep.subr.bf16.mxu0 0
    %915 = vmatpush2.bf16.xpose.msra.mxu0 0
    %916 = vmatprep.subr.bf16.mxu0 0
    %917 = vmatpush2.bf16.xpose.msra.mxu0 0
    %918 = vmatprep.subr.bf16.mxu0 0
    %919 = vmatpush2.bf16.xpose.msra.mxu0 0
    %920 = vmatprep.subr.bf16.mxu0 0
    %921 = vmatpush2.bf16.xpose.msra.mxu0 0
    %922 = vmatprep.subr.bf16.mxu0 0
    %923 = vmatpush2.bf16.xpose.msra.mxu0 0
    %924 = vmatprep.subr.bf16.mxu0 0
    %925 = vmatpush2.bf16.xpose.msra.mxu0 0
    %926 = vmatprep.subr.bf16.mxu0 0
    %927 = vmatpush2.bf16.xpose.msra.mxu0 0
    %928 = vmatprep.mubr.bf16.mxu0 0
    %929 = vmatmul.mubr.bf16.gmra.mxu0 %v891
    %v930 = vpop.f32.mrf.mxu0
    %v931 = vadd.f32 0.0, %v930
    %v932 = vpop.f32.mrf.mxu0
    %v933 = vpop.f32.mrf.mxu0
    %v934 = vpop.f32.mrf.mxu0
    %935 = vdwg.mxu0
    %v936 = vsel %vm175, %v881, -inf
    %937 = vmax.xlane.f32.xlu0 %v936
    %v938 = vpop.xlane.xlu0 %937
    %v939 = vsel %vm175, %v931, -inf
    %940 = vmax.xlane.f32.xlu0 %v939
    %v941 = vpop.xlane.xlu0 %940
    %v942 = vsub.f32 %v881, %v938
    %v943 = vsub.f32 %v931, %v941
    %v944 = vmul.f32 %v942, 1.442695
    %v945 = vpow.pop %v944
    %v946 = vmul.f32 %v943, 1.442695
    %v947 = vpow.pop %v946
    %v948 = vsel %vm175, %v945, 0.0
    %949 = vadd.xlane.f32.xlu0 %v948
    %v950 = vpop.xlane.xlu0 %949
    %v951 = vsel %vm175, %v947, 0.0
    %952 = vadd.xlane.f32.xlu0 %v951
    %v953 = vpop.xlane.xlu0 %952
    %v954 = vrcp.pop %v950
    %v955 = vrcp.pop %v953
    %v956 = vmul.f32 %v945, %v954
    %v957 = vmul.f32 %v947, %v955
    %v958 = vpack.c.bf16 %v956, %v956
    %v959 = vpack.c.bf16 %v957, %v957
    %960 = vrot.lane.b32.xlu0 %v295, 40
    %v961 = vpop.permute.xlu0 %960
    %v963 = vsel %vm175, %v958, 0
    %v966 = vsel %vm303, %v961, 0
    %968 = vmatprep.subr.bf16.mxu0 0
    %969 = vmatpush1.bf16.msra.mxu0 0
    %970 = vmatprep.subr.bf16.mxu0 0
    %971 = vmatpush1.bf16.msra.mxu0 0
    %972 = vmatprep.subr.bf16.mxu0 0
    %973 = vmatpush1.bf16.msra.mxu0 0
    %974 = vmatprep.subr.bf16.mxu0 0
    %975 = vmatpush1.bf16.msra.mxu0 0
    %976 = vmatprep.subr.bf16.mxu0 0
    %977 = vmatpush1.bf16.msra.mxu0 0
    %978 = vmatprep.subr.bf16.mxu0 0
    %979 = vmatpush1.bf16.msra.mxu0 0
    %980 = vmatprep.subr.bf16.mxu0 0
    %981 = vmatpush1.bf16.msra.mxu0 0
    %982 = vmatprep.subr.bf16.mxu0 0
    %983 = vmatpush1.bf16.msra.mxu0 %v966
    %984 = vmatprep.subr.bf16.mxu0 0
    %985 = vmatpush2.bf16.msra.mxu0 0
    %986 = vmatprep.subr.bf16.mxu0 0
    %987 = vmatpush2.bf16.msra.mxu0 0
    %988 = vmatprep.subr.bf16.mxu0 0
    %989 = vmatpush2.bf16.msra.mxu0 0
    %990 = vmatprep.subr.bf16.mxu0 0
    %991 = vmatpush2.bf16.msra.mxu0 0
    %992 = vmatprep.subr.bf16.mxu0 0
    %993 = vmatpush2.bf16.msra.mxu0 0
    %994 = vmatprep.subr.bf16.mxu0 0
    %995 = vmatpush2.bf16.msra.mxu0 0
    %996 = vmatprep.subr.bf16.mxu0 0
    %997 = vmatpush2.bf16.msra.mxu0 0
    %998 = vmatprep.subr.bf16.mxu0 0
    %999 = vmatpush2.bf16.msra.mxu0 0
    %1000 = vmatprep.mubr.bf16.mxu0 0
    %1001 = vmatmul.mubr.bf16.gmra.mxu0 %v963
    %v1002 = vpop.f32.mrf.mxu0
    %v1003 = vadd.f32 0.0, %v1002
    %v1004 = vpop.f32.mrf.mxu0
    %v1005 = vpop.f32.mrf.mxu0
    %v1006 = vpop.f32.mrf.mxu0
    %1007 = vdwg.mxu0
    %1008 = vrot.lane.b32.xlu0 %v296, 40
    %v1009 = vpop.permute.xlu0 %1008
    %v1011 = vsel %vm175, %v959, 0
    %v1014 = vsel %vm303, %v1009, 0
    %1016 = vmatprep.subr.bf16.mxu0 0
    %1017 = vmatpush1.bf16.msra.mxu0 0
    %1018 = vmatprep.subr.bf16.mxu0 0
    %1019 = vmatpush1.bf16.msra.mxu0 0
    %1020 = vmatprep.subr.bf16.mxu0 0
    %1021 = vmatpush1.bf16.msra.mxu0 0
    %1022 = vmatprep.subr.bf16.mxu0 0
    %1023 = vmatpush1.bf16.msra.mxu0 0
    %1024 = vmatprep.subr.bf16.mxu0 0
    %1025 = vmatpush1.bf16.msra.mxu0 0
    %1026 = vmatprep.subr.bf16.mxu0 0
    %1027 = vmatpush1.bf16.msra.mxu0 0
    %1028 = vmatprep.subr.bf16.mxu0 0
    %1029 = vmatpush1.bf16.msra.mxu0 0
    %1030 = vmatprep.subr.bf16.mxu0 0
    %1031 = vmatpush1.bf16.msra.mxu0 %v1014
    %1032 = vmatprep.subr.bf16.mxu0 0
    %1033 = vmatpush2.bf16.msra.mxu0 0
    %1034 = vmatprep.subr.bf16.mxu0 0
    %1035 = vmatpush2.bf16.msra.mxu0 0
    %1036 = vmatprep.subr.bf16.mxu0 0
    %1037 = vmatpush2.bf16.msra.mxu0 0
    %1038 = vmatprep.subr.bf16.mxu0 0
    %1039 = vmatpush2.bf16.msra.mxu0 0
    %1040 = vmatprep.subr.bf16.mxu0 0
    %1041 = vmatpush2.bf16.msra.mxu0 0
    %1042 = vmatprep.subr.bf16.mxu0 0
    %1043 = vmatpush2.bf16.msra.mxu0 0
    %1044 = vmatprep.subr.bf16.mxu0 0
    %1045 = vmatpush2.bf16.msra.mxu0 0
    %1046 = vmatprep.subr.bf16.mxu0 0
    %1047 = vmatpush2.bf16.msra.mxu0 0
    %1048 = vmatprep.mubr.bf16.mxu0 0
    %1049 = vmatmul.mubr.bf16.gmra.mxu0 %v1011
    %v1050 = vpop.f32.mrf.mxu0
    %v1051 = vadd.f32 0.0, %v1050
    %v1052 = vpop.f32.mrf.mxu0
    %v1053 = vpop.f32.mrf.mxu0
    %v1054 = vpop.f32.mrf.mxu0
    %1055 = vdwg.mxu0
    %1058 = vrot.lane.b32.xlu0 %v563, 8
    %v1059 = vpop.permute.xlu0 %1058
    %1060 = vrot.lane.b32.xlu0 %v611, 8
    %v1061 = vpop.permute.xlu0 %1060
    %1066 = vrot.lane.b32.xlu0 %v783, 16
    %v1067 = vpop.permute.xlu0 %1066
    %1068 = vrot.lane.b32.xlu0 %v831, 16
    %v1069 = vpop.permute.xlu0 %1068
    %1074 = vrot.lane.b32.xlu0 %v1003, 24
    %v1075 = vpop.permute.xlu0 %1074
    %1076 = vrot.lane.b32.xlu0 %v1051, 24
    %v1077 = vpop.permute.xlu0 %1076
    %v1080 = vsel %vm175, %v342, %v1059
    %v1081 = vsel %vm175, %v391, %v1061
    %vm1082 = vcmask 130048
    %v1083 = vsel %vm1082, %v1080, %v1067
    %v1084 = vsel %vm1082, %v1081, %v1069
    %vm1085 = vcmask 195584
    %v1086 = vsel %vm1085, %v1083, %v1075
    %v1087 = vsel %vm1085, %v1084, %v1077
    %v1088 = vpack.c.bf16 %v1087, %v1086
    %v1089 = vld [vmem:[%s4] sm:$0xf]
    %v1090 = vld [vmem:[%s4 + $0x4] sm:$0xf]
    %v1091 = vld [vmem:[%s4 + $0x8] sm:$0xf]
    %v1092 = vld [vmem:[%s4 + $0xc] sm:$0xf]
    %v1093 = vld [vmem:[%s5] sm:$0x1]
    %v1095 = vlaneseq
    %v1096 = vshrl.u32 %v1095, 7
    %v1097 = vsub.s32 0, %v1096
    %v1098 = vrot.slane %v1093, %v1097
    %v1104 = vunpack.c.l.b16 %v1089
    %v1105 = vunpack.c.l.b16 %v1090
    %v1106 = vunpack.c.l.b16 %v1091
    %v1107 = vunpack.c.l.b16 %v1092
    %v1108 = vpack.c.b16 %v1105, %v1104
    %v1109 = vpack.c.b16 %v1107, %v1106
    %v1113 = vsel %vm114, %v1088, 0
    %1115 = vmatprep.subr.bf16.mxu0 0
    %1116 = vmatpush1.bf16.msra.mxu0 0
    %1117 = vmatprep.subr.bf16.mxu0 0
    %1118 = vmatpush1.bf16.msra.mxu0 0
    %1119 = vmatprep.subr.bf16.mxu0 0
    %1120 = vmatpush1.bf16.msra.mxu0 0
    %1121 = vmatprep.subr.bf16.mxu0 0
    %1122 = vmatpush1.bf16.msra.mxu0 0
    %1123 = vmatprep.subr.bf16.mxu0 0
    %1124 = vmatpush1.bf16.msra.mxu0 0
    %1125 = vmatprep.subr.bf16.mxu0 0
    %1126 = vmatpush1.bf16.msra.mxu0 0
    %1127 = vmatprep.subr.bf16.mxu0 0
    %1128 = vmatpush1.bf16.msra.mxu0 %v1109
    %1129 = vmatprep.subr.bf16.mxu0 0
    %1130 = vmatpush1.bf16.msra.mxu0 %v1108
    %1131 = vmatprep.subr.bf16.mxu0 0
    %1132 = vmatpush2.bf16.msra.mxu0 0
    %1133 = vmatprep.subr.bf16.mxu0 0
    %1134 = vmatpush2.bf16.msra.mxu0 0
    %1135 = vmatprep.subr.bf16.mxu0 0
    %1136 = vmatpush2.bf16.msra.mxu0 0
    %1137 = vmatprep.subr.bf16.mxu0 0
    %1138 = vmatpush2.bf16.msra.mxu0 0
    %1139 = vmatprep.subr.bf16.mxu0 0
    %1140 = vmatpush2.bf16.msra.mxu0 0
    %1141 = vmatprep.subr.bf16.mxu0 0
    %1142 = vmatpush2.bf16.msra.mxu0 0
    %1143 = vmatprep.subr.bf16.mxu0 0
    %1144 = vmatpush2.bf16.msra.mxu0 0
    %1145 = vmatprep.subr.bf16.mxu0 0
    %1146 = vmatpush2.bf16.msra.mxu0 0
    %1147 = vmatprep.mubr.bf16.mxu0 0
    %1148 = vmatmul.mubr.bf16.gmra.mxu0 %v1113
    %v1149 = vpop.f32.mrf.mxu0
    %v1150 = vadd.f32 %v1098, %v1149
    %v1151 = vpop.f32.mrf.mxu0
    %v1152 = vpop.f32.mrf.mxu0
    %v1153 = vadd.f32 %v1098, %v1152
    %v1154 = vpop.f32.mrf.mxu0
    %1155 = vdwg.mxu0
    %v1156 = vadd.f32 %v83, %v1150
    %v1157 = vadd.f32 %v84, %v1153
    %v1158 = vld [vmem:[%s10] sm:$0x1]
    %v1159 = vld [vmem:[%s11] sm:$0x1]
    %v1160 = vsel %vm114, %v1156, 0.0
    %1161 = vadd.xlane.f32.xlu0 %v1160
    %v1162 = vpop.xlane.xlu0 %1161
    %v1163 = vsel %vm114, %v1157, 0.0
    %1164 = vadd.xlane.f32.xlu0 %v1163
    %v1165 = vpop.xlane.xlu0 %1164
    %v1166 = vrcp.pop 32.0
    %v1167 = vmul.f32 %v1162, %v1166
    %v1168 = vmul.f32 %v1165, %v1166
    %v1169 = vsub.f32 %v1156, %v1167
    %v1170 = vsub.f32 %v1157, %v1168
    %v1171 = vmul.f32 %v1169, %v1169
    %v1172 = vmul.f32 %v1170, %v1170
    %v1173 = vsel %vm114, %v1171, 0.0
    %1174 = vadd.xlane.f32.xlu0 %v1173
    %v1175 = vpop.xlane.xlu0 %1174
    %v1176 = vsel %vm114, %v1172, 0.0
    %1177 = vadd.xlane.f32.xlu0 %v1176
    %v1178 = vpop.xlane.xlu0 %1177
    %v1179 = vmul.f32 %v1175, %v1166
    %v1180 = vmul.f32 %v1178, %v1166
    %v1181 = vadd.f32 %v1179, 1e-05
    %v1182 = vadd.f32 %v1180, 1e-05
    %v1183 = vrsqrt.pop %v1181
    %v1184 = vrsqrt.pop %v1182
    %v1185 = vmul.f32 %v1169, %v1183
    %v1186 = vmul.f32 %v1170, %v1184
    %v1188 = vlaneseq
    %v1189 = vshrl.u32 %v1188, 7
    %v1190 = vsub.s32 0, %v1189
    %v1191 = vrot.slane %v1158, %v1190
    %v1193 = vmul.f32 %v1185, %v1191
    %v1194 = vmul.f32 %v1186, %v1191
    %v1196 = vlaneseq
    %v1197 = vshrl.u32 %v1196, 7
    %v1198 = vsub.s32 0, %v1197
    %v1199 = vrot.slane %v1159, %v1198
    %v1201 = vadd.f32 %v1193, %v1199
    %v1202 = vadd.f32 %v1194, %v1199
    %v1203 = vpack.c.bf16 %v1202, %v1201
    %v1204 = vld [vmem:[%s6] sm:$0xf]
    %v1205 = vld [vmem:[%s6 + $0x4] sm:$0xf]
    %v1206 = vld [vmem:[%s6 + $0x8] sm:$0xf]
    %v1207 = vld [vmem:[%s6 + $0xc] sm:$0xf]
    %v1208 = vld [vmem:[%s7] sm:$0x1]
    %v1210 = vlaneseq
    %v1211 = vshrl.u32 %v1210, 7
    %v1212 = vsub.s32 0, %v1211
    %v1213 = vrot.slane %v1208, %v1212
    %v1219 = vunpack.c.l.b16 %v1204
    %v1220 = vunpack.c.l.b16 %v1205
    %v1221 = vunpack.c.l.b16 %v1206
    %v1222 = vunpack.c.l.b16 %v1207
    %v1223 = vpack.c.b16 %v1220, %v1219
    %v1224 = vpack.c.b16 %v1222, %v1221
    %v1228 = vsel %vm114, %v1203, 0
    %1230 = vmatprep.subr.bf16.mxu0 0
    %1231 = vmatpush1.bf16.msra.mxu0 0
    %1232 = vmatprep.subr.bf16.mxu0 0
    %1233 = vmatpush1.bf16.msra.mxu0 0
    %1234 = vmatprep.subr.bf16.mxu0 0
    %1235 = vmatpush1.bf16.msra.mxu0 0
    %1236 = vmatprep.subr.bf16.mxu0 0
    %1237 = vmatpush1.bf16.msra.mxu0 0
    %1238 = vmatprep.subr.bf16.mxu0 0
    %1239 = vmatpush1.bf16.msra.mxu0 0
    %1240 = vmatprep.subr.bf16.mxu0 0
    %1241 = vmatpush1.bf16.msra.mxu0 0
    %1242 = vmatprep.subr.bf16.mxu0 0
    %1243 = vmatpush1.bf16.msra.mxu0 %v1224
    %1244 = vmatprep.subr.bf16.mxu0 0
    %1245 = vmatpush1.bf16.msra.mxu0 %v1223
    %1246 = vmatprep.subr.bf16.mxu0 0
    %1247 = vmatpush2.bf16.msra.mxu0 0
    %1248 = vmatprep.subr.bf16.mxu0 0
    %1249 = vmatpush2.bf16.msra.mxu0 0
    %1250 = vmatprep.subr.bf16.mxu0 0
    %1251 = vmatpush2.bf16.msra.mxu0 0
    %1252 = vmatprep.subr.bf16.mxu0 0
    %1253 = vmatpush2.bf16.msra.mxu0 0
    %1254 = vmatprep.subr.bf16.mxu0 0
    %1255 = vmatpush2.bf16.msra.mxu0 0
    %1256 = vmatprep.subr.bf16.mxu0 0
    %1257 = vmatpush2.bf16.msra.mxu0 0
    %1258 = vmatprep.subr.bf16.mxu0 0
    %1259 = vmatpush2.bf16.msra.mxu0 0
    %1260 = vmatprep.subr.bf16.mxu0 0
    %1261 = vmatpush2.bf16.msra.mxu0 0
    %1262 = vmatprep.mubr.bf16.mxu0 0
    %1263 = vmatmul.mubr.bf16.gmra.mxu0 %v1228
    %v1264 = vpop.f32.mrf.mxu0
    %v1265 = vadd.f32 %v1213, %v1264
    %v1266 = vpop.f32.mrf.mxu0
    %v1267 = vpop.f32.mrf.mxu0
    %v1268 = vadd.f32 %v1213, %v1267
    %v1269 = vpop.f32.mrf.mxu0
    %1270 = vdwg.mxu0
    %v1271 = vmax.f32 %v1265, 0.0
    %v1272 = vmax.f32 %v1268, 0.0
    %v1273 = vpack.c.bf16 %v1272, %v1271
    %v1274 = vld [vmem:[%s8] sm:$0xf]
    %v1275 = vld [vmem:[%s8 + $0x4] sm:$0xf]
    %v1276 = vld [vmem:[%s8 + $0x8] sm:$0xf]
    %v1277 = vld [vmem:[%s8 + $0xc] sm:$0xf]
    %v1278 = vld [vmem:[%s8 + $0x10] sm:$0xf]
    %v1279 = vld [vmem:[%s8 + $0x14] sm:$0xf]
    %v1280 = vld [vmem:[%s8 + $0x18] sm:$0xf]
    %v1281 = vld [vmem:[%s8 + $0x1c] sm:$0xf]
    %v1282 = vld [vmem:[%s9] sm:$0x1]
    %v1284 = vlaneseq
    %v1285 = vshrl.u32 %v1284, 7
    %v1286 = vsub.s32 0, %v1285
    %v1287 = vrot.slane %v1282, %v1286
    %v1297 = vunpack.c.l.b16 %v1274
    %v1298 = vunpack.c.l.b16 %v1275
    %v1299 = vunpack.c.l.b16 %v1276
    %v1300 = vunpack.c.l.b16 %v1277
    %v1301 = vunpack.c.l.b16 %v1278
    %v1302 = vunpack.c.l.b16 %v1279
    %v1303 = vunpack.c.l.b16 %v1280
    %v1304 = vunpack.c.l.b16 %v1281
    %v1305 = vpack.c.b16 %v1298, %v1297
    %v1306 = vpack.c.b16 %v1300, %v1299
    %v1307 = vpack.c.b16 %v1302, %v1301
    %v1308 = vpack.c.b16 %v1304, %v1303
    %vm1313 = vcmask 523264
    %v1315 = vsel %vm1313, %v1273, 0
    %1317 = vmatprep.subr.bf16.mxu0 0
    %1318 = vmatpush1.bf16.msra.mxu0 0
    %1319 = vmatprep.subr.bf16.mxu0 0
    %1320 = vmatpush1.bf16.msra.mxu0 0
    %1321 = vmatprep.subr.bf16.mxu0 0
    %1322 = vmatpush1.bf16.msra.mxu0 0
    %1323 = vmatprep.subr.bf16.mxu0 0
    %1324 = vmatpush1.bf16.msra.mxu0 0
    %1325 = vmatprep.subr.bf16.mxu0 0
    %1326 = vmatpush1.bf16.msra.mxu0 %v1308
    %1327 = vmatprep.subr.bf16.mxu0 0
    %1328 = vmatpush1.bf16.msra.mxu0 %v1307
    %1329 = vmatprep.subr.bf16.mxu0 0
    %1330 = vmatpush1.bf16.msra.mxu0 %v1306
    %1331 = vmatprep.subr.bf16.mxu0 0
    %1332 = vmatpush1.bf16.msra.mxu0 %v1305
    %1333 = vmatprep.subr.bf16.mxu0 0
    %1334 = vmatpush2.bf16.msra.mxu0 0
    %1335 = vmatprep.subr.bf16.mxu0 0
    %1336 = vmatpush2.bf16.msra.mxu0 0
    %1337 = vmatprep.subr.bf16.mxu0 0
    %1338 = vmatpush2.bf16.msra.mxu0 0
    %1339 = vmatprep.subr.bf16.mxu0 0
    %1340 = vmatpush2.bf16.msra.mxu0 0
    %1341 = vmatprep.subr.bf16.mxu0 0
    %1342 = vmatpush2.bf16.msra.mxu0 0
    %1343 = vmatprep.subr.bf16.mxu0 0
    %1344 = vmatpush2.bf16.msra.mxu0 0
    %1345 = vmatprep.subr.bf16.mxu0 0
    %1346 = vmatpush2.bf16.msra.mxu0 0
    %1347 = vmatprep.subr.bf16.mxu0 0
    %1348 = vmatpush2.bf16.msra.mxu0 0
    %1349 = vmatprep.mubr.bf16.mxu0 0
    %1350 = vmatmul.mubr.bf16.gmra.mxu0 %v1315
    %v1351 = vpop.f32.mrf.mxu0
    %v1352 = vadd.f32 %v1287, %v1351
    %v1353 = vpop.f32.mrf.mxu0
    %v1354 = vpop.f32.mrf.mxu0
    %v1355 = vadd.f32 %v1287, %v1354
    %v1356 = vpop.f32.mrf.mxu0
    %1357 = vdwg.mxu0
    %v1358 = vadd.f32 %v1201, %v1352
    %v1359 = vadd.f32 %v1202, %v1355
    %v1360 = vld [vmem:[%s12] sm:$0x1]
    %v1361 = vld [vmem:[%s13] sm:$0x1]
    %v1362 = vsel %vm114, %v1358, 0.0
    %1363 = vadd.xlane.f32.xlu0 %v1362
    %v1364 = vpop.xlane.xlu0 %1363
    %v1365 = vsel %vm114, %v1359, 0.0
    %1366 = vadd.xlane.f32.xlu0 %v1365
    %v1367 = vpop.xlane.xlu0 %1366
    %v1368 = vmul.f32 %v1364, %v1166
    %v1369 = vmul.f32 %v1367, %v1166
    %v1370 = vsub.f32 %v1358, %v1368
    %v1371 = vsub.f32 %v1359, %v1369
    %v1372 = vmul.f32 %v1370, %v1370
    %v1373 = vmul.f32 %v1371, %v1371
    %v1374 = vsel %vm114, %v1372, 0.0
    %1375 = vadd.xlane.f32.xlu0 %v1374
    %v1376 = vpop.xlane.xlu0 %1375
    %v1377 = vsel %vm114, %v1373, 0.0
    %1378 = vadd.xlane.f32.xlu0 %v1377
    %v1379 = vpop.xlane.xlu0 %1378
    %v1380 = vmul.f32 %v1376, %v1166
    %v1381 = vmul.f32 %v1379, %v1166
    %v1382 = vadd.f32 %v1380, 1e-05
    %v1383 = vadd.f32 %v1381, 1e-05
    %v1384 = vrsqrt.pop %v1382
    %v1385 = vrsqrt.pop %v1383
    %v1386 = vmul.f32 %v1370, %v1384
    %v1387 = vmul.f32 %v1371, %v1385
    %v1389 = vlaneseq
    %v1390 = vshrl.u32 %v1389, 7
    %v1391 = vsub.s32 0, %v1390
    %v1392 = vrot.slane %v1360, %v1391
    %v1394 = vmul.f32 %v1386, %v1392
    %v1395 = vmul.f32 %v1387, %v1392
    %v1397 = vlaneseq
    %v1398 = vshrl.u32 %v1397, 7
    %v1399 = vsub.s32 0, %v1398
    %v1400 = vrot.slane %v1361, %v1399
    %v1402 = vadd.f32 %v1394, %v1400
    %v1403 = vadd.f32 %v1395, %v1400
    %v1404 = vadd.f32 %v1402, %v85
    %v1405 = vadd.f32 %v1403, %v86
    %v1406 = vpack.c.bf16 %v1405, %v1404
    %v1407 = vpack.c.bf16 %v1403, %v1402
    %s1408 = scalar_lea.vmem %s2, 16
    %v1409 = vld [vmem:[%s1408] sm:$0xf]
    %v1410 = vld [vmem:[%s1408 + $0x4] sm:$0xf]
    %v1411 = vld [vmem:[%s1408 + $0x8] sm:$0xf]
    %v1412 = vld [vmem:[%s1408 + $0xc] sm:$0xf]
    %s1413 = scalar_lea.vmem %s3, 1
    %v1414 = vld [vmem:[%s1413] sm:$0x1]
    %v1416 = vlaneseq
    %v1417 = vshrl.u32 %v1416, 7
    %v1418 = vsub.s32 0, %v1417
    %v1419 = vrot.slane %v1414, %v1418
    %v1425 = vunpack.c.l.b16 %v1409
    %v1426 = vunpack.c.l.b16 %v1410
    %v1427 = vunpack.c.l.b16 %v1411
    %v1428 = vunpack.c.l.b16 %v1412
    %v1429 = vpack.c.b16 %v1426, %v1425
    %v1430 = vpack.c.b16 %v1428, %v1427
    %v1434 = vsel %vm114, %v1406, 0
    %v1437 = vsel %vm114, %v1407, 0
    %1439 = vmatprep.subr.bf16.mxu0 0
    %1440 = vmatpush1.bf16.msra.mxu0 0
    %1441 = vmatprep.subr.bf16.mxu0 0
    %1442 = vmatpush1.bf16.msra.mxu0 0
    %1443 = vmatprep.subr.bf16.mxu0 0
    %1444 = vmatpush1.bf16.msra.mxu0 0
    %1445 = vmatprep.subr.bf16.mxu0 0
    %1446 = vmatpush1.bf16.msra.mxu0 0
    %1447 = vmatprep.subr.bf16.mxu0 0
    %1448 = vmatpush1.bf16.msra.mxu0 0
    %1449 = vmatprep.subr.bf16.mxu0 0
    %1450 = vmatpush1.bf16.msra.mxu0 0
    %1451 = vmatprep.subr.bf16.mxu0 0
    %1452 = vmatpush1.bf16.msra.mxu0 %v1430
    %1453 = vmatprep.subr.bf16.mxu0 0
    %1454 = vmatpush1.bf16.msra.mxu0 %v1429
    %1455 = vmatprep.subr.bf16.mxu0 0
    %1456 = vmatpush2.bf16.msra.mxu0 0
    %1457 = vmatprep.subr.bf16.mxu0 0
    %1458 = vmatpush2.bf16.msra.mxu0 0
    %1459 = vmatprep.subr.bf16.mxu0 0
    %1460 = vmatpush2.bf16.msra.mxu0 0
    %1461 = vmatprep.subr.bf16.mxu0 0
    %1462 = vmatpush2.bf16.msra.mxu0 0
    %1463 = vmatprep.subr.bf16.mxu0 0
    %1464 = vmatpush2.bf16.msra.mxu0 0
    %1465 = vmatprep.subr.bf16.mxu0 0
    %1466 = vmatpush2.bf16.msra.mxu0 0
    %1467 = vmatprep.subr.bf16.mxu0 0
    %1468 = vmatpush2.bf16.msra.mxu0 0
    %1469 = vmatprep.subr.bf16.mxu0 0
    %1470 = vmatpush2.bf16.msra.mxu0 0
    %1471 = vmatprep.mubr.bf16.mxu0 0
    %1472 = vmatmul.mubr.bf16.gmra.mxu0 %v1434
    %v1473 = vpop.f32.mrf.mxu0
    %v1474 = vadd.f32 %v1419, %v1473
    %v1475 = vpop.f32.mrf.mxu0
    %v1476 = vpop.f32.mrf.mxu0
    %v1477 = vadd.f32 %v1419, %v1476
    %v1478 = vpop.f32.mrf.mxu0
    %1479 = vmatprep.mubr.bf16.mxu0 0
    %1480 = vmatmul.mubr.bf16.gmra.mxu0 %v1437
    %v1481 = vpop.f32.mrf.mxu0
    %v1482 = vadd.f32 %v1419, %v1481
    %v1483 = vpop.f32.mrf.mxu0
    %v1484 = vpop.f32.mrf.mxu0
    %v1485 = vadd.f32 %v1419, %v1484
    %v1486 = vpop.f32.mrf.mxu0
    %1487 = vdwg.mxu0
    %v1488 = vpack.c.bf16 %v1474, %v1474
    %v1489 = vpack.c.bf16 %v1477, %v1477
    %1491 = vrot.lane.b32.xlu0 %v1488, 96
    %v1492 = vpop.permute.xlu0 %1491
    %v1494 = vsel %vm175, %v1488, 0
    %v1497 = vsel %vm175, %v1492, 0
    %1499 = vmatprep.subr.bf16.mxu0 0
    %1500 = vmatpush1.bf16.xpose.msra.mxu0 0
    %1501 = vmatprep.subr.bf16.mxu0 0
    %1502 = vmatpush1.bf16.xpose.msra.mxu0 0
    %1503 = vmatprep.subr.bf16.mxu0 0
    %1504 = vmatpush1.bf16.xpose.msra.mxu0 0
    %1505 = vmatprep.subr.bf16.mxu0 0
    %1506 = vmatpush1.bf16.xpose.msra.mxu0 0
    %1507 = vmatprep.subr.bf16.mxu0 0
    %1508 = vmatpush1.bf16.xpose.msra.mxu0 0
    %1509 = vmatprep.subr.bf16.mxu0 0
    %1510 = vmatpush1.bf16.xpose.msra.mxu0 0
    %1511 = vmatprep.subr.bf16.mxu0 0
    %1512 = vmatpush1.bf16.xpose.msra.mxu0 0
    %1513 = vmatprep.subr.bf16.mxu0 0
    %1514 = vmatpush1.bf16.xpose.msra.mxu0 %v1497
    %1515 = vmatprep.subr.bf16.mxu0 0
    %1516 = vmatpush2.bf16.xpose.msra.mxu0 0
    %1517 = vmatprep.subr.bf16.mxu0 0
    %1518 = vmatpush2.bf16.xpose.msra.mxu0 0
    %1519 = vmatprep.subr.bf16.mxu0 0
    %1520 = vmatpush2.bf16.xpose.msra.mxu0 0
    %1521 = vmatprep.subr.bf16.mxu0 0
    %1522 = vmatpush2.bf16.xpose.msra.mxu0 0
    %1523 = vmatprep.subr.bf16.mxu0 0
    %1524 = vmatpush2.bf16.xpose.msra.mxu0 0
    %1525 = vmatprep.subr.bf16.mxu0 0
    %1526 = vmatpush2.bf16.xpose.msra.mxu0 0
    %1527 = vmatprep.subr.bf16.mxu0 0
    %1528 = vmatpush2.bf16.xpose.msra.mxu0 0
    %1529 = vmatprep.subr.bf16.mxu0 0
    %1530 = vmatpush2.bf16.xpose.msra.mxu0 0
    %1531 = vmatprep.mubr.bf16.mxu0 0
    %1532 = vmatmul.mubr.bf16.gmra.mxu0 %v1494
    %v1533 = vpop.f32.mrf.mxu0
    %v1534 = vadd.f32 0.0, %v1533
    %v1535 = vpop.f32.mrf.mxu0
    %v1536 = vpop.f32.mrf.mxu0
    %v1537 = vpop.f32.mrf.mxu0
    %1538 = vdwg.mxu0
    %1540 = vrot.lane.b32.xlu0 %v1489, 96
    %v1541 = vpop.permute.xlu0 %1540
    %v1543 = vsel %vm175, %v1489, 0
    %v1546 = vsel %vm175, %v1541, 0
    %1548 = vmatprep.subr.bf16.mxu0 0
    %1549 = vmatpush1.bf16.xpose.msra.mxu0 0
    %1550 = vmatprep.subr.bf16.mxu0 0
    %1551 = vmatpush1.bf16.xpose.msra.mxu0 0
    %1552 = vmatprep.subr.bf16.mxu0 0
    %1553 = vmatpush1.bf16.xpose.msra.mxu0 0
    %1554 = vmatprep.subr.bf16.mxu0 0
    %1555 = vmatpush1.bf16.xpose.msra.mxu0 0
    %1556 = vmatprep.subr.bf16.mxu0 0
    %1557 = vmatpush1.bf16.xpose.msra.mxu0 0
    %1558 = vmatprep.subr.bf16.mxu0 0
    %1559 = vmatpush1.bf16.xpose.msra.mxu0 0
    %1560 = vmatprep.subr.bf16.mxu0 0
    %1561 = vmatpush1.bf16.xpose.msra.mxu0 0
    %1562 = vmatprep.subr.bf16.mxu0 0
    %1563 = vmatpush1.bf16.xpose.msra.mxu0 %v1546
    %1564 = vmatprep.subr.bf16.mxu0 0
    %1565 = vmatpush2.bf16.xpose.msra.mxu0 0
    %1566 = vmatprep.subr.bf16.mxu0 0
    %1567 = vmatpush2.bf16.xpose.msra.mxu0 0
    %1568 = vmatprep.subr.bf16.mxu0 0
    %1569 = vmatpush2.bf16.xpose.msra.mxu0 0
    %1570 = vmatprep.subr.bf16.mxu0 0
    %1571 = vmatpush2.bf16.xpose.msra.mxu0 0
    %1572 = vmatprep.subr.bf16.mxu0 0
    %1573 = vmatpush2.bf16.xpose.msra.mxu0 0
    %1574 = vmatprep.subr.bf16.mxu0 0
    %1575 = vmatpush2.bf16.xpose.msra.mxu0 0
    %1576 = vmatprep.subr.bf16.mxu0 0
    %1577 = vmatpush2.bf16.xpose.msra.mxu0 0
    %1578 = vmatprep.subr.bf16.mxu0 0
    %1579 = vmatpush2.bf16.xpose.msra.mxu0 0
    %1580 = vmatprep.mubr.bf16.mxu0 0
    %1581 = vmatmul.mubr.bf16.gmra.mxu0 %v1543
    %v1582 = vpop.f32.mrf.mxu0
    %v1583 = vadd.f32 0.0, %v1582
    %v1584 = vpop.f32.mrf.mxu0
    %v1585 = vpop.f32.mrf.mxu0
    %v1586 = vpop.f32.mrf.mxu0
    %1587 = vdwg.mxu0
    %v1588 = vsel %vm175, %v1534, -inf
    %1589 = vmax.xlane.f32.xlu0 %v1588
    %v1590 = vpop.xlane.xlu0 %1589
    %v1591 = vsel %vm175, %v1583, -inf
    %1592 = vmax.xlane.f32.xlu0 %v1591
    %v1593 = vpop.xlane.xlu0 %1592
    %v1594 = vsub.f32 %v1534, %v1590
    %v1595 = vsub.f32 %v1583, %v1593
    %v1596 = vmul.f32 %v1594, 1.442695
    %v1597 = vpow.pop %v1596
    %v1598 = vmul.f32 %v1595, 1.442695
    %v1599 = vpow.pop %v1598
    %v1600 = vsel %vm175, %v1597, 0.0
    %1601 = vadd.xlane.f32.xlu0 %v1600
    %v1602 = vpop.xlane.xlu0 %1601
    %v1603 = vsel %vm175, %v1599, 0.0
    %1604 = vadd.xlane.f32.xlu0 %v1603
    %v1605 = vpop.xlane.xlu0 %1604
    %v1606 = vrcp.pop %v1602
    %v1607 = vrcp.pop %v1605
    %v1608 = vmul.f32 %v1597, %v1606
    %v1609 = vmul.f32 %v1599, %v1607
    %v1610 = vpack.c.bf16 %v1608, %v1608
    %v1611 = vpack.c.bf16 %v1609, %v1609
    %v1612 = vpack.c.bf16 %v1482, %v1482
    %v1613 = vpack.c.bf16 %v1485, %v1485
    %1615 = vrot.lane.b32.xlu0 %v1612, 64
    %v1616 = vpop.permute.xlu0 %1615
    %v1618 = vsel %vm175, %v1610, 0
    %v1621 = vsel %vm303, %v1616, 0
    %1623 = vmatprep.subr.bf16.mxu0 0
    %1624 = vmatpush1.bf16.msra.mxu0 0
    %1625 = vmatprep.subr.bf16.mxu0 0
    %1626 = vmatpush1.bf16.msra.mxu0 0
    %1627 = vmatprep.subr.bf16.mxu0 0
    %1628 = vmatpush1.bf16.msra.mxu0 0
    %1629 = vmatprep.subr.bf16.mxu0 0
    %1630 = vmatpush1.bf16.msra.mxu0 0
    %1631 = vmatprep.subr.bf16.mxu0 0
    %1632 = vmatpush1.bf16.msra.mxu0 0
    %1633 = vmatprep.subr.bf16.mxu0 0
    %1634 = vmatpush1.bf16.msra.mxu0 0
    %1635 = vmatprep.subr.bf16.mxu0 0
    %1636 = vmatpush1.bf16.msra.mxu0 0
    %1637 = vmatprep.subr.bf16.mxu0 0
    %1638 = vmatpush1.bf16.msra.mxu0 %v1621
    %1639 = vmatprep.subr.bf16.mxu0 0
    %1640 = vmatpush2.bf16.msra.mxu0 0
    %1641 = vmatprep.subr.bf16.mxu0 0
    %1642 = vmatpush2.bf16.msra.mxu0 0
    %1643 = vmatprep.subr.bf16.mxu0 0
    %1644 = vmatpush2.bf16.msra.mxu0 0
    %1645 = vmatprep.subr.bf16.mxu0 0
    %1646 = vmatpush2.bf16.msra.mxu0 0
    %1647 = vmatprep.subr.bf16.mxu0 0
    %1648 = vmatpush2.bf16.msra.mxu0 0
    %1649 = vmatprep.subr.bf16.mxu0 0
    %1650 = vmatpush2.bf16.msra.mxu0 0
    %1651 = vmatprep.subr.bf16.mxu0 0
    %1652 = vmatpush2.bf16.msra.mxu0 0
    %1653 = vmatprep.subr.bf16.mxu0 0
    %1654 = vmatpush2.bf16.msra.mxu0 0
    %1655 = vmatprep.mubr.bf16.mxu0 0
    %1656 = vmatmul.mubr.bf16.gmra.mxu0 %v1618
    %v1657 = vpop.f32.mrf.mxu0
    %v1658 = vadd.f32 0.0, %v1657
    %v1659 = vpop.f32.mrf.mxu0
    %v1660 = vpop.f32.mrf.mxu0
    %v1661 = vpop.f32.mrf.mxu0
    %1662 = vdwg.mxu0
    %1664 = vrot.lane.b32.xlu0 %v1613, 64
    %v1665 = vpop.permute.xlu0 %1664
    %v1667 = vsel %vm175, %v1611, 0
    %v1670 = vsel %vm303, %v1665, 0
    %1672 = vmatprep.subr.bf16.mxu0 0
    %1673 = vmatpush1.bf16.msra.mxu0 0
    %1674 = vmatprep.subr.bf16.mxu0 0
    %1675 = vmatpush1.bf16.msra.mxu0 0
    %1676 = vmatprep.subr.bf16.mxu0 0
    %1677 = vmatpush1.bf16.msra.mxu0 0
    %1678 = vmatprep.subr.bf16.mxu0 0
    %1679 = vmatpush1.bf16.msra.mxu0 0
    %1680 = vmatprep.subr.bf16.mxu0 0
    %1681 = vmatpush1.bf16.msra.mxu0 0
    %1682 = vmatprep.subr.bf16.mxu0 0
    %1683 = vmatpush1.bf16.msra.mxu0 0
    %1684 = vmatprep.subr.bf16.mxu0 0
    %1685 = vmatpush1.bf16.msra.mxu0 0
    %1686 = vmatprep.subr.bf16.mxu0 0
    %1687 = vmatpush1.bf16.msra.mxu0 %v1670
    %1688 = vmatprep.subr.bf16.mxu0 0
    %1689 = vmatpush2.bf16.msra.mxu0 0
    %1690 = vmatprep.subr.bf16.mxu0 0
    %1691 = vmatpush2.bf16.msra.mxu0 0
    %1692 = vmatprep.subr.bf16.mxu0 0
    %1693 = vmatpush2.bf16.msra.mxu0 0
    %1694 = vmatprep.subr.bf16.mxu0 0
    %1695 = vmatpush2.bf16.msra.mxu0 0
    %1696 = vmatprep.subr.bf16.mxu0 0
    %1697 = vmatpush2.bf16.msra.mxu0 0
    %1698 = vmatprep.subr.bf16.mxu0 0
    %1699 = vmatpush2.bf16.msra.mxu0 0
    %1700 = vmatprep.subr.bf16.mxu0 0
    %1701 = vmatpush2.bf16.msra.mxu0 0
    %1702 = vmatprep.subr.bf16.mxu0 0
    %1703 = vmatpush2.bf16.msra.mxu0 0
    %1704 = vmatprep.mubr.bf16.mxu0 0
    %1705 = vmatmul.mubr.bf16.gmra.mxu0 %v1667
    %v1706 = vpop.f32.mrf.mxu0
    %v1707 = vadd.f32 0.0, %v1706
    %v1708 = vpop.f32.mrf.mxu0
    %v1709 = vpop.f32.mrf.mxu0
    %v1710 = vpop.f32.mrf.mxu0
    %1711 = vdwg.mxu0
    %1712 = vrot.lane.b32.xlu0 %v1488, 120
    %v1713 = vpop.permute.xlu0 %1712
    %1714 = vrot.lane.b32.xlu0 %v1488, 88
    %v1715 = vpop.permute.xlu0 %1714
    %v1717 = vsel %vm175, %v1713, 0
    %v1720 = vsel %vm175, %v1715, 0
    %1722 = vmatprep.subr.bf16.mxu0 0
    %1723 = vmatpush1.bf16.xpose.msra.mxu0 0
    %1724 = vmatprep.subr.bf16.mxu0 0
    %1725 = vmatpush1.bf16.xpose.msra.mxu0 0
    %1726 = vmatprep.subr.bf16.mxu0 0
    %1727 = vmatpush1.bf16.xpose.msra.mxu0 0
    %1728 = vmatprep.subr.bf16.mxu0 0
    %1729 = vmatpush1.bf16.xpose.msra.mxu0 0
    %1730 = vmatprep.subr.bf16.mxu0 0
    %1731 = vmatpush1.bf16.xpose.msra.mxu0 0
    %1732 = vmatprep.subr.bf16.mxu0 0
    %1733 = vmatpush1.bf16.xpose.msra.mxu0 0
    %1734 = vmatprep.subr.bf16.mxu0 0
    %1735 = vmatpush1.bf16.xpose.msra.mxu0 0
    %1736 = vmatprep.subr.bf16.mxu0 0
    %1737 = vmatpush1.bf16.xpose.msra.mxu0 %v1720
    %1738 = vmatprep.subr.bf16.mxu0 0
    %1739 = vmatpush2.bf16.xpose.msra.mxu0 0
    %1740 = vmatprep.subr.bf16.mxu0 0
    %1741 = vmatpush2.bf16.xpose.msra.mxu0 0
    %1742 = vmatprep.subr.bf16.mxu0 0
    %1743 = vmatpush2.bf16.xpose.msra.mxu0 0
    %1744 = vmatprep.subr.bf16.mxu0 0
    %1745 = vmatpush2.bf16.xpose.msra.mxu0 0
    %1746 = vmatprep.subr.bf16.mxu0 0
    %1747 = vmatpush2.bf16.xpose.msra.mxu0 0
    %1748 = vmatprep.subr.bf16.mxu0 0
    %1749 = vmatpush2.bf16.xpose.msra.mxu0 0
    %1750 = vmatprep.subr.bf16.mxu0 0
    %1751 = vmatpush2.bf16.xpose.msra.mxu0 0
    %1752 = vmatprep.subr.bf16.mxu0 0
    %1753 = vmatpush2.bf16.xpose.msra.mxu0 0
    %1754 = vmatprep.mubr.bf16.mxu0 0
    %1755 = vmatmul.mubr.bf16.gmra.mxu0 %v1717
    %v1756 = vpop.f32.mrf.mxu0
    %v1757 = vadd.f32 0.0, %v1756
    %v1758 = vpop.f32.mrf.mxu0
    %v1759 = vpop.f32.mrf.mxu0
    %v1760 = vpop.f32.mrf.mxu0
    %1761 = vdwg.mxu0
    %1762 = vrot.lane.b32.xlu0 %v1489, 120
    %v1763 = vpop.permute.xlu0 %1762
    %1764 = vrot.lane.b32.xlu0 %v1489, 88
    %v1765 = vpop.permute.xlu0 %1764
    %v1767 = vsel %vm175, %v1763, 0
    %v1770 = vsel %vm175, %v1765, 0
    %1772 = vmatprep.subr.bf16.mxu0 0
    %1773 = vmatpush1.bf16.xpose.msra.mxu0 0
    %1774 = vmatprep.subr.bf16.mxu0 0
    %1775 = vmatpush1.bf16.xpose.msra.mxu0 0
    %1776 = vmatprep.subr.bf16.mxu0 0
    %1777 = vmatpush1.bf16.xpose.msra.mxu0 0
    %1778 = vmatprep.subr.bf16.mxu0 0
    %1779 = vmatpush1.bf16.xpose.msra.mxu0 0
    %1780 = vmatprep.subr.bf16.mxu0 0
    %1781 = vmatpush1.bf16.xpose.msra.mxu0 0
    %1782 = vmatprep.subr.bf16.mxu0 0
    %1783 = vmatpush1.bf16.xpose.msra.mxu0 0
    %1784 = vmatprep.subr.bf16.mxu0 0
    %1785 = vmatpush1.bf16.xpose.msra.mxu0 0
    %1786 = vmatprep.subr.bf16.mxu0 0
    %1787 = vmatpush1.bf16.xpose.msra.mxu0 %v1770
    %1788 = vmatprep.subr.bf16.mxu0 0
    %1789 = vmatpush2.bf16.xpose.msra.mxu0 0
    %1790 = vmatprep.subr.bf16.mxu0 0
    %1791 = vmatpush2.bf16.xpose.msra.mxu0 0
    %1792 = vmatprep.subr.bf16.mxu0 0
    %1793 = vmatpush2.bf16.xpose.msra.mxu0 0
    %1794 = vmatprep.subr.bf16.mxu0 0
    %1795 = vmatpush2.bf16.xpose.msra.mxu0 0
    %1796 = vmatprep.subr.bf16.mxu0 0
    %1797 = vmatpush2.bf16.xpose.msra.mxu0 0
    %1798 = vmatprep.subr.bf16.mxu0 0
    %1799 = vmatpush2.bf16.xpose.msra.mxu0 0
    %1800 = vmatprep.subr.bf16.mxu0 0
    %1801 = vmatpush2.bf16.xpose.msra.mxu0 0
    %1802 = vmatprep.subr.bf16.mxu0 0
    %1803 = vmatpush2.bf16.xpose.msra.mxu0 0
    %1804 = vmatprep.mubr.bf16.mxu0 0
    %1805 = vmatmul.mubr.bf16.gmra.mxu0 %v1767
    %v1806 = vpop.f32.mrf.mxu0
    %v1807 = vadd.f32 0.0, %v1806
    %v1808 = vpop.f32.mrf.mxu0
    %v1809 = vpop.f32.mrf.mxu0
    %v1810 = vpop.f32.mrf.mxu0
    %1811 = vdwg.mxu0
    %v1812 = vsel %vm175, %v1757, -inf
    %1813 = vmax.xlane.f32.xlu0 %v1812
    %v1814 = vpop.xlane.xlu0 %1813
    %v1815 = vsel %vm175, %v1807, -inf
    %1816 = vmax.xlane.f32.xlu0 %v1815
    %v1817 = vpop.xlane.xlu0 %1816
    %v1818 = vsub.f32 %v1757, %v1814
    %v1819 = vsub.f32 %v1807, %v1817
    %v1820 = vmul.f32 %v1818, 1.442695
    %v1821 = vpow.pop %v1820
    %v1822 = vmul.f32 %v1819, 1.442695
    %v1823 = vpow.pop %v1822
    %v1824 = vsel %vm175, %v1821, 0.0
    %1825 = vadd.xlane.f32.xlu0 %v1824
    %v1826 = vpop.xlane.xlu0 %1825
    %v1827 = vsel %vm175, %v1823, 0.0
    %1828 = vadd.xlane.f32.xlu0 %v1827
    %v1829 = vpop.xlane.xlu0 %1828
    %v1830 = vrcp.pop %v1826
    %v1831 = vrcp.pop %v1829
    %v1832 = vmul.f32 %v1821, %v1830
    %v1833 = vmul.f32 %v1823, %v1831
    %v1834 = vpack.c.bf16 %v1832, %v1832
    %v1835 = vpack.c.bf16 %v1833, %v1833
    %1836 = vrot.lane.b32.xlu0 %v1612, 56
    %v1837 = vpop.permute.xlu0 %1836
    %v1839 = vsel %vm175, %v1834, 0
    %v1842 = vsel %vm303, %v1837, 0
    %1844 = vmatprep.subr.bf16.mxu0 0
    %1845 = vmatpush1.bf16.msra.mxu0 0
    %1846 = vmatprep.subr.bf16.mxu0 0
    %1847 = vmatpush1.bf16.msra.mxu0 0
    %1848 = vmatprep.subr.bf16.mxu0 0
    %1849 = vmatpush1.bf16.msra.mxu0 0
    %1850 = vmatprep.subr.bf16.mxu0 0
    %1851 = vmatpush1.bf16.msra.mxu0 0
    %1852 = vmatprep.subr.bf16.mxu0 0
    %1853 = vmatpush1.bf16.msra.mxu0 0
    %1854 = vmatprep.subr.bf16.mxu0 0
    %1855 = vmatpush1.bf16.msra.mxu0 0
    %1856 = vmatprep.subr.bf16.mxu0 0
    %1857 = vmatpush1.bf16.msra.mxu0 0
    %1858 = vmatprep.subr.bf16.mxu0 0
    %1859 = vmatpush1.bf16.msra.mxu0 %v1842
    %1860 = vmatprep.subr.bf16.mxu0 0
    %1861 = vmatpush2.bf16.msra.mxu0 0
    %1862 = vmatprep.subr.bf16.mxu0 0
    %1863 = vmatpush2.bf16.msra.mxu0 0
    %1864 = vmatprep.subr.bf16.mxu0 0
    %1865 = vmatpush2.bf16.msra.mxu0 0
    %1866 = vmatprep.subr.bf16.mxu0 0
    %1867 = vmatpush2.bf16.msra.mxu0 0
    %1868 = vmatprep.subr.bf16.mxu0 0
    %1869 = vmatpush2.bf16.msra.mxu0 0
    %1870 = vmatprep.subr.bf16.mxu0 0
    %1871 = vmatpush2.bf16.msra.mxu0 0
    %1872 = vmatprep.subr.bf16.mxu0 0
    %1873 = vmatpush2.bf16.msra.mxu0 0
    %1874 = vmatprep.subr.bf16.mxu0 0
    %1875 = vmatpush2.bf16.msra.mxu0 0
    %1876 = vmatprep.mubr.bf16.mxu0 0
    %1877 = vmatmul.mubr.bf16.gmra.mxu0 %v1839
    %v1878 = vpop.f32.mrf.mxu0
    %v1879 = vadd.f32 0.0, %v1878
    %v1880 = vpop.f32.mrf.mxu0
    %v1881 = vpop.f32.mrf.mxu0
    %v1882 = vpop.f32.mrf.mxu0
    %1883 = vdwg.mxu0
    %1884 = vrot.lane.b32.xlu0 %v1613, 56
    %v1885 = vpop.permute.xlu0 %1884
    %v1887 = vsel %vm175, %v1835, 0
    %v1890 = vsel %vm303, %v1885, 0
    %1892 = vmatprep.subr.bf16.mxu0 0
    %1893 = vmatpush1.bf16.msra.mxu0 0
    %1894 = vmatprep.subr.bf16.mxu0 0
    %1895 = vmatpush1.bf16.msra.mxu0 0
    %1896 = vmatprep.subr.bf16.mxu0 0
    %1897 = vmatpush1.bf16.msra.mxu0 0
    %1898 = vmatprep.subr.bf16.mxu0 0
    %1899 = vmatpush1.bf16.msra.mxu0 0
    %1900 = vmatprep.subr.bf16.mxu0 0
    %1901 = vmatpush1.bf16.msra.mxu0 0
    %1902 = vmatprep.subr.bf16.mxu0 0
    %1903 = vmatpush1.bf16.msra.mxu0 0
    %1904 = vmatprep.subr.bf16.mxu0 0
    %1905 = vmatpush1.bf16.msra.mxu0 0
    %1906 = vmatprep.subr.bf16.mxu0 0
    %1907 = vmatpush1.bf16.msra.mxu0 %v1890
    %1908 = vmatprep.subr.bf16.mxu0 0
    %1909 = vmatpush2.bf16.msra.mxu0 0
    %1910 = vmatprep.subr.bf16.mxu0 0
    %1911 = vmatpush2.bf16.msra.mxu0 0
    %1912 = vmatprep.subr.bf16.mxu0 0
    %1913 = vmatpush2.bf16.msra.mxu0 0
    %1914 = vmatprep.subr.bf16.mxu0 0
    %1915 = vmatpush2.bf16.msra.mxu0 0
    %1916 = vmatprep.subr.bf16.mxu0 0
    %1917 = vmatpush2.bf16.msra.mxu0 0
    %1918 = vmatprep.subr.bf16.mxu0 0
    %1919 = vmatpush2.bf16.msra.mxu0 0
    %1920 = vmatprep.subr.bf16.mxu0 0
    %1921 = vmatpush2.bf16.msra.mxu0 0
    %1922 = vmatprep.subr.bf16.mxu0 0
    %1923 = vmatpush2.bf16.msra.mxu0 0
    %1924 = vmatprep.mubr.bf16.mxu0 0
    %1925 = vmatmul.mubr.bf16.gmra.mxu0 %v1887
    %v1926 = vpop.f32.mrf.mxu0
    %v1927 = vadd.f32 0.0, %v1926
    %v1928 = vpop.f32.mrf.mxu0
    %v1929 = vpop.f32.mrf.mxu0
    %v1930 = vpop.f32.mrf.mxu0
    %1931 = vdwg.mxu0
    %1932 = vrot.lane.b32.xlu0 %v1488, 112
    %v1933 = vpop.permute.xlu0 %1932
    %1934 = vrot.lane.b32.xlu0 %v1488, 80
    %v1935 = vpop.permute.xlu0 %1934
    %v1937 = vsel %vm175, %v1933, 0
    %v1940 = vsel %vm175, %v1935, 0
    %1942 = vmatprep.subr.bf16.mxu0 0
    %1943 = vmatpush1.bf16.xpose.msra.mxu0 0
    %1944 = vmatprep.subr.bf16.mxu0 0
    %1945 = vmatpush1.bf16.xpose.msra.mxu0 0
    %1946 = vmatprep.subr.bf16.mxu0 0
    %1947 = vmatpush1.bf16.xpose.msra.mxu0 0
    %1948 = vmatprep.subr.bf16.mxu0 0
    %1949 = vmatpush1.bf16.xpose.msra.mxu0 0
    %1950 = vmatprep.subr.bf16.mxu0 0
    %1951 = vmatpush1.bf16.xpose.msra.mxu0 0
    %1952 = vmatprep.subr.bf16.mxu0 0
    %1953 = vmatpush1.bf16.xpose.msra.mxu0 0
    %1954 = vmatprep.subr.bf16.mxu0 0
    %1955 = vmatpush1.bf16.xpose.msra.mxu0 0
    %1956 = vmatprep.subr.bf16.mxu0 0
    %1957 = vmatpush1.bf16.xpose.msra.mxu0 %v1940
    %1958 = vmatprep.subr.bf16.mxu0 0
    %1959 = vmatpush2.bf16.xpose.msra.mxu0 0
    %1960 = vmatprep.subr.bf16.mxu0 0
    %1961 = vmatpush2.bf16.xpose.msra.mxu0 0
    %1962 = vmatprep.subr.bf16.mxu0 0
    %1963 = vmatpush2.bf16.xpose.msra.mxu0 0
    %1964 = vmatprep.subr.bf16.mxu0 0
    %1965 = vmatpush2.bf16.xpose.msra.mxu0 0
    %1966 = vmatprep.subr.bf16.mxu0 0
    %1967 = vmatpush2.bf16.xpose.msra.mxu0 0
    %1968 = vmatprep.subr.bf16.mxu0 0
    %1969 = vmatpush2.bf16.xpose.msra.mxu0 0
    %1970 = vmatprep.subr.bf16.mxu0 0
    %1971 = vmatpush2.bf16.xpose.msra.mxu0 0
    %1972 = vmatprep.subr.bf16.mxu0 0
    %1973 = vmatpush2.bf16.xpose.msra.mxu0 0
    %1974 = vmatprep.mubr.bf16.mxu0 0
    %1975 = vmatmul.mubr.bf16.gmra.mxu0 %v1937
    %v1976 = vpop.f32.mrf.mxu0
    %v1977 = vadd.f32 0.0, %v1976
    %v1978 = vpop.f32.mrf.mxu0
    %v1979 = vpop.f32.mrf.mxu0
    %v1980 = vpop.f32.mrf.mxu0
    %1981 = vdwg.mxu0
    %1982 = vrot.lane.b32.xlu0 %v1489, 112
    %v1983 = vpop.permute.xlu0 %1982
    %1984 = vrot.lane.b32.xlu0 %v1489, 80
    %v1985 = vpop.permute.xlu0 %1984
    %v1987 = vsel %vm175, %v1983, 0
    %v1990 = vsel %vm175, %v1985, 0
    %1992 = vmatprep.subr.bf16.mxu0 0
    %1993 = vmatpush1.bf16.xpose.msra.mxu0 0
    %1994 = vmatprep.subr.bf16.mxu0 0
    %1995 = vmatpush1.bf16.xpose.msra.mxu0 0
    %1996 = vmatprep.subr.bf16.mxu0 0
    %1997 = vmatpush1.bf16.xpose.msra.mxu0 0
    %1998 = vmatprep.subr.bf16.mxu0 0
    %1999 = vmatpush1.bf16.xpose.msra.mxu0 0
    %2000 = vmatprep.subr.bf16.mxu0 0
    %2001 = vmatpush1.bf16.xpose.msra.mxu0 0
    %2002 = vmatprep.subr.bf16.mxu0 0
    %2003 = vmatpush1.bf16.xpose.msra.mxu0 0
    %2004 = vmatprep.subr.bf16.mxu0 0
    %2005 = vmatpush1.bf16.xpose.msra.mxu0 0
    %2006 = vmatprep.subr.bf16.mxu0 0
    %2007 = vmatpush1.bf16.xpose.msra.mxu0 %v1990
    %2008 = vmatprep.subr.bf16.mxu0 0
    %2009 = vmatpush2.bf16.xpose.msra.mxu0 0
    %2010 = vmatprep.subr.bf16.mxu0 0
    %2011 = vmatpush2.bf16.xpose.msra.mxu0 0
    %2012 = vmatprep.subr.bf16.mxu0 0
    %2013 = vmatpush2.bf16.xpose.msra.mxu0 0
    %2014 = vmatprep.subr.bf16.mxu0 0
    %2015 = vmatpush2.bf16.xpose.msra.mxu0 0
    %2016 = vmatprep.subr.bf16.mxu0 0
    %2017 = vmatpush2.bf16.xpose.msra.mxu0 0
    %2018 = vmatprep.subr.bf16.mxu0 0
    %2019 = vmatpush2.bf16.xpose.msra.mxu0 0
    %2020 = vmatprep.subr.bf16.mxu0 0
    %2021 = vmatpush2.bf16.xpose.msra.mxu0 0
    %2022 = vmatprep.subr.bf16.mxu0 0
    %2023 = vmatpush2.bf16.xpose.msra.mxu0 0
    %2024 = vmatprep.mubr.bf16.mxu0 0
    %2025 = vmatmul.mubr.bf16.gmra.mxu0 %v1987
    %v2026 = vpop.f32.mrf.mxu0
    %v2027 = vadd.f32 0.0, %v2026
    %v2028 = vpop.f32.mrf.mxu0
    %v2029 = vpop.f32.mrf.mxu0
    %v2030 = vpop.f32.mrf.mxu0
    %2031 = vdwg.mxu0
    %v2032 = vsel %vm175, %v1977, -inf
    %2033 = vmax.xlane.f32.xlu0 %v2032
    %v2034 = vpop.xlane.xlu0 %2033
    %v2035 = vsel %vm175, %v2027, -inf
    %2036 = vmax.xlane.f32.xlu0 %v2035
    %v2037 = vpop.xlane.xlu0 %2036
    %v2038 = vsub.f32 %v1977, %v2034
    %v2039 = vsub.f32 %v2027, %v2037
    %v2040 = vmul.f32 %v2038, 1.442695
    %v2041 = vpow.pop %v2040
    %v2042 = vmul.f32 %v2039, 1.442695
    %v2043 = vpow.pop %v2042
    %v2044 = vsel %vm175, %v2041, 0.0
    %2045 = vadd.xlane.f32.xlu0 %v2044
    %v2046 = vpop.xlane.xlu0 %2045
    %v2047 = vsel %vm175, %v2043, 0.0
    %2048 = vadd.xlane.f32.xlu0 %v2047
    %v2049 = vpop.xlane.xlu0 %2048
    %v2050 = vrcp.pop %v2046
    %v2051 = vrcp.pop %v2049
    %v2052 = vmul.f32 %v2041, %v2050
    %v2053 = vmul.f32 %v2043, %v2051
    %v2054 = vpack.c.bf16 %v2052, %v2052
    %v2055 = vpack.c.bf16 %v2053, %v2053
    %2056 = vrot.lane.b32.xlu0 %v1612, 48
    %v2057 = vpop.permute.xlu0 %2056
    %v2059 = vsel %vm175, %v2054, 0
    %v2062 = vsel %vm303, %v2057, 0
    %2064 = vmatprep.subr.bf16.mxu0 0
    %2065 = vmatpush1.bf16.msra.mxu0 0
    %2066 = vmatprep.subr.bf16.mxu0 0
    %2067 = vmatpush1.bf16.msra.mxu0 0
    %2068 = vmatprep.subr.bf16.mxu0 0
    %2069 = vmatpush1.bf16.msra.mxu0 0
    %2070 = vmatprep.subr.bf16.mxu0 0
    %2071 = vmatpush1.bf16.msra.mxu0 0
    %2072 = vmatprep.subr.bf16.mxu0 0
    %2073 = vmatpush1.bf16.msra.mxu0 0
    %2074 = vmatprep.subr.bf16.mxu0 0
    %2075 = vmatpush1.bf16.msra.mxu0 0
    %2076 = vmatprep.subr.bf16.mxu0 0
    %2077 = vmatpush1.bf16.msra.mxu0 0
    %2078 = vmatprep.subr.bf16.mxu0 0
    %2079 = vmatpush1.bf16.msra.mxu0 %v2062
    %2080 = vmatprep.subr.bf16.mxu0 0
    %2081 = vmatpush2.bf16.msra.mxu0 0
    %2082 = vmatprep.subr.bf16.mxu0 0
    %2083 = vmatpush2.bf16.msra.mxu0 0
    %2084 = vmatprep.subr.bf16.mxu0 0
    %2085 = vmatpush2.bf16.msra.mxu0 0
    %2086 = vmatprep.subr.bf16.mxu0 0
    %2087 = vmatpush2.bf16.msra.mxu0 0
    %2088 = vmatprep.subr.bf16.mxu0 0
    %2089 = vmatpush2.bf16.msra.mxu0 0
    %2090 = vmatprep.subr.bf16.mxu0 0
    %2091 = vmatpush2.bf16.msra.mxu0 0
    %2092 = vmatprep.subr.bf16.mxu0 0
    %2093 = vmatpush2.bf16.msra.mxu0 0
    %2094 = vmatprep.subr.bf16.mxu0 0
    %2095 = vmatpush2.bf16.msra.mxu0 0
    %2096 = vmatprep.mubr.bf16.mxu0 0
    %2097 = vmatmul.mubr.bf16.gmra.mxu0 %v2059
    %v2098 = vpop.f32.mrf.mxu0
    %v2099 = vadd.f32 0.0, %v2098
    %v2100 = vpop.f32.mrf.mxu0
    %v2101 = vpop.f32.mrf.mxu0
    %v2102 = vpop.f32.mrf.mxu0
    %2103 = vdwg.mxu0
    %2104 = vrot.lane.b32.xlu0 %v1613, 48
    %v2105 = vpop.permute.xlu0 %2104
    %v2107 = vsel %vm175, %v2055, 0
    %v2110 = vsel %vm303, %v2105, 0
    %2112 = vmatprep.subr.bf16.mxu0 0
    %2113 = vmatpush1.bf16.msra.mxu0 0
    %2114 = vmatprep.subr.bf16.mxu0 0
    %2115 = vmatpush1.bf16.msra.mxu0 0
    %2116 = vmatprep.subr.bf16.mxu0 0
    %2117 = vmatpush1.bf16.msra.mxu0 0
    %2118 = vmatprep.subr.bf16.mxu0 0
    %2119 = vmatpush1.bf16.msra.mxu0 0
    %2120 = vmatprep.subr.bf16.mxu0 0
    %2121 = vmatpush1.bf16.msra.mxu0 0
    %2122 = vmatprep.subr.bf16.mxu0 0
    %2123 = vmatpush1.bf16.msra.mxu0 0
    %2124 = vmatprep.subr.bf16.mxu0 0
    %2125 = vmatpush1.bf16.msra.mxu0 0
    %2126 = vmatprep.subr.bf16.mxu0 0
    %2127 = vmatpush1.bf16.msra.mxu0 %v2110
    %2128 = vmatprep.subr.bf16.mxu0 0
    %2129 = vmatpush2.bf16.msra.mxu0 0
    %2130 = vmatprep.subr.bf16.mxu0 0
    %2131 = vmatpush2.bf16.msra.mxu0 0
    %2132 = vmatprep.subr.bf16.mxu0 0
    %2133 = vmatpush2.bf16.msra.mxu0 0
    %2134 = vmatprep.subr.bf16.mxu0 0
    %2135 = vmatpush2.bf16.msra.mxu0 0
    %2136 = vmatprep.subr.bf16.mxu0 0
    %2137 = vmatpush2.bf16.msra.mxu0 0
    %2138 = vmatprep.subr.bf16.mxu0 0
    %2139 = vmatpush2.bf16.msra.mxu0 0
    %2140 = vmatprep.subr.bf16.mxu0 0
    %2141 = vmatpush2.bf16.msra.mxu0 0
    %2142 = vmatprep.subr.bf16.mxu0 0
    %2143 = vmatpush2.bf16.msra.mxu0 0
    %2144 = vmatprep.mubr.bf16.mxu0 0
    %2145 = vmatmul.mubr.bf16.gmra.mxu0 %v2107
    %v2146 = vpop.f32.mrf.mxu0
    %v2147 = vadd.f32 0.0, %v2146
    %v2148 = vpop.f32.mrf.mxu0
    %v2149 = vpop.f32.mrf.mxu0
    %v2150 = vpop.f32.mrf.mxu0
    %2151 = vdwg.mxu0
    %2152 = vrot.lane.b32.xlu0 %v1488, 104
    %v2153 = vpop.permute.xlu0 %2152
    %2154 = vrot.lane.b32.xlu0 %v1488, 72
    %v2155 = vpop.permute.xlu0 %2154
    %v2157 = vsel %vm175, %v2153, 0
    %v2160 = vsel %vm175, %v2155, 0
    %2162 = vmatprep.subr.bf16.mxu0 0
    %2163 = vmatpush1.bf16.xpose.msra.mxu0 0
    %2164 = vmatprep.subr.bf16.mxu0 0
    %2165 = vmatpush1.bf16.xpose.msra.mxu0 0
    %2166 = vmatprep.subr.bf16.mxu0 0
    %2167 = vmatpush1.bf16.xpose.msra.mxu0 0
    %2168 = vmatprep.subr.bf16.mxu0 0
    %2169 = vmatpush1.bf16.xpose.msra.mxu0 0
    %2170 = vmatprep.subr.bf16.mxu0 0
    %2171 = vmatpush1.bf16.xpose.msra.mxu0 0
    %2172 = vmatprep.subr.bf16.mxu0 0
    %2173 = vmatpush1.bf16.xpose.msra.mxu0 0
    %2174 = vmatprep.subr.bf16.mxu0 0
    %2175 = vmatpush1.bf16.xpose.msra.mxu0 0
    %2176 = vmatprep.subr.bf16.mxu0 0
    %2177 = vmatpush1.bf16.xpose.msra.mxu0 %v2160
    %2178 = vmatprep.subr.bf16.mxu0 0
    %2179 = vmatpush2.bf16.xpose.msra.mxu0 0
    %2180 = vmatprep.subr.bf16.mxu0 0
    %2181 = vmatpush2.bf16.xpose.msra.mxu0 0
    %2182 = vmatprep.subr.bf16.mxu0 0
    %2183 = vmatpush2.bf16.xpose.msra.mxu0 0
    %2184 = vmatprep.subr.bf16.mxu0 0
    %2185 = vmatpush2.bf16.xpose.msra.mxu0 0
    %2186 = vmatprep.subr.bf16.mxu0 0
    %2187 = vmatpush2.bf16.xpose.msra.mxu0 0
    %2188 = vmatprep.subr.bf16.mxu0 0
    %2189 = vmatpush2.bf16.xpose.msra.mxu0 0
    %2190 = vmatprep.subr.bf16.mxu0 0
    %2191 = vmatpush2.bf16.xpose.msra.mxu0 0
    %2192 = vmatprep.subr.bf16.mxu0 0
    %2193 = vmatpush2.bf16.xpose.msra.mxu0 0
    %2194 = vmatprep.mubr.bf16.mxu0 0
    %2195 = vmatmul.mubr.bf16.gmra.mxu0 %v2157
    %v2196 = vpop.f32.mrf.mxu0
    %v2197 = vadd.f32 0.0, %v2196
    %v2198 = vpop.f32.mrf.mxu0
    %v2199 = vpop.f32.mrf.mxu0
    %v2200 = vpop.f32.mrf.mxu0
    %2201 = vdwg.mxu0
    %2202 = vrot.lane.b32.xlu0 %v1489, 104
    %v2203 = vpop.permute.xlu0 %2202
    %2204 = vrot.lane.b32.xlu0 %v1489, 72
    %v2205 = vpop.permute.xlu0 %2204
    %v2207 = vsel %vm175, %v2203, 0
    %v2210 = vsel %vm175, %v2205, 0
    %2212 = vmatprep.subr.bf16.mxu0 0
    %2213 = vmatpush1.bf16.xpose.msra.mxu0 0
    %2214 = vmatprep.subr.bf16.mxu0 0
    %2215 = vmatpush1.bf16.xpose.msra.mxu0 0
    %2216 = vmatprep.subr.bf16.mxu0 0
    %2217 = vmatpush1.bf16.xpose.msra.mxu0 0
    %2218 = vmatprep.subr.bf16.mxu0 0
    %2219 = vmatpush1.bf16.xpose.msra.mxu0 0
    %2220 = vmatprep.subr.bf16.mxu0 0
    %2221 = vmatpush1.bf16.xpose.msra.mxu0 0
    %2222 = vmatprep.subr.bf16.mxu0 0
    %2223 = vmatpush1.bf16.xpose.msra.mxu0 0
    %2224 = vmatprep.subr.bf16.mxu0 0
    %2225 = vmatpush1.bf16.xpose.msra.mxu0 0
    %2226 = vmatprep.subr.bf16.mxu0 0
    %2227 = vmatpush1.bf16.xpose.msra.mxu0 %v2210
    %2228 = vmatprep.subr.bf16.mxu0 0
    %2229 = vmatpush2.bf16.xpose.msra.mxu0 0
    %2230 = vmatprep.subr.bf16.mxu0 0
    %2231 = vmatpush2.bf16.xpose.msra.mxu0 0
    %2232 = vmatprep.subr.bf16.mxu0 0
    %2233 = vmatpush2.bf16.xpose.msra.mxu0 0
    %2234 = vmatprep.subr.bf16.mxu0 0
    %2235 = vmatpush2.bf16.xpose.msra.mxu0 0
    %2236 = vmatprep.subr.bf16.mxu0 0
    %2237 = vmatpush2.bf16.xpose.msra.mxu0 0
    %2238 = vmatprep.subr.bf16.mxu0 0
    %2239 = vmatpush2.bf16.xpose.msra.mxu0 0
    %2240 = vmatprep.subr.bf16.mxu0 0
    %2241 = vmatpush2.bf16.xpose.msra.mxu0 0
    %2242 = vmatprep.subr.bf16.mxu0 0
    %2243 = vmatpush2.bf16.xpose.msra.mxu0 0
    %2244 = vmatprep.mubr.bf16.mxu0 0
    %2245 = vmatmul.mubr.bf16.gmra.mxu0 %v2207
    %v2246 = vpop.f32.mrf.mxu0
    %v2247 = vadd.f32 0.0, %v2246
    %v2248 = vpop.f32.mrf.mxu0
    %v2249 = vpop.f32.mrf.mxu0
    %v2250 = vpop.f32.mrf.mxu0
    %2251 = vdwg.mxu0
    %v2252 = vsel %vm175, %v2197, -inf
    %2253 = vmax.xlane.f32.xlu0 %v2252
    %v2254 = vpop.xlane.xlu0 %2253
    %v2255 = vsel %vm175, %v2247, -inf
    %2256 = vmax.xlane.f32.xlu0 %v2255
    %v2257 = vpop.xlane.xlu0 %2256
    %v2258 = vsub.f32 %v2197, %v2254
    %v2259 = vsub.f32 %v2247, %v2257
    %v2260 = vmul.f32 %v2258, 1.442695
    %v2261 = vpow.pop %v2260
    %v2262 = vmul.f32 %v2259, 1.442695
    %v2263 = vpow.pop %v2262
    %v2264 = vsel %vm175, %v2261, 0.0
    %2265 = vadd.xlane.f32.xlu0 %v2264
    %v2266 = vpop.xlane.xlu0 %2265
    %v2267 = vsel %vm175, %v2263, 0.0
    %2268 = vadd.xlane.f32.xlu0 %v2267
    %v2269 = vpop.xlane.xlu0 %2268
    %v2270 = vrcp.pop %v2266
    %v2271 = vrcp.pop %v2269
    %v2272 = vmul.f32 %v2261, %v2270
    %v2273 = vmul.f32 %v2263, %v2271
    %v2274 = vpack.c.bf16 %v2272, %v2272
    %v2275 = vpack.c.bf16 %v2273, %v2273
    %2276 = vrot.lane.b32.xlu0 %v1612, 40
    %v2277 = vpop.permute.xlu0 %2276
    %v2279 = vsel %vm175, %v2274, 0
    %v2282 = vsel %vm303, %v2277, 0
    %2284 = vmatprep.subr.bf16.mxu0 0
    %2285 = vmatpush1.bf16.msra.mxu0 0
    %2286 = vmatprep.subr.bf16.mxu0 0
    %2287 = vmatpush1.bf16.msra.mxu0 0
    %2288 = vmatprep.subr.bf16.mxu0 0
    %2289 = vmatpush1.bf16.msra.mxu0 0
    %2290 = vmatprep.subr.bf16.mxu0 0
    %2291 = vmatpush1.bf16.msra.mxu0 0
    %2292 = vmatprep.subr.bf16.mxu0 0
    %2293 = vmatpush1.bf16.msra.mxu0 0
    %2294 = vmatprep.subr.bf16.mxu0 0
    %2295 = vmatpush1.bf16.msra.mxu0 0
    %2296 = vmatprep.subr.bf16.mxu0 0
    %2297 = vmatpush1.bf16.msra.mxu0 0
    %2298 = vmatprep.subr.bf16.mxu0 0
    %2299 = vmatpush1.bf16.msra.mxu0 %v2282
    %2300 = vmatprep.subr.bf16.mxu0 0
    %2301 = vmatpush2.bf16.msra.mxu0 0
    %2302 = vmatprep.subr.bf16.mxu0 0
    %2303 = vmatpush2.bf16.msra.mxu0 0
    %2304 = vmatprep.subr.bf16.mxu0 0
    %2305 = vmatpush2.bf16.msra.mxu0 0
    %2306 = vmatprep.subr.bf16.mxu0 0
    %2307 = vmatpush2.bf16.msra.mxu0 0
    %2308 = vmatprep.subr.bf16.mxu0 0
    %2309 = vmatpush2.bf16.msra.mxu0 0
    %2310 = vmatprep.subr.bf16.mxu0 0
    %2311 = vmatpush2.bf16.msra.mxu0 0
    %2312 = vmatprep.subr.bf16.mxu0 0
    %2313 = vmatpush2.bf16.msra.mxu0 0
    %2314 = vmatprep.subr.bf16.mxu0 0
    %2315 = vmatpush2.bf16.msra.mxu0 0
    %2316 = vmatprep.mubr.bf16.mxu0 0
    %2317 = vmatmul.mubr.bf16.gmra.mxu0 %v2279
    %v2318 = vpop.f32.mrf.mxu0
    %v2319 = vadd.f32 0.0, %v2318
    %v2320 = vpop.f32.mrf.mxu0
    %v2321 = vpop.f32.mrf.mxu0
    %v2322 = vpop.f32.mrf.mxu0
    %2323 = vdwg.mxu0
    %2324 = vrot.lane.b32.xlu0 %v1613, 40
    %v2325 = vpop.permute.xlu0 %2324
    %v2327 = vsel %vm175, %v2275, 0
    %v2330 = vsel %vm303, %v2325, 0
    %2332 = vmatprep.subr.bf16.mxu0 0
    %2333 = vmatpush1.bf16.msra.mxu0 0
    %2334 = vmatprep.subr.bf16.mxu0 0
    %2335 = vmatpush1.bf16.msra.mxu0 0
    %2336 = vmatprep.subr.bf16.mxu0 0
    %2337 = vmatpush1.bf16.msra.mxu0 0
    %2338 = vmatprep.subr.bf16.mxu0 0
    %2339 = vmatpush1.bf16.msra.mxu0 0
    %2340 = vmatprep.subr.bf16.mxu0 0
    %2341 = vmatpush1.bf16.msra.mxu0 0
    %2342 = vmatprep.subr.bf16.mxu0 0
    %2343 = vmatpush1.bf16.msra.mxu0 0
    %2344 = vmatprep.subr.bf16.mxu0 0
    %2345 = vmatpush1.bf16.msra.mxu0 0
    %2346 = vmatprep.subr.bf16.mxu0 0
    %2347 = vmatpush1.bf16.msra.mxu0 %v2330
    %2348 = vmatprep.subr.bf16.mxu0 0
    %2349 = vmatpush2.bf16.msra.mxu0 0
    %2350 = vmatprep.subr.bf16.mxu0 0
    %2351 = vmatpush2.bf16.msra.mxu0 0
    %2352 = vmatprep.subr.bf16.mxu0 0
    %2353 = vmatpush2.bf16.msra.mxu0 0
    %2354 = vmatprep.subr.bf16.mxu0 0
    %2355 = vmatpush2.bf16.msra.mxu0 0
    %2356 = vmatprep.subr.bf16.mxu0 0
    %2357 = vmatpush2.bf16.msra.mxu0 0
    %2358 = vmatprep.subr.bf16.mxu0 0
    %2359 = vmatpush2.bf16.msra.mxu0 0
    %2360 = vmatprep.subr.bf16.mxu0 0
    %2361 = vmatpush2.bf16.msra.mxu0 0
    %2362 = vmatprep.subr.bf16.mxu0 0
    %2363 = vmatpush2.bf16.msra.mxu0 0
    %2364 = vmatprep.mubr.bf16.mxu0 0
    %2365 = vmatmul.mubr.bf16.gmra.mxu0 %v2327
    %v2366 = vpop.f32.mrf.mxu0
    %v2367 = vadd.f32 0.0, %v2366
    %v2368 = vpop.f32.mrf.mxu0
    %v2369 = vpop.f32.mrf.mxu0
    %v2370 = vpop.f32.mrf.mxu0
    %2371 = vdwg.mxu0
    %2374 = vrot.lane.b32.xlu0 %v1879, 8
    %v2375 = vpop.permute.xlu0 %2374
    %2376 = vrot.lane.b32.xlu0 %v1927, 8
    %v2377 = vpop.permute.xlu0 %2376
    %2382 = vrot.lane.b32.xlu0 %v2099, 16
    %v2383 = vpop.permute.xlu0 %2382
    %2384 = vrot.lane.b32.xlu0 %v2147, 16
    %v2385 = vpop.permute.xlu0 %2384
    %2390 = vrot.lane.b32.xlu0 %v2319, 24
    %v2391 = vpop.permute.xlu0 %2390
    %2392 = vrot.lane.b32.xlu0 %v2367, 24
    %v2393 = vpop.permute.xlu0 %2392
    %v2396 = vsel %vm175, %v1658, %v2375
    %v2397 = vsel %vm175, %v1707, %v2377
    %v2398 = vsel %vm1082, %v2396, %v2383
    %v2399 = vsel %vm1082, %v2397, %v2385
    %v2400 = vsel %vm1085, %v2398, %v2391
    %v2401 = vsel %vm1085, %v2399, %v2393
    %v2402 = vpack.c.bf16 %v2401, %v2400
    %s2403 = scalar_lea.vmem %s4, 16
    %v2404 = vld [vmem:[%s2403] sm:$0xf]
    %v2405 = vld [vmem:[%s2403 + $0x4] sm:$0xf]
    %v2406 = vld [vmem:[%s2403 + $0x8] sm:$0xf]
    %v2407 = vld [vmem:[%s2403 + $0xc] sm:$0xf]
    %s2408 = scalar_lea.vmem %s5, 1
    %v2409 = vld [vmem:[%s2408] sm:$0x1]
    %v2411 = vlaneseq
    %v2412 = vshrl.u32 %v2411, 7
    %v2413 = vsub.s32 0, %v2412
    %v2414 = vrot.slane %v2409, %v2413
    %v2420 = vunpack.c.l.b16 %v2404
    %v2421 = vunpack.c.l.b16 %v2405
    %v2422 = vunpack.c.l.b16 %v2406
    %v2423 = vunpack.c.l.b16 %v2407
    %v2424 = vpack.c.b16 %v2421, %v2420
    %v2425 = vpack.c.b16 %v2423, %v2422
    %v2429 = vsel %vm114, %v2402, 0
    %2431 = vmatprep.subr.bf16.mxu0 0
    %2432 = vmatpush1.bf16.msra.mxu0 0
    %2433 = vmatprep.subr.bf16.mxu0 0
    %2434 = vmatpush1.bf16.msra.mxu0 0
    %2435 = vmatprep.subr.bf16.mxu0 0
    %2436 = vmatpush1.bf16.msra.mxu0 0
    %2437 = vmatprep.subr.bf16.mxu0 0
    %2438 = vmatpush1.bf16.msra.mxu0 0
    %2439 = vmatprep.subr.bf16.mxu0 0
    %2440 = vmatpush1.bf16.msra.mxu0 0
    %2441 = vmatprep.subr.bf16.mxu0 0
    %2442 = vmatpush1.bf16.msra.mxu0 0
    %2443 = vmatprep.subr.bf16.mxu0 0
    %2444 = vmatpush1.bf16.msra.mxu0 %v2425
    %2445 = vmatprep.subr.bf16.mxu0 0
    %2446 = vmatpush1.bf16.msra.mxu0 %v2424
    %2447 = vmatprep.subr.bf16.mxu0 0
    %2448 = vmatpush2.bf16.msra.mxu0 0
    %2449 = vmatprep.subr.bf16.mxu0 0
    %2450 = vmatpush2.bf16.msra.mxu0 0
    %2451 = vmatprep.subr.bf16.mxu0 0
    %2452 = vmatpush2.bf16.msra.mxu0 0
    %2453 = vmatprep.subr.bf16.mxu0 0
    %2454 = vmatpush2.bf16.msra.mxu0 0
    %2455 = vmatprep.subr.bf16.mxu0 0
    %2456 = vmatpush2.bf16.msra.mxu0 0
    %2457 = vmatprep.subr.bf16.mxu0 0
    %2458 = vmatpush2.bf16.msra.mxu0 0
    %2459 = vmatprep.subr.bf16.mxu0 0
    %2460 = vmatpush2.bf16.msra.mxu0 0
    %2461 = vmatprep.subr.bf16.mxu0 0
    %2462 = vmatpush2.bf16.msra.mxu0 0
    %2463 = vmatprep.mubr.bf16.mxu0 0
    %2464 = vmatmul.mubr.bf16.gmra.mxu0 %v2429
    %v2465 = vpop.f32.mrf.mxu0
    %v2466 = vadd.f32 %v2414, %v2465
    %v2467 = vpop.f32.mrf.mxu0
    %v2468 = vpop.f32.mrf.mxu0
    %v2469 = vadd.f32 %v2414, %v2468
    %v2470 = vpop.f32.mrf.mxu0
    %2471 = vdwg.mxu0
    %v2472 = vadd.f32 %v1402, %v2466
    %v2473 = vadd.f32 %v1403, %v2469
    %s2474 = scalar_lea.vmem %s10, 1
    %v2475 = vld [vmem:[%s2474] sm:$0x1]
    %s2476 = scalar_lea.vmem %s11, 1
    %v2477 = vld [vmem:[%s2476] sm:$0x1]
    %v2478 = vsel %vm114, %v2472, 0.0
    %2479 = vadd.xlane.f32.xlu0 %v2478
    %v2480 = vpop.xlane.xlu0 %2479
    %v2481 = vsel %vm114, %v2473, 0.0
    %2482 = vadd.xlane.f32.xlu0 %v2481
    %v2483 = vpop.xlane.xlu0 %2482
    %v2484 = vmul.f32 %v2480, %v1166
    %v2485 = vmul.f32 %v2483, %v1166
    %v2486 = vsub.f32 %v2472, %v2484
    %v2487 = vsub.f32 %v2473, %v2485
    %v2488 = vmul.f32 %v2486, %v2486
    %v2489 = vmul.f32 %v2487, %v2487
    %v2490 = vsel %vm114, %v2488, 0.0
    %2491 = vadd.xlane.f32.xlu0 %v2490
    %v2492 = vpop.xlane.xlu0 %2491
    %v2493 = vsel %vm114, %v2489, 0.0
    %2494 = vadd.xlane.f32.xlu0 %v2493
    %v2495 = vpop.xlane.xlu0 %2494
    %v2496 = vmul.f32 %v2492, %v1166
    %v2497 = vmul.f32 %v2495, %v1166
    %v2498 = vadd.f32 %v2496, 1e-05
    %v2499 = vadd.f32 %v2497, 1e-05
    %v2500 = vrsqrt.pop %v2498
    %v2501 = vrsqrt.pop %v2499
    %v2502 = vmul.f32 %v2486, %v2500
    %v2503 = vmul.f32 %v2487, %v2501
    %v2505 = vlaneseq
    %v2506 = vshrl.u32 %v2505, 7
    %v2507 = vsub.s32 0, %v2506
    %v2508 = vrot.slane %v2475, %v2507
    %v2510 = vmul.f32 %v2502, %v2508
    %v2511 = vmul.f32 %v2503, %v2508
    %v2513 = vlaneseq
    %v2514 = vshrl.u32 %v2513, 7
    %v2515 = vsub.s32 0, %v2514
    %v2516 = vrot.slane %v2477, %v2515
    %v2518 = vadd.f32 %v2510, %v2516
    %v2519 = vadd.f32 %v2511, %v2516
    %v2520 = vpack.c.bf16 %v2519, %v2518
    %s2521 = scalar_lea.vmem %s6, 16
    %v2522 = vld [vmem:[%s2521] sm:$0xf]
    %v2523 = vld [vmem:[%s2521 + $0x4] sm:$0xf]
    %v2524 = vld [vmem:[%s2521 + $0x8] sm:$0xf]
    %v2525 = vld [vmem:[%s2521 + $0xc] sm:$0xf]
    %s2526 = scalar_lea.vmem %s7, 1
    %v2527 = vld [vmem:[%s2526] sm:$0x1]
    %v2529 = vlaneseq
    %v2530 = vshrl.u32 %v2529, 7
    %v2531 = vsub.s32 0, %v2530
    %v2532 = vrot.slane %v2527, %v2531
    %v2538 = vunpack.c.l.b16 %v2522
    %v2539 = vunpack.c.l.b16 %v2523
    %v2540 = vunpack.c.l.b16 %v2524
    %v2541 = vunpack.c.l.b16 %v2525
    %v2542 = vpack.c.b16 %v2539, %v2538
    %v2543 = vpack.c.b16 %v2541, %v2540
    %v2547 = vsel %vm114, %v2520, 0
    %2549 = vmatprep.subr.bf16.mxu0 0
    %2550 = vmatpush1.bf16.msra.mxu0 0
    %2551 = vmatprep.subr.bf16.mxu0 0
    %2552 = vmatpush1.bf16.msra.mxu0 0
    %2553 = vmatprep.subr.bf16.mxu0 0
    %2554 = vmatpush1.bf16.msra.mxu0 0
    %2555 = vmatprep.subr.bf16.mxu0 0
    %2556 = vmatpush1.bf16.msra.mxu0 0
    %2557 = vmatprep.subr.bf16.mxu0 0
    %2558 = vmatpush1.bf16.msra.mxu0 0
    %2559 = vmatprep.subr.bf16.mxu0 0
    %2560 = vmatpush1.bf16.msra.mxu0 0
    %2561 = vmatprep.subr.bf16.mxu0 0
    %2562 = vmatpush1.bf16.msra.mxu0 %v2543
    %2563 = vmatprep.subr.bf16.mxu0 0
    %2564 = vmatpush1.bf16.msra.mxu0 %v2542
    %2565 = vmatprep.subr.bf16.mxu0 0
    %2566 = vmatpush2.bf16.msra.mxu0 0
    %2567 = vmatprep.subr.bf16.mxu0 0
    %2568 = vmatpush2.bf16.msra.mxu0 0
    %2569 = vmatprep.subr.bf16.mxu0 0
    %2570 = vmatpush2.bf16.msra.mxu0 0
    %2571 = vmatprep.subr.bf16.mxu0 0
    %2572 = vmatpush2.bf16.msra.mxu0 0
    %2573 = vmatprep.subr.bf16.mxu0 0
    %2574 = vmatpush2.bf16.msra.mxu0 0
    %2575 = vmatprep.subr.bf16.mxu0 0
    %2576 = vmatpush2.bf16.msra.mxu0 0
    %2577 = vmatprep.subr.bf16.mxu0 0
    %2578 = vmatpush2.bf16.msra.mxu0 0
    %2579 = vmatprep.subr.bf16.mxu0 0
    %2580 = vmatpush2.bf16.msra.mxu0 0
    %2581 = vmatprep.mubr.bf16.mxu0 0
    %2582 = vmatmul.mubr.bf16.gmra.mxu0 %v2547
    %v2583 = vpop.f32.mrf.mxu0
    %v2584 = vadd.f32 %v2532, %v2583
    %v2585 = vpop.f32.mrf.mxu0
    %v2586 = vpop.f32.mrf.mxu0
    %v2587 = vadd.f32 %v2532, %v2586
    %v2588 = vpop.f32.mrf.mxu0
    %2589 = vdwg.mxu0
    %v2590 = vmax.f32 %v2584, 0.0
    %v2591 = vmax.f32 %v2587, 0.0
    %v2592 = vpack.c.bf16 %v2591, %v2590
    %s2593 = scalar_lea.vmem %s8, 32
    %v2594 = vld [vmem:[%s2593] sm:$0xf]
    %v2595 = vld [vmem:[%s2593 + $0x4] sm:$0xf]
    %v2596 = vld [vmem:[%s2593 + $0x8] sm:$0xf]
    %v2597 = vld [vmem:[%s2593 + $0xc] sm:$0xf]
    %v2598 = vld [vmem:[%s2593 + $0x10] sm:$0xf]
    %v2599 = vld [vmem:[%s2593 + $0x14] sm:$0xf]
    %v2600 = vld [vmem:[%s2593 + $0x18] sm:$0xf]
    %v2601 = vld [vmem:[%s2593 + $0x1c] sm:$0xf]
    %s2602 = scalar_lea.vmem %s9, 1
    %v2603 = vld [vmem:[%s2602] sm:$0x1]
    %v2605 = vlaneseq
    %v2606 = vshrl.u32 %v2605, 7
    %v2607 = vsub.s32 0, %v2606
    %v2608 = vrot.slane %v2603, %v2607
    %v2618 = vunpack.c.l.b16 %v2594
    %v2619 = vunpack.c.l.b16 %v2595
    %v2620 = vunpack.c.l.b16 %v2596
    %v2621 = vunpack.c.l.b16 %v2597
    %v2622 = vunpack.c.l.b16 %v2598
    %v2623 = vunpack.c.l.b16 %v2599
    %v2624 = vunpack.c.l.b16 %v2600
    %v2625 = vunpack.c.l.b16 %v2601
    %v2626 = vpack.c.b16 %v2619, %v2618
    %v2627 = vpack.c.b16 %v2621, %v2620
    %v2628 = vpack.c.b16 %v2623, %v2622
    %v2629 = vpack.c.b16 %v2625, %v2624
    %v2635 = vsel %vm1313, %v2592, 0
    %2637 = vmatprep.subr.bf16.mxu0 0
    %2638 = vmatpush1.bf16.msra.mxu0 0
    %2639 = vmatprep.subr.bf16.mxu0 0
    %2640 = vmatpush1.bf16.msra.mxu0 0
    %2641 = vmatprep.subr.bf16.mxu0 0
    %2642 = vmatpush1.bf16.msra.mxu0 0
    %2643 = vmatprep.subr.bf16.mxu0 0
    %2644 = vmatpush1.bf16.msra.mxu0 0
    %2645 = vmatprep.subr.bf16.mxu0 0
    %2646 = vmatpush1.bf16.msra.mxu0 %v2629
    %2647 = vmatprep.subr.bf16.mxu0 0
    %2648 = vmatpush1.bf16.msra.mxu0 %v2628
    %2649 = vmatprep.subr.bf16.mxu0 0
    %2650 = vmatpush1.bf16.msra.mxu0 %v2627
    %2651 = vmatprep.subr.bf16.mxu0 0
    %2652 = vmatpush1.bf16.msra.mxu0 %v2626
    %2653 = vmatprep.subr.bf16.mxu0 0
    %2654 = vmatpush2.bf16.msra.mxu0 0
    %2655 = vmatprep.subr.bf16.mxu0 0
    %2656 = vmatpush2.bf16.msra.mxu0 0
    %2657 = vmatprep.subr.bf16.mxu0 0
    %2658 = vmatpush2.bf16.msra.mxu0 0
    %2659 = vmatprep.subr.bf16.mxu0 0
    %2660 = vmatpush2.bf16.msra.mxu0 0
    %2661 = vmatprep.subr.bf16.mxu0 0
    %2662 = vmatpush2.bf16.msra.mxu0 0
    %2663 = vmatprep.subr.bf16.mxu0 0
    %2664 = vmatpush2.bf16.msra.mxu0 0
    %2665 = vmatprep.subr.bf16.mxu0 0
    %2666 = vmatpush2.bf16.msra.mxu0 0
    %2667 = vmatprep.subr.bf16.mxu0 0
    %2668 = vmatpush2.bf16.msra.mxu0 0
    %2669 = vmatprep.mubr.bf16.mxu0 0
    %2670 = vmatmul.mubr.bf16.gmra.mxu0 %v2635
    %v2671 = vpop.f32.mrf.mxu0
    %v2672 = vadd.f32 %v2608, %v2671
    %v2673 = vpop.f32.mrf.mxu0
    %v2674 = vpop.f32.mrf.mxu0
    %v2675 = vadd.f32 %v2608, %v2674
    %v2676 = vpop.f32.mrf.mxu0
    %2677 = vdwg.mxu0
    %v2678 = vadd.f32 %v2518, %v2672
    %v2679 = vadd.f32 %v2519, %v2675
    %s2680 = scalar_lea.vmem %s12, 1
    %v2681 = vld [vmem:[%s2680] sm:$0x1]
    %s2682 = scalar_lea.vmem %s13, 1
    %v2683 = vld [vmem:[%s2682] sm:$0x1]
    %v2684 = vsel %vm114, %v2678, 0.0
    %2685 = vadd.xlane.f32.xlu0 %v2684
    %v2686 = vpop.xlane.xlu0 %2685
    %v2687 = vsel %vm114, %v2679, 0.0
    %2688 = vadd.xlane.f32.xlu0 %v2687
    %v2689 = vpop.xlane.xlu0 %2688
    %v2690 = vmul.f32 %v2686, %v1166
    %v2691 = vmul.f32 %v2689, %v1166
    %v2692 = vsub.f32 %v2678, %v2690
    %v2693 = vsub.f32 %v2679, %v2691
    %v2694 = vmul.f32 %v2692, %v2692
    %v2695 = vmul.f32 %v2693, %v2693
    %v2696 = vsel %vm114, %v2694, 0.0
    %2697 = vadd.xlane.f32.xlu0 %v2696
    %v2698 = vpop.xlane.xlu0 %2697
    %v2699 = vsel %vm114, %v2695, 0.0
    %2700 = vadd.xlane.f32.xlu0 %v2699
    %v2701 = vpop.xlane.xlu0 %2700
    %v2702 = vmul.f32 %v2698, %v1166
    %v2703 = vmul.f32 %v2701, %v1166
    %v2704 = vadd.f32 %v2702, 1e-05
    %v2705 = vadd.f32 %v2703, 1e-05
    %v2706 = vrsqrt.pop %v2704
    %v2707 = vrsqrt.pop %v2705
    %v2708 = vmul.f32 %v2692, %v2706
    %v2709 = vmul.f32 %v2693, %v2707
    %v2711 = vlaneseq
    %v2712 = vshrl.u32 %v2711, 7
    %v2713 = vsub.s32 0, %v2712
    %v2714 = vrot.slane %v2681, %v2713
    %v2716 = vmul.f32 %v2708, %v2714
    %v2717 = vmul.f32 %v2709, %v2714
    %v2719 = vlaneseq
    %v2720 = vshrl.u32 %v2719, 7
    %v2721 = vsub.s32 0, %v2720
    %v2722 = vrot.slane %v2683, %v2721
    %v2724 = vadd.f32 %v2716, %v2722
    %v2725 = vadd.f32 %v2717, %v2722
    %v2726 = vld [vmem:[%s14] sm:$0x1]
    %v2727 = vld [vmem:[%s15] sm:$0x1]
    %v2728 = vsel %vm114, %v2724, 0.0
    %2729 = vadd.xlane.f32.xlu0 %v2728
    %v2730 = vpop.xlane.xlu0 %2729
    %v2731 = vsel %vm114, %v2725, 0.0
    %2732 = vadd.xlane.f32.xlu0 %v2731
    %v2733 = vpop.xlane.xlu0 %2732
    %v2734 = vmul.f32 %v2730, %v1166
    %v2735 = vmul.f32 %v2733, %v1166
    %v2736 = vsub.f32 %v2724, %v2734
    %v2737 = vsub.f32 %v2725, %v2735
    %v2738 = vmul.f32 %v2736, %v2736
    %v2739 = vmul.f32 %v2737, %v2737
    %v2740 = vsel %vm114, %v2738, 0.0
    %2741 = vadd.xlane.f32.xlu0 %v2740
    %v2742 = vpop.xlane.xlu0 %2741
    %v2743 = vsel %vm114, %v2739, 0.0
    %2744 = vadd.xlane.f32.xlu0 %v2743
    %v2745 = vpop.xlane.xlu0 %2744
    %v2746 = vmul.f32 %v2742, %v1166
    %v2747 = vmul.f32 %v2745, %v1166
    %v2748 = vadd.f32 %v2746, 1e-05
    %v2749 = vadd.f32 %v2747, 1e-05
    %v2750 = vrsqrt.pop %v2748
    %v2751 = vrsqrt.pop %v2749
    %v2752 = vmul.f32 %v2736, %v2750
    %v2753 = vmul.f32 %v2737, %v2751
    %v2755 = vlaneseq
    %v2756 = vshrl.u32 %v2755, 7
    %v2757 = vsub.s32 0, %v2756
    %v2758 = vrot.slane %v2726, %v2757
    %v2760 = vmul.f32 %v2752, %v2758
    %v2761 = vmul.f32 %v2753, %v2758
    %v2763 = vlaneseq
    %v2764 = vshrl.u32 %v2763, 7
    %v2765 = vsub.s32 0, %v2764
    %v2766 = vrot.slane %v2727, %v2765
    %v2768 = vadd.f32 %v2760, %v2766
    %v2769 = vadd.f32 %v2761, %v2766
    %2770 = vst.msk [vmem:[#allocation7] sm:$0xff] %vm114, %v2768
    %2771 = vst.msk [vmem:[#allocation7 + $0x8] sm:$0xff] %vm114, %v2769
    // Predicated region
    $region74: #{tpu_custom_call.1} parent=1 // pred_check
      _
    $region75: #{tpu_custom_call.1} parent=1 // pred_check_branch
      %2773 = sbr.rel (0) target = $region77
    $region76: #{tpu_custom_call.1} parent=1 // pred_region
      %s2775 = ssub.s32 256, 256
      %2776 = vsyncadd [#allocation4], %s2775
      %s2777 = sshll.u32 [#allocation7], 4
      %s2778 = int_to_ptr.vmem [resolvable:$true] %s2777
      %2783 = dma.vmem_to_hbm [thread:$0]  %s2778, 256, %s16, [#allocation4], 128, 128, 8
    $region77: #{tpu_custom_call.1} parent=1 // pred_fallthru
      _
    // Predicated region
    $region78: #{tpu_custom_call.1} parent=1 // pred_check
      _
    $region79: #{tpu_custom_call.1} parent=1 // pred_check_branch
      %2785 = sbr.rel (0) target = $region81
    $region80: #{tpu_custom_call.1} parent=1 // pred_region
      %2786 = dma.done [#allocation4], 256
    $region81: #{tpu_custom_call.1} parent=1 // pred_fallthru
      _
    %2787 = vsyncpa [#allocation3], 1
    %2788 = vsyncpa [#allocation6], 1
    %2789 = vsyncpa [#allocation4], 1

</llo_original>
